<compile_context>
chip_gen: v5e
topology: v5e:2x2
jax: 0.10.0
libtpu: 0.0.40
codegen_flags: <defaults>
</compile_context>

<pallas_src>
import math
from functools import partial

import numpy as np
import jax
import jax.numpy as jnp
from jax.experimental import pallas as pl
from jax.experimental.pallas import tpu as pltpu

# ---------------- config (small, consistent with the module) ----------------
DIM = 32
INPUT_RES = (8, 8)          # H, W  -> L = 64 tokens
DEPTH = 2                   # block 0: shift=0, block 1: shift=window//2
NUM_HEADS = 2
WINDOW_SIZE = 4
MLP_RATIO = 4.0
BATCH = 2
EPS_LN = 1e-5
_INV_SQRT2 = 1.0 / math.sqrt(2.0)
_NEG_BIG = -1e9             # out-of-window pairs: exp underflows to exactly 0


def _layernorm(v, g, b):
    mu = jnp.mean(v, axis=-1, keepdims=True)
    var = jnp.mean(jnp.square(v - mu), axis=-1, keepdims=True)
    return (v - mu) * jax.lax.rsqrt(var + EPS_LN) * g + b


# ============================ fused Pallas kernel ============================
def _basic_layer_kernel(x_ref, wqkv_ref, qkvb_ref, wprojh_ref, vecc_ref,
                        w1_ref, b1_ref, w2_ref, bias_ref, scale_ref, o_ref,
                        *, depth, num_heads, head_dim):
    """One batch element per grid step: the full BasicLayer (both SwinV2 blocks)."""
    _, L, C = x_ref.shape
    x = x_ref[...].astype(jnp.float32).reshape(L, C)       # raster token order

    for d in range(depth):                                  # static unroll (DEPTH=2)
        vec = vecc_ref[d]                                   # (6,C): bproj,b2,n1g,n1b,n2g,n2b

        # ---- fused QKV projection: one MXU pass (32x96), k has no bias ----
        qkv = jnp.dot(x, wqkv_ref[d], preferred_element_type=jnp.float32) + qkvb_ref[d]

        # ---- head-major views (nH, L, Dh): static lane slices + stack (XLU) ----
        q = jnp.stack([qkv[:, 0 * C + h * head_dim: 0 * C + (h + 1) * head_dim]
                       for h in range(num_heads)], axis=0)
        k = jnp.stack([qkv[:, 1 * C + h * head_dim: 1 * C + (h + 1) * head_dim]
                       for h in range(num_heads)], axis=0)
        v = jnp.stack([qkv[:, 2 * C + h * head_dim: 2 * C + (h + 1) * head_dim]
                       for h in range(num_heads)], axis=0)

        # ---- SwinV2 cosine attention, dense block-diagonal, head-batched ----
        # F.normalize(dim=-1): x * rsqrt(max(||x||^2, 1e-24)); logit scale folded into q.
        qn = q * (jax.lax.rsqrt(jnp.maximum(jnp.sum(q * q, -1, keepdims=True), 1e-24))
                  * scale_ref[d])                           # scale_ref[d]: (nH,1,1)
        kn = k * jax.lax.rsqrt(jnp.maximum(jnp.sum(k * k, -1, keepdims=True), 1e-24))
        attn = jnp.einsum('hqd,hkd->hqk', qn, kn,
                          preferred_element_type=jnp.float32)        # (nH, L, L)
        attn = attn + bias_ref[d]      # rel-pos bias + shift wrap mask + window mask
        attn = attn - jnp.max(attn, axis=-1, keepdims=True)
        p = jnp.exp(attn)
        p = p * pl.reciprocal(jnp.sum(p, axis=-1, keepdims=True), approx=True)
        ctx = jnp.einsum('hqk,hkd->hqd', p, v,
                         preferred_element_type=jnp.float32)         # (nH, L, Dh)

        # ---- output projection: head-concat folded into batched matmul + head-sum ----
        y = jnp.sum(jnp.einsum('hqd,hdc->hqc', ctx, wprojh_ref[d],
                               preferred_element_type=jnp.float32), axis=0) + vec[0:1]

        # ---- x = shortcut + LayerNorm(attn(x))   (SwinV2 post-norm) ----
        x = x + _layernorm(y, vec[2:3], vec[3:4])

        # ---- x = x + LayerNorm(fc2(GELU(fc1(x)))) ----
        hdn = jnp.dot(x, w1_ref[d], preferred_element_type=jnp.float32) + b1_ref[d]
        hdn = 0.5 * hdn * (1.0 + jax.lax.erf(hdn * _INV_SQRT2))      # exact GELU
        y2 = jnp.dot(hdn, w2_ref[d], preferred_element_type=jnp.float32) + vec[1:2]
        x = x + _layernorm(y2, vec[4:5], vec[5:6])

    o_ref[...] = x.reshape(1, L, C).astype(o_ref.dtype)


# ============================ kernel wrapper ============================
def basic_layer_fused(x, pk):
    """x: [B, L, C] raster tokens; pk: packed per-layer parameter dict."""
    B, L, C = x.shape
    depth = pk["wqkv"].shape[0]
    nH = pk["bias"].shape[1]

    def _full(a):                      # whole parameter array resident every step
        nd = a.ndim
        return pl.BlockSpec(a.shape, lambda b, _nd=nd: (0,) * _nd)

    kernel = partial(_basic_layer_kernel, depth=depth,
                     num_heads=nH, head_dim=C // nH)
    return pl.pallas_call(
        kernel,
        out_shape=jax.ShapeDtypeStruct((B, L, C), x.dtype),
        grid=(B,),
        in_specs=[
            pl.BlockSpec((1, L, C), lambda b: (b, 0, 0)),   # one image's tokens
            _full(pk["wqkv"]),      # [D, C, 3C]
            _full(pk["qkvb"]),      # [D, 1, 3C]
            _full(pk["wprojh"]),    # [D, nH, Dh, C]
            _full(pk["vecc"]),      # [D, 6, C]
            _full(pk["w1"]),        # [D, C, hidden]
            _full(pk["b1"]),        # [D, 1, hidden]
            _full(pk["w2"]),        # [D, hidden, C]
            _full(pk["bias"]),      # [D, nH, L, L] dense attention bias
            _full(pk["scale"]),     # [D, nH, 1, 1] cosine logit scale
        ],
        out_specs=pl.BlockSpec((1, L, C), lambda b: (b, 0, 0)),
        compiler_params=pltpu.CompilerParams(dimension_semantics=("parallel",)),
    )(x, pk["wqkv"], pk["qkvb"], pk["wprojh"], pk["vecc"], pk["w1"], pk["b1"],
      pk["w2"], pk["bias"], pk["scale"])


# ============================ parameter packing (one-time, hoisted) ============================
def make_relative_coords_table(ws):
    rh = np.arange(-(ws - 1), ws, dtype=np.float32)
    rw = np.arange(-(ws - 1), ws, dtype=np.float32)
    table = np.stack(np.meshgrid(rh, rw, indexing="ij"), axis=-1)   # [2ws-1, 2ws-1, 2]
    table = table / (ws - 1)
    table = table * 8.0
    table = np.sign(table) * np.log2(np.abs(table) + 1.0) / np.log2(8.0)
    return table.reshape(-1, 2).astype(np.float32)                   # [(2ws-1)^2, 2]


def precompute_block_bias(p, H, W, ws, shift, num_heads):
    """Dense [nH, L, L] additive attention bias in RASTER token order:
       CPB rel-pos bias + SwinV2 shift wrap mask (-100) for same-(shifted)-window
       pairs; -1e9 (=> exactly 0 softmax weight) for different-window pairs.
       Parameter-only -> computed once, outside the jitted forward path."""
    # CPB MLP: Linear(2,512)+ReLU -> Linear(512,nH, no bias) -> 16*sigmoid
    coords = jnp.asarray(make_relative_coords_table(ws))
    hb = jax.nn.relu(coords @ p["cpb_w1"] + p["cpb_b1"])
    table = 16.0 * jax.nn.sigmoid(hb @ p["cpb_w2"])                  # [(2ws-1)^2, nH]

    L = H * W
    hi, wi = np.divmod(np.arange(L), W)
    sh, sw = (hi - shift) % H, (wi - shift) % W                      # shifted-frame coords
    win = (sh // ws) * (W // ws) + (sw // ws)                        # shifted-window id
    same_win = win[:, None] == win[None, :]
    inr, inc = sh % ws, sw % ws                                      # within-window coords
    rel = (inr[:, None] - inr[None, :] + ws - 1) * (2 * ws - 1) \
        + (inc[:, None] - inc[None, :] + ws - 1)                     # [L, L] bias-table index

    if shift > 0:
        def region(c, size):
            return np.where(c < size - ws, 0, np.where(c < size - shift, 1, 2))
        reg = region(sh, H) * 3 + region(sw, W)
        wrap = np.where(same_win & (reg[:, None] != reg[None, :]), -100.0, 0.0)
    else:
        wrap = np.zeros((L, L))
    wrap = wrap.astype(np.float32)

    rpb = table[jnp.asarray(rel.reshape(-1))].reshape(L, L, num_heads)
    rpb = jnp.transpose(rpb, (2, 0, 1))                              # [nH, L, L]
    dense = jnp.where(jnp.asarray(same_win)[None],
                      rpb + jnp.asarray(wrap)[None], _NEG_BIG)
    return dense.astype(jnp.float32)


def pack_layer_params(blocks_params):
    H, W = INPUT_RES
    C, nH, ws = DIM, NUM_HEADS, WINDOW_SIZE
    Dh = C // nH
    keys = ("wqkv", "qkvb", "wprojh", "vecc", "w1", "b1", "w2", "bias", "scale")
    acc = {k: [] for k in keys}
    for i, p in enumerate(blocks_params):
        # real SwinV2 disables shift when input_resolution <= window_size
        shift = 0 if (i % 2 == 0 or min(H, W) <= ws) else ws // 2
        acc["wqkv"].append(p["wqkv"])
        acc["qkvb"].append(jnp.concatenate(
            [p["q_bias"], jnp.zeros_like(p["q_bias"]), p["v_bias"]])[None, :])
        acc["wprojh"].append(p["wproj"].reshape(nH, Dh, C))
        acc["vecc"].append(jnp.stack([p["bproj"], p["b2"], p["norm1_g"], p["norm1_b"],
                                      p["norm2_g"], p["norm2_b"]], axis=0))
        acc["w1"].append(p["w1"])
        acc["b1"].append(p["b1"][None, :])
        acc["w2"].append(p["w2"])
        acc["bias"].append(precompute_block_bias(p, H, W, ws, shift, nH))
        acc["scale"].append(jnp.exp(jnp.minimum(p["logit_scale"],
                                                math.log(100.0))).reshape(nH, 1, 1))
    return {k: jnp.stack(v, axis=0) for k, v in acc.items()}


def init_block_params(key, dim, num_heads, mlp_ratio):
    hidden = int(dim * mlp_ratio)
    ks = jax.random.split(key, 6)
    return {
        "wqkv": jax.random.normal(ks[0], (dim, 3 * dim), jnp.float32) * 0.02,
        "q_bias": jnp.zeros((dim,), jnp.float32),
        "v_bias": jnp.zeros((dim,), jnp.float32),
        "logit_scale": jnp.log(10.0 * jnp.ones((num_heads,), jnp.float32)),
        "cpb_w1": jax.random.normal(ks[1], (2, 512), jnp.float32) * 0.02,
        "cpb_b1": jnp.zeros((512,), jnp.float32),
        "cpb_w2": jax.random.normal(ks[2], (512, num_heads), jnp.float32) * 0.02,
        "wproj": jax.random.normal(ks[3], (dim, dim), jnp.float32) * 0.02,
        "bproj": jnp.zeros((dim,), jnp.float32),
        "norm1_g": jnp.ones((dim,), jnp.float32),
        "norm1_b": jnp.zeros((dim,), jnp.float32),
        "norm2_g": jnp.ones((dim,), jnp.float32),
        "norm2_b": jnp.zeros((dim,), jnp.float32),
        "w1": jax.random.normal(ks[4], (dim, hidden), jnp.float32) * 0.02,
        "b1": jnp.zeros((hidden,), jnp.float32),
        "w2": jax.random.normal(ks[5], (hidden, dim), jnp.float32) * 0.02,
        "b2": jnp.zeros((dim,), jnp.float32),
    }


# ============================ forward ============================
def basic_layer_forward(x, packed):
    # Both blocks, their window attention, residual/LN and MLP are fused into a
    # single pallas_call; no roll / window partition / reverse in the forward.
    # TODO(synk): downsample (PatchMerging) is None in this configuration -> not applied.
    return basic_layer_fused(x, packed)


# ============================ main ============================
if __name__ == "__main__":
    key = jax.random.PRNGKey(0)
    kx, kp = jax.random.split(key)
    H, W = INPUT_RES

    x = jax.random.normal(kx, (BATCH, H * W, DIM), jnp.float32)
    block_keys = jax.random.split(kp, DEPTH)
    params = [init_block_params(k, DIM, NUM_HEADS, MLP_RATIO) for k in block_keys]

    # one-time, parameter-only precompute (CPB bias MLP, window/shift masks,
    # weight packing) -- hoisted out of the jitted forward path.
    packed = pack_layer_params(params)

    fwd = jax.jit(basic_layer_forward)
    out = fwd(x, packed)
    jax.block_until_ready(out)
    assert out.shape == (BATCH, H * W, DIM) and out.dtype == jnp.float32
    print("KERNEL_OK")
</pallas_src>

<mosaic_0001>
module attributes {stable_mosaic.version = 11 : i64} {
  func.func @_basic_layer_kernel(%arg0: i32, %arg1: memref<1x64x32xf32, #tpu.memory_space<vmem>>, %arg2: memref<2x32x96xf32, #tpu.memory_space<vmem>>, %arg3: memref<2x1x96xf32, #tpu.memory_space<vmem>>, %arg4: memref<2x2x16x32xf32, #tpu.memory_space<vmem>>, %arg5: memref<2x6x32xf32, #tpu.memory_space<vmem>>, %arg6: memref<2x32x128xf32, #tpu.memory_space<vmem>>, %arg7: memref<2x1x128xf32, #tpu.memory_space<vmem>>, %arg8: memref<2x128x32xf32, #tpu.memory_space<vmem>>, %arg9: memref<2x2x64x64xf32, #tpu.memory_space<vmem>>, %arg10: memref<2x2x1x1xf32, #tpu.memory_space<vmem>>, %arg11: memref<1x64x32xf32, #tpu.memory_space<vmem>>) attributes {dimension_semantics = [#tpu.dimension_semantics<parallel>], iteration_bounds = array<i64: 2>, scalar_prefetch = 0 : i64, scratch_operands = 0 : i64, tpu.core_type = #tpu.core_type<tc>, window_params = [{transform_indices = @transform_0, window_bounds = array<i64: 1, 64, 32>}, {pipeline_mode = #tpu.pipeline_mode<synchronous>, transform_indices = @transform_1, window_bounds = array<i64: 2, 32, 96>}, {pipeline_mode = #tpu.pipeline_mode<synchronous>, transform_indices = @transform_2, window_bounds = array<i64: 2, 1, 96>}, {pipeline_mode = #tpu.pipeline_mode<synchronous>, transform_indices = @transform_3, window_bounds = array<i64: 2, 2, 16, 32>}, {pipeline_mode = #tpu.pipeline_mode<synchronous>, transform_indices = @transform_4, window_bounds = array<i64: 2, 6, 32>}, {pipeline_mode = #tpu.pipeline_mode<synchronous>, transform_indices = @transform_5, window_bounds = array<i64: 2, 32, 128>}, {pipeline_mode = #tpu.pipeline_mode<synchronous>, transform_indices = @transform_6, window_bounds = array<i64: 2, 1, 128>}, {pipeline_mode = #tpu.pipeline_mode<synchronous>, transform_indices = @transform_7, window_bounds = array<i64: 2, 128, 32>}, {pipeline_mode = #tpu.pipeline_mode<synchronous>, transform_indices = @transform_8, window_bounds = array<i64: 2, 2, 64, 64>}, {pipeline_mode = #tpu.pipeline_mode<synchronous>, transform_indices = @transform_9, window_bounds = array<i64: 2, 2, 1, 1>}, {transform_indices = @transform_10, window_bounds = array<i64: 1, 64, 32>}]} {
    %c0 = arith.constant 0 : index
    %c0_0 = arith.constant 0 : index
    %c0_1 = arith.constant 0 : index
    %0 = vector.load %arg1[%c0, %c0_0, %c0_1] : memref<1x64x32xf32, #tpu.memory_space<vmem>>, vector<1x64x32xf32>
    %1 = vector.shape_cast %0 : vector<1x64x32xf32> to vector<64x32xf32>
    %c0_2 = arith.constant 0 : index
    %c0_3 = arith.constant 0 : index
    %c0_4 = arith.constant 0 : index
    %2 = vector.load %arg5[%c0_2, %c0_3, %c0_4] : memref<2x6x32xf32, #tpu.memory_space<vmem>>, vector<1x6x32xf32>
    %3 = vector.shape_cast %2 : vector<1x6x32xf32> to vector<6x32xf32>
    %c0_5 = arith.constant 0 : index
    %c0_6 = arith.constant 0 : index
    %c0_7 = arith.constant 0 : index
    %4 = vector.load %arg2[%c0_5, %c0_6, %c0_7] : memref<2x32x96xf32, #tpu.memory_space<vmem>>, vector<1x32x96xf32>
    %5 = vector.shape_cast %4 : vector<1x32x96xf32> to vector<32x96xf32>
    %cst = arith.constant dense<0.000000e+00> : vector<64x96xf32>
    %6 = tpu.matmul %1, %5, %cst {dimension_numbers = #tpu.dot_dimension_numbers<[1], [0], [0], [1], [0, 0, 1, 1], [], []>} : vector<64x32xf32>, vector<32x96xf32>, vector<64x96xf32> -> vector<64x96xf32>
    %c0_8 = arith.constant 0 : index
    %c0_9 = arith.constant 0 : index
    %c0_10 = arith.constant 0 : index
    %7 = vector.load %arg3[%c0_8, %c0_9, %c0_10] : memref<2x1x96xf32, #tpu.memory_space<vmem>>, vector<1x1x96xf32>
    %8 = vector.shape_cast %7 : vector<1x1x96xf32> to vector<1x96xf32>
    %9 = vector.broadcast %8 : vector<1x96xf32> to vector<64x96xf32>
    %10 = arith.addf %6, %9 : vector<64x96xf32>
    %11 = vector.extract_strided_slice %10 {offsets = [0, 0], sizes = [64, 16], strides = [1, 1]} : vector<64x96xf32> to vector<64x16xf32>
    %12 = vector.extract_strided_slice %10 {offsets = [0, 16], sizes = [64, 16], strides = [1, 1]} : vector<64x96xf32> to vector<64x16xf32>
    %13 = vector.shape_cast %11 : vector<64x16xf32> to vector<1x64x16xf32>
    %14 = vector.shape_cast %12 : vector<64x16xf32> to vector<1x64x16xf32>
    %15 = tpu.concatenate %13, %14 in 0 : vector<1x64x16xf32>, vector<1x64x16xf32> -> vector<2x64x16xf32>
    %16 = vector.extract_strided_slice %10 {offsets = [0, 32], sizes = [64, 16], strides = [1, 1]} : vector<64x96xf32> to vector<64x16xf32>
    %17 = vector.extract_strided_slice %10 {offsets = [0, 48], sizes = [64, 16], strides = [1, 1]} : vector<64x96xf32> to vector<64x16xf32>
    %18 = vector.shape_cast %16 : vector<64x16xf32> to vector<1x64x16xf32>
    %19 = vector.shape_cast %17 : vector<64x16xf32> to vector<1x64x16xf32>
    %20 = tpu.concatenate %18, %19 in 0 : vector<1x64x16xf32>, vector<1x64x16xf32> -> vector<2x64x16xf32>
    %21 = vector.extract_strided_slice %10 {offsets = [0, 64], sizes = [64, 16], strides = [1, 1]} : vector<64x96xf32> to vector<64x16xf32>
    %22 = vector.extract_strided_slice %10 {offsets = [0, 80], sizes = [64, 16], strides = [1, 1]} : vector<64x96xf32> to vector<64x16xf32>
    %23 = vector.shape_cast %21 : vector<64x16xf32> to vector<1x64x16xf32>
    %24 = vector.shape_cast %22 : vector<64x16xf32> to vector<1x64x16xf32>
    %25 = tpu.concatenate %23, %24 in 0 : vector<1x64x16xf32>, vector<1x64x16xf32> -> vector<2x64x16xf32>
    %26 = arith.mulf %15, %15 : vector<2x64x16xf32>
    %cst_11 = arith.constant dense<0.000000e+00> : vector<2x64xf32>
    %27 = vector.multi_reduction <add>, %26, %cst_11 [2] : vector<2x64x16xf32> to vector<2x64xf32>
    %28 = vector.shape_cast %27 : vector<2x64xf32> to vector<2x64x1xf32>
    %cst_12 = arith.constant 1.000000e-24 : f32
    %29 = vector.broadcast %cst_12 : f32 to vector<2x64x1xf32>
    %30 = arith.maximumf %28, %29 : vector<2x64x1xf32>
    %31 = math.rsqrt %30 : vector<2x64x1xf32>
    %c0_13 = arith.constant 0 : index
    %c0_14 = arith.constant 0 : index
    %c0_15 = arith.constant 0 : index
    %c0_16 = arith.constant 0 : index
    %32 = vector.load %arg10[%c0_13, %c0_14, %c0_15, %c0_16] : memref<2x2x1x1xf32, #tpu.memory_space<vmem>>, vector<1x2x1x1xf32>
    %33 = vector.shape_cast %32 : vector<1x2x1x1xf32> to vector<2x1x1xf32>
    %34 = vector.broadcast %33 : vector<2x1x1xf32> to vector<2x64x1xf32>
    %35 = arith.mulf %31, %34 : vector<2x64x1xf32>
    %36 = vector.broadcast %35 : vector<2x64x1xf32> to vector<2x64x16xf32>
    %37 = arith.mulf %15, %36 : vector<2x64x16xf32>
    %38 = arith.mulf %20, %20 : vector<2x64x16xf32>
    %cst_17 = arith.constant dense<0.000000e+00> : vector<2x64xf32>
    %39 = vector.multi_reduction <add>, %38, %cst_17 [2] : vector<2x64x16xf32> to vector<2x64xf32>
    %40 = vector.shape_cast %39 : vector<2x64xf32> to vector<2x64x1xf32>
    %cst_18 = arith.constant 1.000000e-24 : f32
    %41 = vector.broadcast %cst_18 : f32 to vector<2x64x1xf32>
    %42 = arith.maximumf %40, %41 : vector<2x64x1xf32>
    %43 = math.rsqrt %42 : vector<2x64x1xf32>
    %44 = vector.broadcast %43 : vector<2x64x1xf32> to vector<2x64x16xf32>
    %45 = arith.mulf %20, %44 : vector<2x64x16xf32>
    "tpu.trace_start"() <{level = 10 : i32, message = "hqd,hkd->hqk"}> : () -> ()
    %cst_19 = arith.constant dense<0.000000e+00> : vector<2x64x64xf32>
    %46 = tpu.matmul %37, %45, %cst_19 {dimension_numbers = #tpu.dot_dimension_numbers<[2], [2], [1], [1], [0, 0, 0, 1, 1, 1], [0], [0]>} : vector<2x64x16xf32>, vector<2x64x16xf32>, vector<2x64x64xf32> -> vector<2x64x64xf32>
    "tpu.trace_stop"() : () -> ()
    %c0_20 = arith.constant 0 : index
    %c0_21 = arith.constant 0 : index
    %c0_22 = arith.constant 0 : index
    %c0_23 = arith.constant 0 : index
    %47 = vector.load %arg9[%c0_20, %c0_21, %c0_22, %c0_23] : memref<2x2x64x64xf32, #tpu.memory_space<vmem>>, vector<1x2x64x64xf32>
    %48 = vector.shape_cast %47 : vector<1x2x64x64xf32> to vector<2x64x64xf32>
    %49 = arith.addf %46, %48 : vector<2x64x64xf32>
    %cst_24 = arith.constant dense<0xFF800000> : vector<2x64xf32>
    %50 = vector.multi_reduction <maximumf>, %49, %cst_24 [2] : vector<2x64x64xf32> to vector<2x64xf32>
    %51 = vector.shape_cast %50 : vector<2x64xf32> to vector<2x64x1xf32>
    %52 = vector.broadcast %51 : vector<2x64x1xf32> to vector<2x64x64xf32>
    %53 = arith.subf %49, %52 : vector<2x64x64xf32>
    %54 = math.exp %53 : vector<2x64x64xf32>
    %cst_25 = arith.constant dense<0.000000e+00> : vector<2x64xf32>
    %55 = vector.multi_reduction <add>, %54, %cst_25 [2] : vector<2x64x64xf32> to vector<2x64xf32>
    %56 = vector.shape_cast %55 : vector<2x64xf32> to vector<2x64x1xf32>
    %57 = tpu.reciprocal %56 {approx = true} : vector<2x64x1xf32> -> vector<2x64x1xf32>
    %58 = vector.broadcast %57 : vector<2x64x1xf32> to vector<2x64x64xf32>
    %59 = arith.mulf %54, %58 : vector<2x64x64xf32>
    "tpu.trace_start"() <{level = 10 : i32, message = "hqk,hkd->hqd"}> : () -> ()
    %cst_26 = arith.constant dense<0.000000e+00> : vector<2x64x16xf32>
    %60 = tpu.matmul %59, %25, %cst_26 {dimension_numbers = #tpu.dot_dimension_numbers<[2], [1], [1], [2], [0, 0, 0, 1, 1, 2], [0], [0]>} : vector<2x64x64xf32>, vector<2x64x16xf32>, vector<2x64x16xf32> -> vector<2x64x16xf32>
    "tpu.trace_stop"() : () -> ()
    %c0_27 = arith.constant 0 : index
    %c0_28 = arith.constant 0 : index
    %c0_29 = arith.constant 0 : index
    %c0_30 = arith.constant 0 : index
    %61 = vector.load %arg4[%c0_27, %c0_28, %c0_29, %c0_30] : memref<2x2x16x32xf32, #tpu.memory_space<vmem>>, vector<1x2x16x32xf32>
    %62 = vector.shape_cast %61 : vector<1x2x16x32xf32> to vector<2x16x32xf32>
    "tpu.trace_start"() <{level = 10 : i32, message = "hqd,hdc->hqc"}> : () -> ()
    %cst_31 = arith.constant dense<0.000000e+00> : vector<2x64x32xf32>
    %63 = tpu.matmul %60, %62, %cst_31 {dimension_numbers = #tpu.dot_dimension_numbers<[2], [1], [1], [2], [0, 0, 0, 1, 1, 2], [0], [0]>} : vector<2x64x16xf32>, vector<2x16x32xf32>, vector<2x64x32xf32> -> vector<2x64x32xf32>
    "tpu.trace_stop"() : () -> ()
    %cst_32 = arith.constant dense<0.000000e+00> : vector<64x32xf32>
    %64 = vector.multi_reduction <add>, %63, %cst_32 [0] : vector<2x64x32xf32> to vector<64x32xf32>
    %65 = vector.extract_strided_slice %3 {offsets = [0, 0], sizes = [1, 32], strides = [1, 1]} : vector<6x32xf32> to vector<1x32xf32>
    %66 = vector.broadcast %65 : vector<1x32xf32> to vector<64x32xf32>
    %67 = arith.addf %64, %66 : vector<64x32xf32>
    %68 = vector.extract_strided_slice %3 {offsets = [2, 0], sizes = [1, 32], strides = [1, 1]} : vector<6x32xf32> to vector<1x32xf32>
    %69 = vector.extract_strided_slice %3 {offsets = [3, 0], sizes = [1, 32], strides = [1, 1]} : vector<6x32xf32> to vector<1x32xf32>
    %cst_33 = arith.constant dense<0.000000e+00> : vector<64xf32>
    %70 = vector.multi_reduction <add>, %67, %cst_33 [1] : vector<64x32xf32> to vector<64xf32>
    %71 = vector.shape_cast %70 : vector<64xf32> to vector<64x1xf32>
    %cst_34 = arith.constant 3.200000e+01 : f32
    %72 = vector.broadcast %cst_34 : f32 to vector<64x1xf32>
    %73 = arith.divf %71, %72 : vector<64x1xf32>
    %74 = vector.broadcast %73 : vector<64x1xf32> to vector<64x32xf32>
    %75 = arith.subf %67, %74 : vector<64x32xf32>
    %76 = arith.mulf %75, %75 : vector<64x32xf32>
    %cst_35 = arith.constant dense<0.000000e+00> : vector<64xf32>
    %77 = vector.multi_reduction <add>, %76, %cst_35 [1] : vector<64x32xf32> to vector<64xf32>
    %78 = vector.shape_cast %77 : vector<64xf32> to vector<64x1xf32>
    %cst_36 = arith.constant 3.200000e+01 : f32
    %79 = vector.broadcast %cst_36 : f32 to vector<64x1xf32>
    %80 = arith.divf %78, %79 : vector<64x1xf32>
    %81 = vector.broadcast %73 : vector<64x1xf32> to vector<64x32xf32>
    %82 = arith.subf %67, %81 : vector<64x32xf32>
    %cst_37 = arith.constant 9.99999974E-6 : f32
    %83 = vector.broadcast %cst_37 : f32 to vector<64x1xf32>
    %84 = arith.addf %80, %83 : vector<64x1xf32>
    %85 = math.rsqrt %84 : vector<64x1xf32>
    %86 = vector.broadcast %85 : vector<64x1xf32> to vector<64x32xf32>
    %87 = arith.mulf %82, %86 : vector<64x32xf32>
    %88 = vector.broadcast %68 : vector<1x32xf32> to vector<64x32xf32>
    %89 = arith.mulf %87, %88 : vector<64x32xf32>
    %90 = vector.broadcast %69 : vector<1x32xf32> to vector<64x32xf32>
    %91 = arith.addf %89, %90 : vector<64x32xf32>
    %92 = arith.addf %1, %91 : vector<64x32xf32>
    %c0_38 = arith.constant 0 : index
    %c0_39 = arith.constant 0 : index
    %c0_40 = arith.constant 0 : index
    %93 = vector.load %arg6[%c0_38, %c0_39, %c0_40] : memref<2x32x128xf32, #tpu.memory_space<vmem>>, vector<1x32x128xf32>
    %94 = vector.shape_cast %93 : vector<1x32x128xf32> to vector<32x128xf32>
    %cst_41 = arith.constant dense<0.000000e+00> : vector<64x128xf32>
    %95 = tpu.matmul %92, %94, %cst_41 {dimension_numbers = #tpu.dot_dimension_numbers<[1], [0], [0], [1], [0, 0, 1, 1], [], []>} : vector<64x32xf32>, vector<32x128xf32>, vector<64x128xf32> -> vector<64x128xf32>
    %c0_42 = arith.constant 0 : index
    %c0_43 = arith.constant 0 : index
    %c0_44 = arith.constant 0 : index
    %96 = vector.load %arg7[%c0_42, %c0_43, %c0_44] : memref<2x1x128xf32, #tpu.memory_space<vmem>>, vector<1x1x128xf32>
    %97 = vector.shape_cast %96 : vector<1x1x128xf32> to vector<1x128xf32>
    %98 = vector.broadcast %97 : vector<1x128xf32> to vector<64x128xf32>
    %99 = arith.addf %95, %98 : vector<64x128xf32>
    %cst_45 = arith.constant 5.000000e-01 : f32
    %100 = vector.broadcast %cst_45 : f32 to vector<64x128xf32>
    %101 = arith.mulf %100, %99 : vector<64x128xf32>
    %cst_46 = arith.constant 0.707106769 : f32
    %102 = vector.broadcast %cst_46 : f32 to vector<64x128xf32>
    %103 = arith.mulf %99, %102 : vector<64x128xf32>
    %104 = math.erf %103 : vector<64x128xf32>
    %cst_47 = arith.constant 1.000000e+00 : f32
    %105 = vector.broadcast %cst_47 : f32 to vector<64x128xf32>
    %106 = arith.addf %105, %104 : vector<64x128xf32>
    %107 = arith.mulf %101, %106 : vector<64x128xf32>
    %c0_48 = arith.constant 0 : index
    %c0_49 = arith.constant 0 : index
    %c0_50 = arith.constant 0 : index
    %108 = vector.load %arg8[%c0_48, %c0_49, %c0_50] : memref<2x128x32xf32, #tpu.memory_space<vmem>>, vector<1x128x32xf32>
    %109 = vector.shape_cast %108 : vector<1x128x32xf32> to vector<128x32xf32>
    %cst_51 = arith.constant dense<0.000000e+00> : vector<64x32xf32>
    %110 = tpu.matmul %107, %109, %cst_51 {dimension_numbers = #tpu.dot_dimension_numbers<[1], [0], [0], [1], [0, 0, 1, 1], [], []>} : vector<64x128xf32>, vector<128x32xf32>, vector<64x32xf32> -> vector<64x32xf32>
    %111 = vector.extract_strided_slice %3 {offsets = [1, 0], sizes = [1, 32], strides = [1, 1]} : vector<6x32xf32> to vector<1x32xf32>
    %112 = vector.broadcast %111 : vector<1x32xf32> to vector<64x32xf32>
    %113 = arith.addf %110, %112 : vector<64x32xf32>
    %114 = vector.extract_strided_slice %3 {offsets = [4, 0], sizes = [1, 32], strides = [1, 1]} : vector<6x32xf32> to vector<1x32xf32>
    %115 = vector.extract_strided_slice %3 {offsets = [5, 0], sizes = [1, 32], strides = [1, 1]} : vector<6x32xf32> to vector<1x32xf32>
    %cst_52 = arith.constant dense<0.000000e+00> : vector<64xf32>
    %116 = vector.multi_reduction <add>, %113, %cst_52 [1] : vector<64x32xf32> to vector<64xf32>
    %117 = vector.shape_cast %116 : vector<64xf32> to vector<64x1xf32>
    %cst_53 = arith.constant 3.200000e+01 : f32
    %118 = vector.broadcast %cst_53 : f32 to vector<64x1xf32>
    %119 = arith.divf %117, %118 : vector<64x1xf32>
    %120 = vector.broadcast %119 : vector<64x1xf32> to vector<64x32xf32>
    %121 = arith.subf %113, %120 : vector<64x32xf32>
    %122 = arith.mulf %121, %121 : vector<64x32xf32>
    %cst_54 = arith.constant dense<0.000000e+00> : vector<64xf32>
    %123 = vector.multi_reduction <add>, %122, %cst_54 [1] : vector<64x32xf32> to vector<64xf32>
    %124 = vector.shape_cast %123 : vector<64xf32> to vector<64x1xf32>
    %cst_55 = arith.constant 3.200000e+01 : f32
    %125 = vector.broadcast %cst_55 : f32 to vector<64x1xf32>
    %126 = arith.divf %124, %125 : vector<64x1xf32>
    %127 = vector.broadcast %119 : vector<64x1xf32> to vector<64x32xf32>
    %128 = arith.subf %113, %127 : vector<64x32xf32>
    %cst_56 = arith.constant 9.99999974E-6 : f32
    %129 = vector.broadcast %cst_56 : f32 to vector<64x1xf32>
    %130 = arith.addf %126, %129 : vector<64x1xf32>
    %131 = math.rsqrt %130 : vector<64x1xf32>
    %132 = vector.broadcast %131 : vector<64x1xf32> to vector<64x32xf32>
    %133 = arith.mulf %128, %132 : vector<64x32xf32>
    %134 = vector.broadcast %114 : vector<1x32xf32> to vector<64x32xf32>
    %135 = arith.mulf %133, %134 : vector<64x32xf32>
    %136 = vector.broadcast %115 : vector<1x32xf32> to vector<64x32xf32>
    %137 = arith.addf %135, %136 : vector<64x32xf32>
    %138 = arith.addf %92, %137 : vector<64x32xf32>
    %c1 = arith.constant 1 : index
    %c0_57 = arith.constant 0 : index
    %c0_58 = arith.constant 0 : index
    %139 = vector.load %arg5[%c1, %c0_57, %c0_58] : memref<2x6x32xf32, #tpu.memory_space<vmem>>, vector<1x6x32xf32>
    %140 = vector.shape_cast %139 : vector<1x6x32xf32> to vector<6x32xf32>
    %c1_59 = arith.constant 1 : index
    %c0_60 = arith.constant 0 : index
    %c0_61 = arith.constant 0 : index
    %141 = vector.load %arg2[%c1_59, %c0_60, %c0_61] : memref<2x32x96xf32, #tpu.memory_space<vmem>>, vector<1x32x96xf32>
    %142 = vector.shape_cast %141 : vector<1x32x96xf32> to vector<32x96xf32>
    %cst_62 = arith.constant dense<0.000000e+00> : vector<64x96xf32>
    %143 = tpu.matmul %138, %142, %cst_62 {dimension_numbers = #tpu.dot_dimension_numbers<[1], [0], [0], [1], [0, 0, 1, 1], [], []>} : vector<64x32xf32>, vector<32x96xf32>, vector<64x96xf32> -> vector<64x96xf32>
    %c1_63 = arith.constant 1 : index
    %c0_64 = arith.constant 0 : index
    %c0_65 = arith.constant 0 : index
    %144 = vector.load %arg3[%c1_63, %c0_64, %c0_65] : memref<2x1x96xf32, #tpu.memory_space<vmem>>, vector<1x1x96xf32>
    %145 = vector.shape_cast %144 : vector<1x1x96xf32> to vector<1x96xf32>
    %146 = vector.broadcast %145 : vector<1x96xf32> to vector<64x96xf32>
    %147 = arith.addf %143, %146 : vector<64x96xf32>
    %148 = vector.extract_strided_slice %147 {offsets = [0, 0], sizes = [64, 16], strides = [1, 1]} : vector<64x96xf32> to vector<64x16xf32>
    %149 = vector.extract_strided_slice %147 {offsets = [0, 16], sizes = [64, 16], strides = [1, 1]} : vector<64x96xf32> to vector<64x16xf32>
    %150 = vector.shape_cast %148 : vector<64x16xf32> to vector<1x64x16xf32>
    %151 = vector.shape_cast %149 : vector<64x16xf32> to vector<1x64x16xf32>
    %152 = tpu.concatenate %150, %151 in 0 : vector<1x64x16xf32>, vector<1x64x16xf32> -> vector<2x64x16xf32>
    %153 = vector.extract_strided_slice %147 {offsets = [0, 32], sizes = [64, 16], strides = [1, 1]} : vector<64x96xf32> to vector<64x16xf32>
    %154 = vector.extract_strided_slice %147 {offsets = [0, 48], sizes = [64, 16], strides = [1, 1]} : vector<64x96xf32> to vector<64x16xf32>
    %155 = vector.shape_cast %153 : vector<64x16xf32> to vector<1x64x16xf32>
    %156 = vector.shape_cast %154 : vector<64x16xf32> to vector<1x64x16xf32>
    %157 = tpu.concatenate %155, %156 in 0 : vector<1x64x16xf32>, vector<1x64x16xf32> -> vector<2x64x16xf32>
    %158 = vector.extract_strided_slice %147 {offsets = [0, 64], sizes = [64, 16], strides = [1, 1]} : vector<64x96xf32> to vector<64x16xf32>
    %159 = vector.extract_strided_slice %147 {offsets = [0, 80], sizes = [64, 16], strides = [1, 1]} : vector<64x96xf32> to vector<64x16xf32>
    %160 = vector.shape_cast %158 : vector<64x16xf32> to vector<1x64x16xf32>
    %161 = vector.shape_cast %159 : vector<64x16xf32> to vector<1x64x16xf32>
    %162 = tpu.concatenate %160, %161 in 0 : vector<1x64x16xf32>, vector<1x64x16xf32> -> vector<2x64x16xf32>
    %163 = arith.mulf %152, %152 : vector<2x64x16xf32>
    %cst_66 = arith.constant dense<0.000000e+00> : vector<2x64xf32>
    %164 = vector.multi_reduction <add>, %163, %cst_66 [2] : vector<2x64x16xf32> to vector<2x64xf32>
    %165 = vector.shape_cast %164 : vector<2x64xf32> to vector<2x64x1xf32>
    %cst_67 = arith.constant 1.000000e-24 : f32
    %166 = vector.broadcast %cst_67 : f32 to vector<2x64x1xf32>
    %167 = arith.maximumf %165, %166 : vector<2x64x1xf32>
    %168 = math.rsqrt %167 : vector<2x64x1xf32>
    %c1_68 = arith.constant 1 : index
    %c0_69 = arith.constant 0 : index
    %c0_70 = arith.constant 0 : index
    %c0_71 = arith.constant 0 : index
    %169 = vector.load %arg10[%c1_68, %c0_69, %c0_70, %c0_71] : memref<2x2x1x1xf32, #tpu.memory_space<vmem>>, vector<1x2x1x1xf32>
    %170 = vector.shape_cast %169 : vector<1x2x1x1xf32> to vector<2x1x1xf32>
    %171 = vector.broadcast %170 : vector<2x1x1xf32> to vector<2x64x1xf32>
    %172 = arith.mulf %168, %171 : vector<2x64x1xf32>
    %173 = vector.broadcast %172 : vector<2x64x1xf32> to vector<2x64x16xf32>
    %174 = arith.mulf %152, %173 : vector<2x64x16xf32>
    %175 = arith.mulf %157, %157 : vector<2x64x16xf32>
    %cst_72 = arith.constant dense<0.000000e+00> : vector<2x64xf32>
    %176 = vector.multi_reduction <add>, %175, %cst_72 [2] : vector<2x64x16xf32> to vector<2x64xf32>
    %177 = vector.shape_cast %176 : vector<2x64xf32> to vector<2x64x1xf32>
    %cst_73 = arith.constant 1.000000e-24 : f32
    %178 = vector.broadcast %cst_73 : f32 to vector<2x64x1xf32>
    %179 = arith.maximumf %177, %178 : vector<2x64x1xf32>
    %180 = math.rsqrt %179 : vector<2x64x1xf32>
    %181 = vector.broadcast %180 : vector<2x64x1xf32> to vector<2x64x16xf32>
    %182 = arith.mulf %157, %181 : vector<2x64x16xf32>
    "tpu.trace_start"() <{level = 10 : i32, message = "hqd,hkd->hqk"}> : () -> ()
    %cst_74 = arith.constant dense<0.000000e+00> : vector<2x64x64xf32>
    %183 = tpu.matmul %174, %182, %cst_74 {dimension_numbers = #tpu.dot_dimension_numbers<[2], [2], [1], [1], [0, 0, 0, 1, 1, 1], [0], [0]>} : vector<2x64x16xf32>, vector<2x64x16xf32>, vector<2x64x64xf32> -> vector<2x64x64xf32>
    "tpu.trace_stop"() : () -> ()
    %c1_75 = arith.constant 1 : index
    %c0_76 = arith.constant 0 : index
    %c0_77 = arith.constant 0 : index
    %c0_78 = arith.constant 0 : index
    %184 = vector.load %arg9[%c1_75, %c0_76, %c0_77, %c0_78] : memref<2x2x64x64xf32, #tpu.memory_space<vmem>>, vector<1x2x64x64xf32>
    %185 = vector.shape_cast %184 : vector<1x2x64x64xf32> to vector<2x64x64xf32>
    %186 = arith.addf %183, %185 : vector<2x64x64xf32>
    %cst_79 = arith.constant dense<0xFF800000> : vector<2x64xf32>
    %187 = vector.multi_reduction <maximumf>, %186, %cst_79 [2] : vector<2x64x64xf32> to vector<2x64xf32>
    %188 = vector.shape_cast %187 : vector<2x64xf32> to vector<2x64x1xf32>
    %189 = vector.broadcast %188 : vector<2x64x1xf32> to vector<2x64x64xf32>
    %190 = arith.subf %186, %189 : vector<2x64x64xf32>
    %191 = math.exp %190 : vector<2x64x64xf32>
    %cst_80 = arith.constant dense<0.000000e+00> : vector<2x64xf32>
    %192 = vector.multi_reduction <add>, %191, %cst_80 [2] : vector<2x64x64xf32> to vector<2x64xf32>
    %193 = vector.shape_cast %192 : vector<2x64xf32> to vector<2x64x1xf32>
    %194 = tpu.reciprocal %193 {approx = true} : vector<2x64x1xf32> -> vector<2x64x1xf32>
    %195 = vector.broadcast %194 : vector<2x64x1xf32> to vector<2x64x64xf32>
    %196 = arith.mulf %191, %195 : vector<2x64x64xf32>
    "tpu.trace_start"() <{level = 10 : i32, message = "hqk,hkd->hqd"}> : () -> ()
    %cst_81 = arith.constant dense<0.000000e+00> : vector<2x64x16xf32>
    %197 = tpu.matmul %196, %162, %cst_81 {dimension_numbers = #tpu.dot_dimension_numbers<[2], [1], [1], [2], [0, 0, 0, 1, 1, 2], [0], [0]>} : vector<2x64x64xf32>, vector<2x64x16xf32>, vector<2x64x16xf32> -> vector<2x64x16xf32>
    "tpu.trace_stop"() : () -> ()
    %c1_82 = arith.constant 1 : index
    %c0_83 = arith.constant 0 : index
    %c0_84 = arith.constant 0 : index
    %c0_85 = arith.constant 0 : index
    %198 = vector.load %arg4[%c1_82, %c0_83, %c0_84, %c0_85] : memref<2x2x16x32xf32, #tpu.memory_space<vmem>>, vector<1x2x16x32xf32>
    %199 = vector.shape_cast %198 : vector<1x2x16x32xf32> to vector<2x16x32xf32>
    "tpu.trace_start"() <{level = 10 : i32, message = "hqd,hdc->hqc"}> : () -> ()
    %cst_86 = arith.constant dense<0.000000e+00> : vector<2x64x32xf32>
    %200 = tpu.matmul %197, %199, %cst_86 {dimension_numbers = #tpu.dot_dimension_numbers<[2], [1], [1], [2], [0, 0, 0, 1, 1, 2], [0], [0]>} : vector<2x64x16xf32>, vector<2x16x32xf32>, vector<2x64x32xf32> -> vector<2x64x32xf32>
    "tpu.trace_stop"() : () -> ()
    %cst_87 = arith.constant dense<0.000000e+00> : vector<64x32xf32>
    %201 = vector.multi_reduction <add>, %200, %cst_87 [0] : vector<2x64x32xf32> to vector<64x32xf32>
    %202 = vector.extract_strided_slice %140 {offsets = [0, 0], sizes = [1, 32], strides = [1, 1]} : vector<6x32xf32> to vector<1x32xf32>
    %203 = vector.broadcast %202 : vector<1x32xf32> to vector<64x32xf32>
    %204 = arith.addf %201, %203 : vector<64x32xf32>
    %205 = vector.extract_strided_slice %140 {offsets = [2, 0], sizes = [1, 32], strides = [1, 1]} : vector<6x32xf32> to vector<1x32xf32>
    %206 = vector.extract_strided_slice %140 {offsets = [3, 0], sizes = [1, 32], strides = [1, 1]} : vector<6x32xf32> to vector<1x32xf32>
    %cst_88 = arith.constant dense<0.000000e+00> : vector<64xf32>
    %207 = vector.multi_reduction <add>, %204, %cst_88 [1] : vector<64x32xf32> to vector<64xf32>
    %208 = vector.shape_cast %207 : vector<64xf32> to vector<64x1xf32>
    %cst_89 = arith.constant 3.200000e+01 : f32
    %209 = vector.broadcast %cst_89 : f32 to vector<64x1xf32>
    %210 = arith.divf %208, %209 : vector<64x1xf32>
    %211 = vector.broadcast %210 : vector<64x1xf32> to vector<64x32xf32>
    %212 = arith.subf %204, %211 : vector<64x32xf32>
    %213 = arith.mulf %212, %212 : vector<64x32xf32>
    %cst_90 = arith.constant dense<0.000000e+00> : vector<64xf32>
    %214 = vector.multi_reduction <add>, %213, %cst_90 [1] : vector<64x32xf32> to vector<64xf32>
    %215 = vector.shape_cast %214 : vector<64xf32> to vector<64x1xf32>
    %cst_91 = arith.constant 3.200000e+01 : f32
    %216 = vector.broadcast %cst_91 : f32 to vector<64x1xf32>
    %217 = arith.divf %215, %216 : vector<64x1xf32>
    %218 = vector.broadcast %210 : vector<64x1xf32> to vector<64x32xf32>
    %219 = arith.subf %204, %218 : vector<64x32xf32>
    %cst_92 = arith.constant 9.99999974E-6 : f32
    %220 = vector.broadcast %cst_92 : f32 to vector<64x1xf32>
    %221 = arith.addf %217, %220 : vector<64x1xf32>
    %222 = math.rsqrt %221 : vector<64x1xf32>
    %223 = vector.broadcast %222 : vector<64x1xf32> to vector<64x32xf32>
    %224 = arith.mulf %219, %223 : vector<64x32xf32>
    %225 = vector.broadcast %205 : vector<1x32xf32> to vector<64x32xf32>
    %226 = arith.mulf %224, %225 : vector<64x32xf32>
    %227 = vector.broadcast %206 : vector<1x32xf32> to vector<64x32xf32>
    %228 = arith.addf %226, %227 : vector<64x32xf32>
    %229 = arith.addf %138, %228 : vector<64x32xf32>
    %c1_93 = arith.constant 1 : index
    %c0_94 = arith.constant 0 : index
    %c0_95 = arith.constant 0 : index
    %230 = vector.load %arg6[%c1_93, %c0_94, %c0_95] : memref<2x32x128xf32, #tpu.memory_space<vmem>>, vector<1x32x128xf32>
    %231 = vector.shape_cast %230 : vector<1x32x128xf32> to vector<32x128xf32>
    %cst_96 = arith.constant dense<0.000000e+00> : vector<64x128xf32>
    %232 = tpu.matmul %229, %231, %cst_96 {dimension_numbers = #tpu.dot_dimension_numbers<[1], [0], [0], [1], [0, 0, 1, 1], [], []>} : vector<64x32xf32>, vector<32x128xf32>, vector<64x128xf32> -> vector<64x128xf32>
    %c1_97 = arith.constant 1 : index
    %c0_98 = arith.constant 0 : index
    %c0_99 = arith.constant 0 : index
    %233 = vector.load %arg7[%c1_97, %c0_98, %c0_99] : memref<2x1x128xf32, #tpu.memory_space<vmem>>, vector<1x1x128xf32>
    %234 = vector.shape_cast %233 : vector<1x1x128xf32> to vector<1x128xf32>
    %235 = vector.broadcast %234 : vector<1x128xf32> to vector<64x128xf32>
    %236 = arith.addf %232, %235 : vector<64x128xf32>
    %cst_100 = arith.constant 5.000000e-01 : f32
    %237 = vector.broadcast %cst_100 : f32 to vector<64x128xf32>
    %238 = arith.mulf %237, %236 : vector<64x128xf32>
    %cst_101 = arith.constant 0.707106769 : f32
    %239 = vector.broadcast %cst_101 : f32 to vector<64x128xf32>
    %240 = arith.mulf %236, %239 : vector<64x128xf32>
    %241 = math.erf %240 : vector<64x128xf32>
    %cst_102 = arith.constant 1.000000e+00 : f32
    %242 = vector.broadcast %cst_102 : f32 to vector<64x128xf32>
    %243 = arith.addf %242, %241 : vector<64x128xf32>
    %244 = arith.mulf %238, %243 : vector<64x128xf32>
    %c1_103 = arith.constant 1 : index
    %c0_104 = arith.constant 0 : index
    %c0_105 = arith.constant 0 : index
    %245 = vector.load %arg8[%c1_103, %c0_104, %c0_105] : memref<2x128x32xf32, #tpu.memory_space<vmem>>, vector<1x128x32xf32>
    %246 = vector.shape_cast %245 : vector<1x128x32xf32> to vector<128x32xf32>
    %cst_106 = arith.constant dense<0.000000e+00> : vector<64x32xf32>
    %247 = tpu.matmul %244, %246, %cst_106 {dimension_numbers = #tpu.dot_dimension_numbers<[1], [0], [0], [1], [0, 0, 1, 1], [], []>} : vector<64x128xf32>, vector<128x32xf32>, vector<64x32xf32> -> vector<64x32xf32>
    %248 = vector.extract_strided_slice %140 {offsets = [1, 0], sizes = [1, 32], strides = [1, 1]} : vector<6x32xf32> to vector<1x32xf32>
    %249 = vector.broadcast %248 : vector<1x32xf32> to vector<64x32xf32>
    %250 = arith.addf %247, %249 : vector<64x32xf32>
    %251 = vector.extract_strided_slice %140 {offsets = [4, 0], sizes = [1, 32], strides = [1, 1]} : vector<6x32xf32> to vector<1x32xf32>
    %252 = vector.extract_strided_slice %140 {offsets = [5, 0], sizes = [1, 32], strides = [1, 1]} : vector<6x32xf32> to vector<1x32xf32>
    %cst_107 = arith.constant dense<0.000000e+00> : vector<64xf32>
    %253 = vector.multi_reduction <add>, %250, %cst_107 [1] : vector<64x32xf32> to vector<64xf32>
    %254 = vector.shape_cast %253 : vector<64xf32> to vector<64x1xf32>
    %cst_108 = arith.constant 3.200000e+01 : f32
    %255 = vector.broadcast %cst_108 : f32 to vector<64x1xf32>
    %256 = arith.divf %254, %255 : vector<64x1xf32>
    %257 = vector.broadcast %256 : vector<64x1xf32> to vector<64x32xf32>
    %258 = arith.subf %250, %257 : vector<64x32xf32>
    %259 = arith.mulf %258, %258 : vector<64x32xf32>
    %cst_109 = arith.constant dense<0.000000e+00> : vector<64xf32>
    %260 = vector.multi_reduction <add>, %259, %cst_109 [1] : vector<64x32xf32> to vector<64xf32>
    %261 = vector.shape_cast %260 : vector<64xf32> to vector<64x1xf32>
    %cst_110 = arith.constant 3.200000e+01 : f32
    %262 = vector.broadcast %cst_110 : f32 to vector<64x1xf32>
    %263 = arith.divf %261, %262 : vector<64x1xf32>
    %264 = vector.broadcast %256 : vector<64x1xf32> to vector<64x32xf32>
    %265 = arith.subf %250, %264 : vector<64x32xf32>
    %cst_111 = arith.constant 9.99999974E-6 : f32
    %266 = vector.broadcast %cst_111 : f32 to vector<64x1xf32>
    %267 = arith.addf %263, %266 : vector<64x1xf32>
    %268 = math.rsqrt %267 : vector<64x1xf32>
    %269 = vector.broadcast %268 : vector<64x1xf32> to vector<64x32xf32>
    %270 = arith.mulf %265, %269 : vector<64x32xf32>
    %271 = vector.broadcast %251 : vector<1x32xf32> to vector<64x32xf32>
    %272 = arith.mulf %270, %271 : vector<64x32xf32>
    %273 = vector.broadcast %252 : vector<1x32xf32> to vector<64x32xf32>
    %274 = arith.addf %272, %273 : vector<64x32xf32>
    %275 = arith.addf %229, %274 : vector<64x32xf32>
    %276 = vector.shape_cast %275 : vector<64x32xf32> to vector<1x64x32xf32>
    %c0_112 = arith.constant 0 : index
    %c0_113 = arith.constant 0 : index
    %c0_114 = arith.constant 0 : index
    %277 = vector.load %arg11[%c0_112, %c0_113, %c0_114] : memref<1x64x32xf32, #tpu.memory_space<vmem>>, vector<1x64x32xf32>
    tpu.vector_store %arg11[%c0_112, %c0_113, %c0_114], %276 {strides = array<i32>} : memref<1x64x32xf32, #tpu.memory_space<vmem>>, vector<1x64x32xf32>,
    return
  }
  func.func @transform_0(%arg0: i32) -> (i32, i32, i32) {
    %c0_i32 = arith.constant 0 : i32
    %c0_i32_0 = arith.constant 0 : i32
    %c0_i32_1 = arith.constant 0 : i32
    return %arg0, %c0_i32, %c0_i32_0 : i32, i32, i32
  }
  func.func @transform_1(%arg0: i32) -> (i32, i32, i32) {
    %c0_i32 = arith.constant 0 : i32
    %c0_i32_0 = arith.constant 0 : i32
    %c0_i32_1 = arith.constant 0 : i32
    %c0_i32_2 = arith.constant 0 : i32
    return %c0_i32, %c0_i32_0, %c0_i32_1 : i32, i32, i32
  }
  func.func @transform_2(%arg0: i32) -> (i32, i32, i32) {
    %c0_i32 = arith.constant 0 : i32
    %c0_i32_0 = arith.constant 0 : i32
    %c0_i32_1 = arith.constant 0 : i32
    %c0_i32_2 = arith.constant 0 : i32
    return %c0_i32, %c0_i32_0, %c0_i32_1 : i32, i32, i32
  }
  func.func @transform_3(%arg0: i32) -> (i32, i32, i32, i32) {
    %c0_i32 = arith.constant 0 : i32
    %c0_i32_0 = arith.constant 0 : i32
    %c0_i32_1 = arith.constant 0 : i32
    %c0_i32_2 = arith.constant 0 : i32
    %c0_i32_3 = arith.constant 0 : i32
    return %c0_i32, %c0_i32_0, %c0_i32_1, %c0_i32_2 : i32, i32, i32, i32
  }
  func.func @transform_4(%arg0: i32) -> (i32, i32, i32) {
    %c0_i32 = arith.constant 0 : i32
    %c0_i32_0 = arith.constant 0 : i32
    %c0_i32_1 = arith.constant 0 : i32
    %c0_i32_2 = arith.constant 0 : i32
    return %c0_i32, %c0_i32_0, %c0_i32_1 : i32, i32, i32
  }
  func.func @transform_5(%arg0: i32) -> (i32, i32, i32) {
    %c0_i32 = arith.constant 0 : i32
    %c0_i32_0 = arith.constant 0 : i32
    %c0_i32_1 = arith.constant 0 : i32
    %c0_i32_2 = arith.constant 0 : i32
    return %c0_i32, %c0_i32_0, %c0_i32_1 : i32, i32, i32
  }
  func.func @transform_6(%arg0: i32) -> (i32, i32, i32) {
    %c0_i32 = arith.constant 0 : i32
    %c0_i32_0 = arith.constant 0 : i32
    %c0_i32_1 = arith.constant 0 : i32
    %c0_i32_2 = arith.constant 0 : i32
    return %c0_i32, %c0_i32_0, %c0_i32_1 : i32, i32, i32
  }
  func.func @transform_7(%arg0: i32) -> (i32, i32, i32) {
    %c0_i32 = arith.constant 0 : i32
    %c0_i32_0 = arith.constant 0 : i32
    %c0_i32_1 = arith.constant 0 : i32
    %c0_i32_2 = arith.constant 0 : i32
    return %c0_i32, %c0_i32_0, %c0_i32_1 : i32, i32, i32
  }
  func.func @transform_8(%arg0: i32) -> (i32, i32, i32, i32) {
    %c0_i32 = arith.constant 0 : i32
    %c0_i32_0 = arith.constant 0 : i32
    %c0_i32_1 = arith.constant 0 : i32
    %c0_i32_2 = arith.constant 0 : i32
    %c0_i32_3 = arith.constant 0 : i32
    return %c0_i32, %c0_i32_0, %c0_i32_1, %c0_i32_2 : i32, i32, i32, i32
  }
  func.func @transform_9(%arg0: i32) -> (i32, i32, i32, i32) {
    %c0_i32 = arith.constant 0 : i32
    %c0_i32_0 = arith.constant 0 : i32
    %c0_i32_1 = arith.constant 0 : i32
    %c0_i32_2 = arith.constant 0 : i32
    %c0_i32_3 = arith.constant 0 : i32
    return %c0_i32, %c0_i32_0, %c0_i32_1, %c0_i32_2 : i32, i32, i32, i32
  }
  func.func @transform_10(%arg0: i32) -> (i32, i32, i32) {
    %c0_i32 = arith.constant 0 : i32
    %c0_i32_0 = arith.constant 0 : i32
    %c0_i32_1 = arith.constant 0 : i32
    return %arg0, %c0_i32, %c0_i32_0 : i32, i32, i32
  }
}

</mosaic_0001>

<llo_original>
// kernel: basic_layer_forward.1
$region0: #{basic_layer_forward.1}
  #allocation0 [shape = 'u32[]', space=smem, size = 0x4, offset = 0x4, fixed_abs, tag = 'smem constant byte address 0x4 - core index']
  #allocation1 [shape = 'u32[72,128]{1,0:T(1,128)}', space=vmem, size = 0x9000, scoped, tag = 'internal scratch']
  %s0 = inlined_call_operand.vmem [shape: f32[2,64,32], index: 0, kind: input, shape index: {}]
  %s1 = inlined_call_operand.vmem [shape: f32[2,32,96], index: 1, kind: input, shape index: {}]
  %s2 = inlined_call_operand.vmem [shape: f32[2,1,96], index: 2, kind: input, shape index: {}]
  %s3 = inlined_call_operand.vmem [shape: f32[2,2,16,32], index: 3, kind: input, shape index: {}]
  %s4 = inlined_call_operand.vmem [shape: f32[2,6,32], index: 4, kind: input, shape index: {}]
  %s5 = inlined_call_operand.vmem [shape: f32[2,32,128], index: 5, kind: input, shape index: {}]
  %s6 = inlined_call_operand.vmem [shape: f32[2,1,128], index: 6, kind: input, shape index: {}]
  %s7 = inlined_call_operand.vmem [shape: f32[2,128,32], index: 7, kind: input, shape index: {}]
  %s8 = inlined_call_operand.vmem [shape: f32[2,2,64,64], index: 8, kind: input, shape index: {}]
  %s9 = inlined_call_operand.vmem [shape: f32[2,2,1,1], index: 9, kind: input, shape index: {}]
  %s10 = inlined_call_operand.vmem [shape: f32[2,64,32], index: 10, kind: output, shape index: {}]
  %s11 = sld [smem:[#allocation0]]
  $region73: #{basic_layer_forward.1} parent=0
    _
  %s13 = ssub.s32 1, %s11
  %s14 = scalar_select 0, %s13, %s11
  loop: start=0, step=1, limit=4
  $region2: #{basic_layer_forward.1} parent=0 // loop_pre_header
    _
  $region3: #{basic_layer_forward.1} parent=0 // loop_header
    %s16 = sphi 0, %s20
    %p17 = scmp.ge.s32.totalorder %s16, 4
    %s26 = sphi 0, %s28
    %s29 = sphi 0, %s26
    %s30 = sphi 0, %s29
    %s46 = sphi 0, %s30
    %s50 = sphi 0, %s50
    %s52 = sphi 0, %s50
    %s53 = sphi 0, %s52
    %s67 = sphi 0, %s53
    %s71 = sphi 0, %s71
    %s73 = sphi 0, %s71
    %s74 = sphi 0, %s73
    %s88 = sphi 0, %s74
    %s92 = sphi 0, %s92
    %s94 = sphi 0, %s92
    %s95 = sphi 0, %s94
    %s109 = sphi 0, %s95
    %s113 = sphi 0, %s113
    %s115 = sphi 0, %s113
    %s116 = sphi 0, %s115
    %s130 = sphi 0, %s116
    %s134 = sphi 0, %s134
    %s136 = sphi 0, %s134
    %s137 = sphi 0, %s136
    %s151 = sphi 0, %s137
    %s155 = sphi 0, %s155
    %s157 = sphi 0, %s155
    %s158 = sphi 0, %s157
    %s172 = sphi 0, %s158
    %s176 = sphi 0, %s176
    %s178 = sphi 0, %s176
    %s179 = sphi 0, %s178
    %s193 = sphi 0, %s179
    %s197 = sphi 0, %s197
    %s199 = sphi 0, %s197
    %s200 = sphi 0, %s199
    %s214 = sphi 0, %s200
    %s218 = sphi 0, %s218
    %s220 = sphi 0, %s218
    %s221 = sphi 0, %s220
    %s235 = sphi 0, %s221
    %s241 = sphi 0, %s243
    %s244 = sphi 0, %s241
    %s245 = sphi 0, %s244
    %s261 = sphi 0, %s245
  $region4: #{basic_layer_forward.1} parent=0 // loop_header_branch
    %19 = sbr.rel (%p17) target = $region8
  $region5: #{basic_layer_forward.1} parent=0 // loop_body
    %s21 = ssub.s32 %s16, 1
    %s22 = ssub.s32 %s16, 2
    %s23 = sadd.s32 %s16, 1
    %s24 = ssub.s32 %s16, %s23
    %p25 = scmp.eq.s32.totalorder %s24, 0
    %s27 = sadd.s32 %s26, 1
    %s28 = scalar_select %p25, %s26, %s27
    %p31 = pneg %p25
    %p32 = scmp.eq.s32.totalorder %s16, 1
    %p33 = por %p31, %p32
    %p34 = scmp.ne.s32.totalorder %s26, %s29
    %p35 = scmp.eq.s32.totalorder %s16, 0
    %p36 = por %p34, %p35
    %p37 = scmp.ne.s32.totalorder %s26, %s29
    %p38 = scmp.eq.s32.totalorder %s21, 1
    %p39 = por %p37, %p38
    %p40 = scmp.ne.s32.totalorder %s29, %s30
    %p41 = scmp.eq.s32.totalorder %s21, 0
    %p42 = por %p40, %p41
    %p43 = scmp.ne.s32.totalorder %s29, %s30
    %p44 = scmp.eq.s32.totalorder %s22, 1
    %p45 = por %p43, %p44
    %p47 = scmp.ne.s32.totalorder %s30, %s46
    %p48 = scmp.eq.s32.totalorder %s22, 0
    %p49 = por %p47, %p48
    %s51 = sadd.s32 %s50, 1
    %p54 = scmp.eq.s32.totalorder %s16, 1
    %p55 = scmp.ne.s32.totalorder %s50, %s52
    %p56 = scmp.eq.s32.totalorder %s16, 0
    %p57 = por %p55, %p56
    %p58 = scmp.ne.s32.totalorder %s50, %s52
    %p59 = scmp.eq.s32.totalorder %s21, 1
    %p60 = por %p58, %p59
    %p61 = scmp.ne.s32.totalorder %s52, %s53
    %p62 = scmp.eq.s32.totalorder %s21, 0
    %p63 = por %p61, %p62
    %p64 = scmp.ne.s32.totalorder %s52, %s53
    %p65 = scmp.eq.s32.totalorder %s22, 1
    %p66 = por %p64, %p65
    %p68 = scmp.ne.s32.totalorder %s53, %s67
    %p69 = scmp.eq.s32.totalorder %s22, 0
    %p70 = por %p68, %p69
    %s72 = sadd.s32 %s71, 1
    %p75 = scmp.eq.s32.totalorder %s16, 1
    %p76 = scmp.ne.s32.totalorder %s71, %s73
    %p77 = scmp.eq.s32.totalorder %s16, 0
    %p78 = por %p76, %p77
    %p79 = scmp.ne.s32.totalorder %s71, %s73
    %p80 = scmp.eq.s32.totalorder %s21, 1
    %p81 = por %p79, %p80
    %p82 = scmp.ne.s32.totalorder %s73, %s74
    %p83 = scmp.eq.s32.totalorder %s21, 0
    %p84 = por %p82, %p83
    %p85 = scmp.ne.s32.totalorder %s73, %s74
    %p86 = scmp.eq.s32.totalorder %s22, 1
    %p87 = por %p85, %p86
    %p89 = scmp.ne.s32.totalorder %s74, %s88
    %p90 = scmp.eq.s32.totalorder %s22, 0
    %p91 = por %p89, %p90
    %s93 = sadd.s32 %s92, 1
    %p96 = scmp.eq.s32.totalorder %s16, 1
    %p97 = scmp.ne.s32.totalorder %s92, %s94
    %p98 = scmp.eq.s32.totalorder %s16, 0
    %p99 = por %p97, %p98
    %p100 = scmp.ne.s32.totalorder %s92, %s94
    %p101 = scmp.eq.s32.totalorder %s21, 1
    %p102 = por %p100, %p101
    %p103 = scmp.ne.s32.totalorder %s94, %s95
    %p104 = scmp.eq.s32.totalorder %s21, 0
    %p105 = por %p103, %p104
    %p106 = scmp.ne.s32.totalorder %s94, %s95
    %p107 = scmp.eq.s32.totalorder %s22, 1
    %p108 = por %p106, %p107
    %p110 = scmp.ne.s32.totalorder %s95, %s109
    %p111 = scmp.eq.s32.totalorder %s22, 0
    %p112 = por %p110, %p111
    %s114 = sadd.s32 %s113, 1
    %p117 = scmp.eq.s32.totalorder %s16, 1
    %p118 = scmp.ne.s32.totalorder %s113, %s115
    %p119 = scmp.eq.s32.totalorder %s16, 0
    %p120 = por %p118, %p119
    %p121 = scmp.ne.s32.totalorder %s113, %s115
    %p122 = scmp.eq.s32.totalorder %s21, 1
    %p123 = por %p121, %p122
    %p124 = scmp.ne.s32.totalorder %s115, %s116
    %p125 = scmp.eq.s32.totalorder %s21, 0
    %p126 = por %p124, %p125
    %p127 = scmp.ne.s32.totalorder %s115, %s116
    %p128 = scmp.eq.s32.totalorder %s22, 1
    %p129 = por %p127, %p128
    %p131 = scmp.ne.s32.totalorder %s116, %s130
    %p132 = scmp.eq.s32.totalorder %s22, 0
    %p133 = por %p131, %p132
    %s135 = sadd.s32 %s134, 1
    %p138 = scmp.eq.s32.totalorder %s16, 1
    %p139 = scmp.ne.s32.totalorder %s134, %s136
    %p140 = scmp.eq.s32.totalorder %s16, 0
    %p141 = por %p139, %p140
    %p142 = scmp.ne.s32.totalorder %s134, %s136
    %p143 = scmp.eq.s32.totalorder %s21, 1
    %p144 = por %p142, %p143
    %p145 = scmp.ne.s32.totalorder %s136, %s137
    %p146 = scmp.eq.s32.totalorder %s21, 0
    %p147 = por %p145, %p146
    %p148 = scmp.ne.s32.totalorder %s136, %s137
    %p149 = scmp.eq.s32.totalorder %s22, 1
    %p150 = por %p148, %p149
    %p152 = scmp.ne.s32.totalorder %s137, %s151
    %p153 = scmp.eq.s32.totalorder %s22, 0
    %p154 = por %p152, %p153
    %s156 = sadd.s32 %s155, 1
    %p159 = scmp.eq.s32.totalorder %s16, 1
    %p160 = scmp.ne.s32.totalorder %s155, %s157
    %p161 = scmp.eq.s32.totalorder %s16, 0
    %p162 = por %p160, %p161
    %p163 = scmp.ne.s32.totalorder %s155, %s157
    %p164 = scmp.eq.s32.totalorder %s21, 1
    %p165 = por %p163, %p164
    %p166 = scmp.ne.s32.totalorder %s157, %s158
    %p167 = scmp.eq.s32.totalorder %s21, 0
    %p168 = por %p166, %p167
    %p169 = scmp.ne.s32.totalorder %s157, %s158
    %p170 = scmp.eq.s32.totalorder %s22, 1
    %p171 = por %p169, %p170
    %p173 = scmp.ne.s32.totalorder %s158, %s172
    %p174 = scmp.eq.s32.totalorder %s22, 0
    %p175 = por %p173, %p174
    %s177 = sadd.s32 %s176, 1
    %p180 = scmp.eq.s32.totalorder %s16, 1
    %p181 = scmp.ne.s32.totalorder %s176, %s178
    %p182 = scmp.eq.s32.totalorder %s16, 0
    %p183 = por %p181, %p182
    %p184 = scmp.ne.s32.totalorder %s176, %s178
    %p185 = scmp.eq.s32.totalorder %s21, 1
    %p186 = por %p184, %p185
    %p187 = scmp.ne.s32.totalorder %s178, %s179
    %p188 = scmp.eq.s32.totalorder %s21, 0
    %p189 = por %p187, %p188
    %p190 = scmp.ne.s32.totalorder %s178, %s179
    %p191 = scmp.eq.s32.totalorder %s22, 1
    %p192 = por %p190, %p191
    %p194 = scmp.ne.s32.totalorder %s179, %s193
    %p195 = scmp.eq.s32.totalorder %s22, 0
    %p196 = por %p194, %p195
    %s198 = sadd.s32 %s197, 1
    %p201 = scmp.eq.s32.totalorder %s16, 1
    %p202 = scmp.ne.s32.totalorder %s197, %s199
    %p203 = scmp.eq.s32.totalorder %s16, 0
    %p204 = por %p202, %p203
    %p205 = scmp.ne.s32.totalorder %s197, %s199
    %p206 = scmp.eq.s32.totalorder %s21, 1
    %p207 = por %p205, %p206
    %p208 = scmp.ne.s32.totalorder %s199, %s200
    %p209 = scmp.eq.s32.totalorder %s21, 0
    %p210 = por %p208, %p209
    %p211 = scmp.ne.s32.totalorder %s199, %s200
    %p212 = scmp.eq.s32.totalorder %s22, 1
    %p213 = por %p211, %p212
    %p215 = scmp.ne.s32.totalorder %s200, %s214
    %p216 = scmp.eq.s32.totalorder %s22, 0
    %p217 = por %p215, %p216
    %s219 = sadd.s32 %s218, 1
    %p222 = scmp.eq.s32.totalorder %s16, 1
    %p223 = scmp.ne.s32.totalorder %s218, %s220
    %p224 = scmp.eq.s32.totalorder %s16, 0
    %p225 = por %p223, %p224
    %p226 = scmp.ne.s32.totalorder %s218, %s220
    %p227 = scmp.eq.s32.totalorder %s21, 1
    %p228 = por %p226, %p227
    %p229 = scmp.ne.s32.totalorder %s220, %s221
    %p230 = scmp.eq.s32.totalorder %s21, 0
    %p231 = por %p229, %p230
    %p232 = scmp.ne.s32.totalorder %s220, %s221
    %p233 = scmp.eq.s32.totalorder %s22, 1
    %p234 = por %p232, %p233
    %p236 = scmp.ne.s32.totalorder %s221, %s235
    %p237 = scmp.eq.s32.totalorder %s22, 0
    %p238 = por %p236, %p237
    %s239 = ssub.s32 %s16, %s23
    %p240 = scmp.eq.s32.totalorder %s239, 0
    %s242 = sadd.s32 %s241, 1
    %s243 = scalar_select %p240, %s241, %s242
    %p246 = pneg %p240
    %p247 = scmp.eq.s32.totalorder %s16, 1
    %p248 = por %p246, %p247
    %p249 = scmp.ne.s32.totalorder %s241, %s244
    %p250 = scmp.eq.s32.totalorder %s16, 0
    %p251 = por %p249, %p250
    %p252 = scmp.ne.s32.totalorder %s241, %s244
    %p253 = scmp.eq.s32.totalorder %s21, 1
    %p254 = por %p252, %p253
    %p255 = scmp.ne.s32.totalorder %s244, %s245
    %p256 = scmp.eq.s32.totalorder %s21, 0
    %p257 = por %p255, %p256
    %p258 = scmp.ne.s32.totalorder %s244, %s245
    %p259 = scmp.eq.s32.totalorder %s22, 1
    %p260 = por %p258, %p259
    %p262 = scmp.ne.s32.totalorder %s245, %s261
    %p263 = scmp.eq.s32.totalorder %s22, 0
    %p264 = por %p262, %p263
    %p265 = scmp.le.s32.totalorder 1, %s16
    %p266 = scmp.lt.s32.totalorder %s16, 3
    %p267 = pnand %p265, %p266
    %p268 = pneg %p267
    // Predicated region
    $region9: #{basic_layer_forward.1} parent=5 // pred_check
      _
    $region10: #{basic_layer_forward.1} parent=5 // pred_check_branch
      %270 = sbr.rel (%p267) target = $region12
    $region11: #{basic_layer_forward.1} parent=5 // pred_region
      %s271 = ssub.s32 %s16, 1
      // Predicated region
      $region13: #{basic_layer_forward.1} parent=11 // pred_check
        %p272 = pneg %p63
      $region14: #{basic_layer_forward.1} parent=11 // pred_check_branch
        %274 = sbr.rel (%p272) target = $region16
      $region15: #{basic_layer_forward.1} parent=11 // pred_region
        _
      $region16: #{basic_layer_forward.1} parent=11 // pred_fallthru
        _
      // Predicated region
      $region17: #{basic_layer_forward.1} parent=11 // pred_check
        %p275 = pneg %p84
      $region18: #{basic_layer_forward.1} parent=11 // pred_check_branch
        %277 = sbr.rel (%p275) target = $region20
      $region19: #{basic_layer_forward.1} parent=11 // pred_region
        _
      $region20: #{basic_layer_forward.1} parent=11 // pred_fallthru
        _
      // Predicated region
      $region21: #{basic_layer_forward.1} parent=11 // pred_check
        %p278 = pneg %p105
      $region22: #{basic_layer_forward.1} parent=11 // pred_check_branch
        %280 = sbr.rel (%p278) target = $region24
      $region23: #{basic_layer_forward.1} parent=11 // pred_region
        _
      $region24: #{basic_layer_forward.1} parent=11 // pred_fallthru
        _
      // Predicated region
      $region25: #{basic_layer_forward.1} parent=11 // pred_check
        %p281 = pneg %p126
      $region26: #{basic_layer_forward.1} parent=11 // pred_check_branch
        %283 = sbr.rel (%p281) target = $region28
      $region27: #{basic_layer_forward.1} parent=11 // pred_region
        _
      $region28: #{basic_layer_forward.1} parent=11 // pred_fallthru
        _
      // Predicated region
      $region29: #{basic_layer_forward.1} parent=11 // pred_check
        %p284 = pneg %p147
      $region30: #{basic_layer_forward.1} parent=11 // pred_check_branch
        %286 = sbr.rel (%p284) target = $region32
      $region31: #{basic_layer_forward.1} parent=11 // pred_region
        _
      $region32: #{basic_layer_forward.1} parent=11 // pred_fallthru
        _
      // Predicated region
      $region33: #{basic_layer_forward.1} parent=11 // pred_check
        %p287 = pneg %p168
      $region34: #{basic_layer_forward.1} parent=11 // pred_check_branch
        %289 = sbr.rel (%p287) target = $region36
      $region35: #{basic_layer_forward.1} parent=11 // pred_region
        _
      $region36: #{basic_layer_forward.1} parent=11 // pred_fallthru
        _
      // Predicated region
      $region37: #{basic_layer_forward.1} parent=11 // pred_check
        %p290 = pneg %p189
      $region38: #{basic_layer_forward.1} parent=11 // pred_check_branch
        %292 = sbr.rel (%p290) target = $region40
      $region39: #{basic_layer_forward.1} parent=11 // pred_region
        _
      $region40: #{basic_layer_forward.1} parent=11 // pred_fallthru
        _
      // Predicated region
      $region41: #{basic_layer_forward.1} parent=11 // pred_check
        %p293 = pneg %p210
      $region42: #{basic_layer_forward.1} parent=11 // pred_check_branch
        %295 = sbr.rel (%p293) target = $region44
      $region43: #{basic_layer_forward.1} parent=11 // pred_region
        _
      $region44: #{basic_layer_forward.1} parent=11 // pred_fallthru
        _
      // Predicated region
      $region45: #{basic_layer_forward.1} parent=11 // pred_check
        %p296 = pneg %p231
      $region46: #{basic_layer_forward.1} parent=11 // pred_check_branch
        %298 = sbr.rel (%p296) target = $region48
      $region47: #{basic_layer_forward.1} parent=11 // pred_region
        _
      $region48: #{basic_layer_forward.1} parent=11 // pred_fallthru
        _
    $region12: #{basic_layer_forward.1} parent=5 // pred_fallthru
      _
    %p299 = scmp.lt.s32.totalorder %s16, 2
    // Predicated region
    $region49: #{basic_layer_forward.1} parent=5 // pred_check
      %p300 = pneg %p299
    $region50: #{basic_layer_forward.1} parent=5 // pred_check_branch
      %302 = sbr.rel (%p300) target = $region52
    $region51: #{basic_layer_forward.1} parent=5 // pred_region
      // Predicated region
      $region53: #{basic_layer_forward.1} parent=51 // pred_check
        %p303 = pneg %p36
      $region54: #{basic_layer_forward.1} parent=51 // pred_check_branch
        %305 = sbr.rel (%p303) target = $region56
      $region55: #{basic_layer_forward.1} parent=51 // pred_region
        %p306 = scmp.lt.s32.totalorder %s16, 1
        %s307 = scalar_select %p306, %s16, 1
        %s308 = smul.addr %s307, 8
        %s309 = smul.addr %s308, 8
        %s310 = scalar_lea.vmem %s0, %s309
      $region56: #{basic_layer_forward.1} parent=51 // pred_fallthru
        _
    $region52: #{basic_layer_forward.1} parent=5 // pred_fallthru
      _
    %p311 = scmp.le.s32.totalorder 1, %s16
    %p312 = scmp.lt.s32.totalorder %s16, 3
    %p313 = pnand %p311, %p312
    %p314 = pneg %p313
    // Predicated region
    $region57: #{basic_layer_forward.1} parent=5 // pred_check
      _
    $region58: #{basic_layer_forward.1} parent=5 // pred_check_branch
      %316 = sbr.rel (%p313) target = $region60
    $region59: #{basic_layer_forward.1} parent=5 // pred_region
      %s317 = ssub.s32 %s16, 1
      %p318 = scmp.lt.s32.totalorder %s21, 1
      %s319 = scalar_select %p318, %s21, 1
      %s320 = smul.addr %s319, 8
      %s321 = smul.addr %s320, 8
      %s322 = scalar_lea.vmem %s0, %s321
      %p323 = pneg %p42
      %p324 = pneg %p39
      %p325 = pneg %p63
      %p326 = pneg %p60
      %p327 = pneg %p84
      %p328 = pneg %p81
      %p329 = pneg %p105
      %p330 = pneg %p102
      %p331 = pneg %p126
      %p332 = pneg %p123
      %p333 = pneg %p147
      %p334 = pneg %p144
      %p335 = pneg %p168
      %p336 = pneg %p165
      %p337 = pneg %p189
      %p338 = pneg %p186
      %p339 = pneg %p210
      %p340 = pneg %p207
      %p341 = pneg %p231
      %p342 = pneg %p228
      %p343 = pneg %p257
      %p344 = pneg %p254
      %p345 = scmp.lt.s32.totalorder %s21, 1
      %s346 = scalar_select %p345, %s21, 1
      %s347 = smul.addr %s346, 8
      %s348 = smul.addr %s347, 8
      %s349 = scalar_lea.vmem %s10, %s348
      %p350 = scmp.lt.s32.totalorder %s21, 1
      %s351 = scalar_select %p350, %s21, 1
      %s352 = smul.addr %s351, 8
      %s353 = smul.addr %s352, 8
      %s354 = scalar_lea.vmem %s0, %s353
      %p355 = scmp.lt.s32.totalorder %s21, 1
      %s356 = scalar_select %p355, %s21, 1
      %s357 = smul.addr %s356, 8
      %s358 = smul.addr %s357, 8
      %s359 = scalar_lea.vmem %s10, %s358
      %v360 = vld [vmem:[%s354] sm:$0xff]
      %v361 = vld [vmem:[%s354 + $0x8] sm:$0xff]
      %v362 = vld [vmem:[%s354 + $0x10] sm:$0xff]
      %v363 = vld [vmem:[%s354 + $0x18] sm:$0xff]
      %v364 = vld [vmem:[%s354 + $0x20] sm:$0xff]
      %v365 = vld [vmem:[%s354 + $0x28] sm:$0xff]
      %v366 = vld [vmem:[%s354 + $0x30] sm:$0xff]
      %v367 = vld [vmem:[%s354 + $0x38] sm:$0xff]
      %v368 = vld [vmem:[%s4] sm:$0x3f]
      %v369 = vld [vmem:[%s1] sm:$0xff]
      %v370 = vld [vmem:[%s1 + $0x8] sm:$0xff]
      %v371 = vld [vmem:[%s1 + $0x10] sm:$0xff]
      %v372 = vld [vmem:[%s1 + $0x18] sm:$0xff]
      %v373 = vld [vmem:[%s2] sm:$0x1]
      %v375 = vperm.slane %v373, 0
      %vm377 = vcmask 261120
      %v379 = vsel %vm377, %v360, 0
      %v382 = vsel %vm377, %v361, 0
      %v385 = vsel %vm377, %v362, 0
      %v388 = vsel %vm377, %v363, 0
      %v391 = vsel %vm377, %v364, 0
      %v394 = vsel %vm377, %v365, 0
      %v397 = vsel %vm377, %v366, 0
      %v400 = vsel %vm377, %v367, 0
      %402 = vmatpush.msra.mxu0 0.0
      %403 = vmatpush.msra.mxu0 0.0
      %404 = vmatpush.msra.mxu0 0.0
      %405 = vmatpush.msra.mxu0 0.0
      %406 = vmatpush.msra.mxu0 0.0
      %407 = vmatpush.msra.mxu0 0.0
      %408 = vmatpush.msra.mxu0 0.0
      %409 = vmatpush.msra.mxu0 0.0
      %410 = vmatpush.msra.mxu0 0.0
      %411 = vmatpush.msra.mxu0 0.0
      %412 = vmatpush.msra.mxu0 0.0
      %413 = vmatpush.msra.mxu0 0.0
      %414 = vmatpush.msra.mxu0 %v372
      %415 = vmatpush.msra.mxu0 %v371
      %416 = vmatpush.msra.mxu0 %v370
      %417 = vmatpush.msra.mxu0 %v369
      %418 = vmatmul.f32.gmra.mxu0 %v379
      %v419 = vpop.f32.mrf.mxu0
      %v420 = vadd.f32 %v375, %v419
      %421 = vmatmul.f32.gmra.mxu0 %v382
      %v422 = vpop.f32.mrf.mxu0
      %v423 = vadd.f32 %v375, %v422
      %424 = vmatmul.f32.gmra.mxu0 %v385
      %v425 = vpop.f32.mrf.mxu0
      %v426 = vadd.f32 %v375, %v425
      %427 = vmatmul.f32.gmra.mxu0 %v388
      %v428 = vpop.f32.mrf.mxu0
      %v429 = vadd.f32 %v375, %v428
      %430 = vmatmul.f32.gmra.mxu0 %v391
      %v431 = vpop.f32.mrf.mxu0
      %v432 = vadd.f32 %v375, %v431
      %433 = vmatmul.f32.gmra.mxu0 %v394
      %v434 = vpop.f32.mrf.mxu0
      %v435 = vadd.f32 %v375, %v434
      %436 = vmatmul.f32.gmra.mxu0 %v397
      %v437 = vpop.f32.mrf.mxu0
      %v438 = vadd.f32 %v375, %v437
      %439 = vmatmul.f32.gmra.mxu0 %v400
      %v440 = vpop.f32.mrf.mxu0
      %v441 = vadd.f32 %v375, %v440
      %442 = vdwg.mxu0
      %451 = vrot.lane.b32.xlu0 %v420, 112
      %v452 = vpop.permute.xlu0 %451
      %453 = vrot.lane.b32.xlu0 %v423, 112
      %v454 = vpop.permute.xlu0 %453
      %455 = vrot.lane.b32.xlu0 %v426, 112
      %v456 = vpop.permute.xlu0 %455
      %457 = vrot.lane.b32.xlu0 %v429, 112
      %v458 = vpop.permute.xlu0 %457
      %459 = vrot.lane.b32.xlu0 %v432, 112
      %v460 = vpop.permute.xlu0 %459
      %461 = vrot.lane.b32.xlu0 %v435, 112
      %v462 = vpop.permute.xlu0 %461
      %463 = vrot.lane.b32.xlu0 %v438, 112
      %v464 = vpop.permute.xlu0 %463
      %465 = vrot.lane.b32.xlu0 %v441, 112
      %v466 = vpop.permute.xlu0 %465
      %v475 = vmul.f32 %v420, %v420
      %v476 = vmul.f32 %v423, %v423
      %v477 = vmul.f32 %v426, %v426
      %v478 = vmul.f32 %v429, %v429
      %v479 = vmul.f32 %v432, %v432
      %v480 = vmul.f32 %v435, %v435
      %v481 = vmul.f32 %v438, %v438
      %v482 = vmul.f32 %v441, %v441
      %v483 = vmul.f32 %v452, %v452
      %v484 = vmul.f32 %v454, %v454
      %v485 = vmul.f32 %v456, %v456
      %v486 = vmul.f32 %v458, %v458
      %v487 = vmul.f32 %v460, %v460
      %v488 = vmul.f32 %v462, %v462
      %v489 = vmul.f32 %v464, %v464
      %v490 = vmul.f32 %v466, %v466
      %vm491 = vcmask 130048
      %v492 = vsel %vm491, %v475, 0.0
      %493 = vadd.xlane.f32.xlu0 %v492
      %v494 = vpop.xlane.xlu0 %493
      %v495 = vsel %vm491, %v476, 0.0
      %496 = vadd.xlane.f32.xlu0 %v495
      %v497 = vpop.xlane.xlu0 %496
      %v498 = vsel %vm491, %v477, 0.0
      %499 = vadd.xlane.f32.xlu0 %v498
      %v500 = vpop.xlane.xlu0 %499
      %v501 = vsel %vm491, %v478, 0.0
      %502 = vadd.xlane.f32.xlu0 %v501
      %v503 = vpop.xlane.xlu0 %502
      %v504 = vsel %vm491, %v479, 0.0
      %505 = vadd.xlane.f32.xlu0 %v504
      %v506 = vpop.xlane.xlu0 %505
      %v507 = vsel %vm491, %v480, 0.0
      %508 = vadd.xlane.f32.xlu0 %v507
      %v509 = vpop.xlane.xlu0 %508
      %v510 = vsel %vm491, %v481, 0.0
      %511 = vadd.xlane.f32.xlu0 %v510
      %v512 = vpop.xlane.xlu0 %511
      %v513 = vsel %vm491, %v482, 0.0
      %514 = vadd.xlane.f32.xlu0 %v513
      %v515 = vpop.xlane.xlu0 %514
      %v516 = vsel %vm491, %v483, 0.0
      %517 = vadd.xlane.f32.xlu0 %v516
      %v518 = vpop.xlane.xlu0 %517
      %v519 = vsel %vm491, %v484, 0.0
      %520 = vadd.xlane.f32.xlu0 %v519
      %v521 = vpop.xlane.xlu0 %520
      %v522 = vsel %vm491, %v485, 0.0
      %523 = vadd.xlane.f32.xlu0 %v522
      %v524 = vpop.xlane.xlu0 %523
      %v525 = vsel %vm491, %v486, 0.0
      %526 = vadd.xlane.f32.xlu0 %v525
      %v527 = vpop.xlane.xlu0 %526
      %v528 = vsel %vm491, %v487, 0.0
      %529 = vadd.xlane.f32.xlu0 %v528
      %v530 = vpop.xlane.xlu0 %529
      %v531 = vsel %vm491, %v488, 0.0
      %532 = vadd.xlane.f32.xlu0 %v531
      %v533 = vpop.xlane.xlu0 %532
      %v534 = vsel %vm491, %v489, 0.0
      %535 = vadd.xlane.f32.xlu0 %v534
      %v536 = vpop.xlane.xlu0 %535
      %v537 = vsel %vm491, %v490, 0.0
      %538 = vadd.xlane.f32.xlu0 %v537
      %v539 = vpop.xlane.xlu0 %538
      %v540 = vmax.f32 %v494, 1e-24
      %v541 = vmax.f32 %v497, 1e-24
      %v542 = vmax.f32 %v500, 1e-24
      %v543 = vmax.f32 %v503, 1e-24
      %v544 = vmax.f32 %v506, 1e-24
      %v545 = vmax.f32 %v509, 1e-24
      %v546 = vmax.f32 %v512, 1e-24
      %v547 = vmax.f32 %v515, 1e-24
      %v548 = vmax.f32 %v518, 1e-24
      %v549 = vmax.f32 %v521, 1e-24
      %v550 = vmax.f32 %v524, 1e-24
      %v551 = vmax.f32 %v527, 1e-24
      %v552 = vmax.f32 %v530, 1e-24
      %v553 = vmax.f32 %v533, 1e-24
      %v554 = vmax.f32 %v536, 1e-24
      %v555 = vmax.f32 %v539, 1e-24
      %v556 = vrsqrt.pop %v540
      %v557 = vmul.f32 %v556, %v540
      %v558 = vmul.f32 %v557, %v556
      %v559 = vmul.f32 0.5, %v558
      %v560 = vsub.f32 1.5, %v559
      %v561 = vmul.f32 %v556, %v560
      %vm562 = vweird.f32 %v540
      %vm563 = vweird.f32 %v556
      %vm564 = vmor %vm562, %vm563
      %v565 = vsel %vm564, %v556, %v561
      %v566 = vrsqrt.pop %v541
      %v567 = vmul.f32 %v566, %v541
      %v568 = vmul.f32 %v567, %v566
      %v569 = vmul.f32 0.5, %v568
      %v570 = vsub.f32 1.5, %v569
      %v571 = vmul.f32 %v566, %v570
      %vm572 = vweird.f32 %v541
      %vm573 = vweird.f32 %v566
      %vm574 = vmor %vm572, %vm573
      %v575 = vsel %vm574, %v566, %v571
      %v576 = vrsqrt.pop %v542
      %v577 = vmul.f32 %v576, %v542
      %v578 = vmul.f32 %v577, %v576
      %v579 = vmul.f32 0.5, %v578
      %v580 = vsub.f32 1.5, %v579
      %v581 = vmul.f32 %v576, %v580
      %vm582 = vweird.f32 %v542
      %vm583 = vweird.f32 %v576
      %vm584 = vmor %vm582, %vm583
      %v585 = vsel %vm584, %v576, %v581
      %v586 = vrsqrt.pop %v543
      %v587 = vmul.f32 %v586, %v543
      %v588 = vmul.f32 %v587, %v586
      %v589 = vmul.f32 0.5, %v588
      %v590 = vsub.f32 1.5, %v589
      %v591 = vmul.f32 %v586, %v590
      %vm592 = vweird.f32 %v543
      %vm593 = vweird.f32 %v586
      %vm594 = vmor %vm592, %vm593
      %v595 = vsel %vm594, %v586, %v591
      %v596 = vrsqrt.pop %v544
      %v597 = vmul.f32 %v596, %v544
      %v598 = vmul.f32 %v597, %v596
      %v599 = vmul.f32 0.5, %v598
      %v600 = vsub.f32 1.5, %v599
      %v601 = vmul.f32 %v596, %v600
      %vm602 = vweird.f32 %v544
      %vm603 = vweird.f32 %v596
      %vm604 = vmor %vm602, %vm603
      %v605 = vsel %vm604, %v596, %v601
      %v606 = vrsqrt.pop %v545
      %v607 = vmul.f32 %v606, %v545
      %v608 = vmul.f32 %v607, %v606
      %v609 = vmul.f32 0.5, %v608
      %v610 = vsub.f32 1.5, %v609
      %v611 = vmul.f32 %v606, %v610
      %vm612 = vweird.f32 %v545
      %vm613 = vweird.f32 %v606
      %vm614 = vmor %vm612, %vm613
      %v615 = vsel %vm614, %v606, %v611
      %v616 = vrsqrt.pop %v546
      %v617 = vmul.f32 %v616, %v546
      %v618 = vmul.f32 %v617, %v616
      %v619 = vmul.f32 0.5, %v618
      %v620 = vsub.f32 1.5, %v619
      %v621 = vmul.f32 %v616, %v620
      %vm622 = vweird.f32 %v546
      %vm623 = vweird.f32 %v616
      %vm624 = vmor %vm622, %vm623
      %v625 = vsel %vm624, %v616, %v621
      %v626 = vrsqrt.pop %v547
      %v627 = vmul.f32 %v626, %v547
      %v628 = vmul.f32 %v627, %v626
      %v629 = vmul.f32 0.5, %v628
      %v630 = vsub.f32 1.5, %v629
      %v631 = vmul.f32 %v626, %v630
      %vm632 = vweird.f32 %v547
      %vm633 = vweird.f32 %v626
      %vm634 = vmor %vm632, %vm633
      %v635 = vsel %vm634, %v626, %v631
      %v636 = vrsqrt.pop %v548
      %v637 = vmul.f32 %v636, %v548
      %v638 = vmul.f32 %v637, %v636
      %v639 = vmul.f32 0.5, %v638
      %v640 = vsub.f32 1.5, %v639
      %v641 = vmul.f32 %v636, %v640
      %vm642 = vweird.f32 %v548
      %vm643 = vweird.f32 %v636
      %vm644 = vmor %vm642, %vm643
      %v645 = vsel %vm644, %v636, %v641
      %v646 = vrsqrt.pop %v549
      %v647 = vmul.f32 %v646, %v549
      %v648 = vmul.f32 %v647, %v646
      %v649 = vmul.f32 0.5, %v648
      %v650 = vsub.f32 1.5, %v649
      %v651 = vmul.f32 %v646, %v650
      %vm652 = vweird.f32 %v549
      %vm653 = vweird.f32 %v646
      %vm654 = vmor %vm652, %vm653
      %v655 = vsel %vm654, %v646, %v651
      %v656 = vrsqrt.pop %v550
      %v657 = vmul.f32 %v656, %v550
      %v658 = vmul.f32 %v657, %v656
      %v659 = vmul.f32 0.5, %v658
      %v660 = vsub.f32 1.5, %v659
      %v661 = vmul.f32 %v656, %v660
      %vm662 = vweird.f32 %v550
      %vm663 = vweird.f32 %v656
      %vm664 = vmor %vm662, %vm663
      %v665 = vsel %vm664, %v656, %v661
      %v666 = vrsqrt.pop %v551
      %v667 = vmul.f32 %v666, %v551
      %v668 = vmul.f32 %v667, %v666
      %v669 = vmul.f32 0.5, %v668
      %v670 = vsub.f32 1.5, %v669
      %v671 = vmul.f32 %v666, %v670
      %vm672 = vweird.f32 %v551
      %vm673 = vweird.f32 %v666
      %vm674 = vmor %vm672, %vm673
      %v675 = vsel %vm674, %v666, %v671
      %v676 = vrsqrt.pop %v552
      %v677 = vmul.f32 %v676, %v552
      %v678 = vmul.f32 %v677, %v676
      %v679 = vmul.f32 0.5, %v678
      %v680 = vsub.f32 1.5, %v679
      %v681 = vmul.f32 %v676, %v680
      %vm682 = vweird.f32 %v552
      %vm683 = vweird.f32 %v676
      %vm684 = vmor %vm682, %vm683
      %v685 = vsel %vm684, %v676, %v681
      %v686 = vrsqrt.pop %v553
      %v687 = vmul.f32 %v686, %v553
      %v688 = vmul.f32 %v687, %v686
      %v689 = vmul.f32 0.5, %v688
      %v690 = vsub.f32 1.5, %v689
      %v691 = vmul.f32 %v686, %v690
      %vm692 = vweird.f32 %v553
      %vm693 = vweird.f32 %v686
      %vm694 = vmor %vm692, %vm693
      %v695 = vsel %vm694, %v686, %v691
      %v696 = vrsqrt.pop %v554
      %v697 = vmul.f32 %v696, %v554
      %v698 = vmul.f32 %v697, %v696
      %v699 = vmul.f32 0.5, %v698
      %v700 = vsub.f32 1.5, %v699
      %v701 = vmul.f32 %v696, %v700
      %vm702 = vweird.f32 %v554
      %vm703 = vweird.f32 %v696
      %vm704 = vmor %vm702, %vm703
      %v705 = vsel %vm704, %v696, %v701
      %v706 = vrsqrt.pop %v555
      %v707 = vmul.f32 %v706, %v555
      %v708 = vmul.f32 %v707, %v706
      %v709 = vmul.f32 0.5, %v708
      %v710 = vsub.f32 1.5, %v709
      %v711 = vmul.f32 %v706, %v710
      %vm712 = vweird.f32 %v555
      %vm713 = vweird.f32 %v706
      %vm714 = vmor %vm712, %vm713
      %v715 = vsel %vm714, %v706, %v711
      %v716 = vld [vmem:[%s9] sm:$0x1]
      %v717 = vld [vmem:[%s9 + $0x1] sm:$0x1]
      %v720 = vperm.slane %v716, 0
      %v721 = vperm.slane %v717, 0
      %v724 = vmul.f32 %v565, %v720
      %v725 = vmul.f32 %v575, %v720
      %v726 = vmul.f32 %v585, %v720
      %v727 = vmul.f32 %v595, %v720
      %v728 = vmul.f32 %v605, %v720
      %v729 = vmul.f32 %v615, %v720
      %v730 = vmul.f32 %v625, %v720
      %v731 = vmul.f32 %v635, %v720
      %v732 = vmul.f32 %v645, %v721
      %v733 = vmul.f32 %v655, %v721
      %v734 = vmul.f32 %v665, %v721
      %v735 = vmul.f32 %v675, %v721
      %v736 = vmul.f32 %v685, %v721
      %v737 = vmul.f32 %v695, %v721
      %v738 = vmul.f32 %v705, %v721
      %v739 = vmul.f32 %v715, %v721
      %741 = vset.pattern.permute.xlu0 0
      %742 = vperm.xlu0 %741, %v724
      %v743 = vpop.permute.xlu0 %742
      %746 = vset.pattern.permute.xlu0 0
      %747 = vperm.xlu0 %746, %v725
      %v748 = vpop.permute.xlu0 %747
      %751 = vset.pattern.permute.xlu0 0
      %752 = vperm.xlu0 %751, %v726
      %v753 = vpop.permute.xlu0 %752
      %756 = vset.pattern.permute.xlu0 0
      %757 = vperm.xlu0 %756, %v727
      %v758 = vpop.permute.xlu0 %757
      %761 = vset.pattern.permute.xlu0 0
      %762 = vperm.xlu0 %761, %v728
      %v763 = vpop.permute.xlu0 %762
      %766 = vset.pattern.permute.xlu0 0
      %767 = vperm.xlu0 %766, %v729
      %v768 = vpop.permute.xlu0 %767
      %771 = vset.pattern.permute.xlu0 0
      %772 = vperm.xlu0 %771, %v730
      %v773 = vpop.permute.xlu0 %772
      %776 = vset.pattern.permute.xlu0 0
      %777 = vperm.xlu0 %776, %v731
      %v778 = vpop.permute.xlu0 %777
      %781 = vset.pattern.permute.xlu0 0
      %782 = vperm.xlu0 %781, %v732
      %v783 = vpop.permute.xlu0 %782
      %786 = vset.pattern.permute.xlu0 0
      %787 = vperm.xlu0 %786, %v733
      %v788 = vpop.permute.xlu0 %787
      %791 = vset.pattern.permute.xlu0 0
      %792 = vperm.xlu0 %791, %v734
      %v793 = vpop.permute.xlu0 %792
      %796 = vset.pattern.permute.xlu0 0
      %797 = vperm.xlu0 %796, %v735
      %v798 = vpop.permute.xlu0 %797
      %801 = vset.pattern.permute.xlu0 0
      %802 = vperm.xlu0 %801, %v736
      %v803 = vpop.permute.xlu0 %802
      %806 = vset.pattern.permute.xlu0 0
      %807 = vperm.xlu0 %806, %v737
      %v808 = vpop.permute.xlu0 %807
      %811 = vset.pattern.permute.xlu0 0
      %812 = vperm.xlu0 %811, %v738
      %v813 = vpop.permute.xlu0 %812
      %816 = vset.pattern.permute.xlu0 0
      %817 = vperm.xlu0 %816, %v739
      %v818 = vpop.permute.xlu0 %817
      %v820 = vmul.f32 %v420, %v743
      %v821 = vmul.f32 %v423, %v748
      %v822 = vmul.f32 %v426, %v753
      %v823 = vmul.f32 %v429, %v758
      %v824 = vmul.f32 %v432, %v763
      %v825 = vmul.f32 %v435, %v768
      %v826 = vmul.f32 %v438, %v773
      %v827 = vmul.f32 %v441, %v778
      %v828 = vmul.f32 %v452, %v783
      %v829 = vmul.f32 %v454, %v788
      %v830 = vmul.f32 %v456, %v793
      %v831 = vmul.f32 %v458, %v798
      %v832 = vmul.f32 %v460, %v803
      %v833 = vmul.f32 %v462, %v808
      %v834 = vmul.f32 %v464, %v813
      %v835 = vmul.f32 %v466, %v818
      %852 = vrot.lane.b32.xlu0 %v475, 96
      %v853 = vpop.permute.xlu0 %852
      %854 = vrot.lane.b32.xlu0 %v476, 96
      %v855 = vpop.permute.xlu0 %854
      %856 = vrot.lane.b32.xlu0 %v477, 96
      %v857 = vpop.permute.xlu0 %856
      %858 = vrot.lane.b32.xlu0 %v478, 96
      %v859 = vpop.permute.xlu0 %858
      %860 = vrot.lane.b32.xlu0 %v479, 96
      %v861 = vpop.permute.xlu0 %860
      %862 = vrot.lane.b32.xlu0 %v480, 96
      %v863 = vpop.permute.xlu0 %862
      %864 = vrot.lane.b32.xlu0 %v481, 96
      %v865 = vpop.permute.xlu0 %864
      %866 = vrot.lane.b32.xlu0 %v482, 96
      %v867 = vpop.permute.xlu0 %866
      %868 = vrot.lane.b32.xlu0 %v483, 96
      %v869 = vpop.permute.xlu0 %868
      %870 = vrot.lane.b32.xlu0 %v484, 96
      %v871 = vpop.permute.xlu0 %870
      %872 = vrot.lane.b32.xlu0 %v485, 96
      %v873 = vpop.permute.xlu0 %872
      %874 = vrot.lane.b32.xlu0 %v486, 96
      %v875 = vpop.permute.xlu0 %874
      %876 = vrot.lane.b32.xlu0 %v487, 96
      %v877 = vpop.permute.xlu0 %876
      %878 = vrot.lane.b32.xlu0 %v488, 96
      %v879 = vpop.permute.xlu0 %878
      %880 = vrot.lane.b32.xlu0 %v489, 96
      %v881 = vpop.permute.xlu0 %880
      %882 = vrot.lane.b32.xlu0 %v490, 96
      %v883 = vpop.permute.xlu0 %882
      %v900 = vsel %vm491, %v853, 0.0
      %901 = vadd.xlane.f32.xlu0 %v900
      %v902 = vpop.xlane.xlu0 %901
      %v903 = vsel %vm491, %v855, 0.0
      %904 = vadd.xlane.f32.xlu0 %v903
      %v905 = vpop.xlane.xlu0 %904
      %v906 = vsel %vm491, %v857, 0.0
      %907 = vadd.xlane.f32.xlu0 %v906
      %v908 = vpop.xlane.xlu0 %907
      %v909 = vsel %vm491, %v859, 0.0
      %910 = vadd.xlane.f32.xlu0 %v909
      %v911 = vpop.xlane.xlu0 %910
      %v912 = vsel %vm491, %v861, 0.0
      %913 = vadd.xlane.f32.xlu0 %v912
      %v914 = vpop.xlane.xlu0 %913
      %v915 = vsel %vm491, %v863, 0.0
      %916 = vadd.xlane.f32.xlu0 %v915
      %v917 = vpop.xlane.xlu0 %916
      %v918 = vsel %vm491, %v865, 0.0
      %919 = vadd.xlane.f32.xlu0 %v918
      %v920 = vpop.xlane.xlu0 %919
      %v921 = vsel %vm491, %v867, 0.0
      %922 = vadd.xlane.f32.xlu0 %v921
      %v923 = vpop.xlane.xlu0 %922
      %v924 = vsel %vm491, %v869, 0.0
      %925 = vadd.xlane.f32.xlu0 %v924
      %v926 = vpop.xlane.xlu0 %925
      %v927 = vsel %vm491, %v871, 0.0
      %928 = vadd.xlane.f32.xlu0 %v927
      %v929 = vpop.xlane.xlu0 %928
      %v930 = vsel %vm491, %v873, 0.0
      %931 = vadd.xlane.f32.xlu0 %v930
      %v932 = vpop.xlane.xlu0 %931
      %v933 = vsel %vm491, %v875, 0.0
      %934 = vadd.xlane.f32.xlu0 %v933
      %v935 = vpop.xlane.xlu0 %934
      %v936 = vsel %vm491, %v877, 0.0
      %937 = vadd.xlane.f32.xlu0 %v936
      %v938 = vpop.xlane.xlu0 %937
      %v939 = vsel %vm491, %v879, 0.0
      %940 = vadd.xlane.f32.xlu0 %v939
      %v941 = vpop.xlane.xlu0 %940
      %v942 = vsel %vm491, %v881, 0.0
      %943 = vadd.xlane.f32.xlu0 %v942
      %v944 = vpop.xlane.xlu0 %943
      %v945 = vsel %vm491, %v883, 0.0
      %946 = vadd.xlane.f32.xlu0 %v945
      %v947 = vpop.xlane.xlu0 %946
      %v948 = vmax.f32 %v902, 1e-24
      %v949 = vmax.f32 %v905, 1e-24
      %v950 = vmax.f32 %v908, 1e-24
      %v951 = vmax.f32 %v911, 1e-24
      %v952 = vmax.f32 %v914, 1e-24
      %v953 = vmax.f32 %v917, 1e-24
      %v954 = vmax.f32 %v920, 1e-24
      %v955 = vmax.f32 %v923, 1e-24
      %v956 = vmax.f32 %v926, 1e-24
      %v957 = vmax.f32 %v929, 1e-24
      %v958 = vmax.f32 %v932, 1e-24
      %v959 = vmax.f32 %v935, 1e-24
      %v960 = vmax.f32 %v938, 1e-24
      %v961 = vmax.f32 %v941, 1e-24
      %v962 = vmax.f32 %v944, 1e-24
      %v963 = vmax.f32 %v947, 1e-24
      %v964 = vrsqrt.pop %v948
      %v965 = vmul.f32 %v964, %v948
      %v966 = vmul.f32 %v965, %v964
      %v967 = vmul.f32 0.5, %v966
      %v968 = vsub.f32 1.5, %v967
      %v969 = vmul.f32 %v964, %v968
      %vm970 = vweird.f32 %v948
      %vm971 = vweird.f32 %v964
      %vm972 = vmor %vm970, %vm971
      %v973 = vsel %vm972, %v964, %v969
      %v974 = vrsqrt.pop %v949
      %v975 = vmul.f32 %v974, %v949
      %v976 = vmul.f32 %v975, %v974
      %v977 = vmul.f32 0.5, %v976
      %v978 = vsub.f32 1.5, %v977
      %v979 = vmul.f32 %v974, %v978
      %vm980 = vweird.f32 %v949
      %vm981 = vweird.f32 %v974
      %vm982 = vmor %vm980, %vm981
      %v983 = vsel %vm982, %v974, %v979
      %v984 = vrsqrt.pop %v950
      %v985 = vmul.f32 %v984, %v950
      %v986 = vmul.f32 %v985, %v984
      %v987 = vmul.f32 0.5, %v986
      %v988 = vsub.f32 1.5, %v987
      %v989 = vmul.f32 %v984, %v988
      %vm990 = vweird.f32 %v950
      %vm991 = vweird.f32 %v984
      %vm992 = vmor %vm990, %vm991
      %v993 = vsel %vm992, %v984, %v989
      %v994 = vrsqrt.pop %v951
      %v995 = vmul.f32 %v994, %v951
      %v996 = vmul.f32 %v995, %v994
      %v997 = vmul.f32 0.5, %v996
      %v998 = vsub.f32 1.5, %v997
      %v999 = vmul.f32 %v994, %v998
      %vm1000 = vweird.f32 %v951
      %vm1001 = vweird.f32 %v994
      %vm1002 = vmor %vm1000, %vm1001
      %v1003 = vsel %vm1002, %v994, %v999
      %v1004 = vrsqrt.pop %v952
      %v1005 = vmul.f32 %v1004, %v952
      %v1006 = vmul.f32 %v1005, %v1004
      %v1007 = vmul.f32 0.5, %v1006
      %v1008 = vsub.f32 1.5, %v1007
      %v1009 = vmul.f32 %v1004, %v1008
      %vm1010 = vweird.f32 %v952
      %vm1011 = vweird.f32 %v1004
      %vm1012 = vmor %vm1010, %vm1011
      %v1013 = vsel %vm1012, %v1004, %v1009
      %v1014 = vrsqrt.pop %v953
      %v1015 = vmul.f32 %v1014, %v953
      %v1016 = vmul.f32 %v1015, %v1014
      %v1017 = vmul.f32 0.5, %v1016
      %v1018 = vsub.f32 1.5, %v1017
      %v1019 = vmul.f32 %v1014, %v1018
      %vm1020 = vweird.f32 %v953
      %vm1021 = vweird.f32 %v1014
      %vm1022 = vmor %vm1020, %vm1021
      %v1023 = vsel %vm1022, %v1014, %v1019
      %v1024 = vrsqrt.pop %v954
      %v1025 = vmul.f32 %v1024, %v954
      %v1026 = vmul.f32 %v1025, %v1024
      %v1027 = vmul.f32 0.5, %v1026
      %v1028 = vsub.f32 1.5, %v1027
      %v1029 = vmul.f32 %v1024, %v1028
      %vm1030 = vweird.f32 %v954
      %vm1031 = vweird.f32 %v1024
      %vm1032 = vmor %vm1030, %vm1031
      %v1033 = vsel %vm1032, %v1024, %v1029
      %v1034 = vrsqrt.pop %v955
      %v1035 = vmul.f32 %v1034, %v955
      %v1036 = vmul.f32 %v1035, %v1034
      %v1037 = vmul.f32 0.5, %v1036
      %v1038 = vsub.f32 1.5, %v1037
      %v1039 = vmul.f32 %v1034, %v1038
      %vm1040 = vweird.f32 %v955
      %vm1041 = vweird.f32 %v1034
      %vm1042 = vmor %vm1040, %vm1041
      %v1043 = vsel %vm1042, %v1034, %v1039
      %v1044 = vrsqrt.pop %v956
      %v1045 = vmul.f32 %v1044, %v956
      %v1046 = vmul.f32 %v1045, %v1044
      %v1047 = vmul.f32 0.5, %v1046
      %v1048 = vsub.f32 1.5, %v1047
      %v1049 = vmul.f32 %v1044, %v1048
      %vm1050 = vweird.f32 %v956
      %vm1051 = vweird.f32 %v1044
      %vm1052 = vmor %vm1050, %vm1051
      %v1053 = vsel %vm1052, %v1044, %v1049
      %v1054 = vrsqrt.pop %v957
      %v1055 = vmul.f32 %v1054, %v957
      %v1056 = vmul.f32 %v1055, %v1054
      %v1057 = vmul.f32 0.5, %v1056
      %v1058 = vsub.f32 1.5, %v1057
      %v1059 = vmul.f32 %v1054, %v1058
      %vm1060 = vweird.f32 %v957
      %vm1061 = vweird.f32 %v1054
      %vm1062 = vmor %vm1060, %vm1061
      %v1063 = vsel %vm1062, %v1054, %v1059
      %v1064 = vrsqrt.pop %v958
      %v1065 = vmul.f32 %v1064, %v958
      %v1066 = vmul.f32 %v1065, %v1064
      %v1067 = vmul.f32 0.5, %v1066
      %v1068 = vsub.f32 1.5, %v1067
      %v1069 = vmul.f32 %v1064, %v1068
      %vm1070 = vweird.f32 %v958
      %vm1071 = vweird.f32 %v1064
      %vm1072 = vmor %vm1070, %vm1071
      %v1073 = vsel %vm1072, %v1064, %v1069
      %v1074 = vrsqrt.pop %v959
      %v1075 = vmul.f32 %v1074, %v959
      %v1076 = vmul.f32 %v1075, %v1074
      %v1077 = vmul.f32 0.5, %v1076
      %v1078 = vsub.f32 1.5, %v1077
      %v1079 = vmul.f32 %v1074, %v1078
      %vm1080 = vweird.f32 %v959
      %vm1081 = vweird.f32 %v1074
      %vm1082 = vmor %vm1080, %vm1081
      %v1083 = vsel %vm1082, %v1074, %v1079
      %v1084 = vrsqrt.pop %v960
      %v1085 = vmul.f32 %v1084, %v960
      %v1086 = vmul.f32 %v1085, %v1084
      %v1087 = vmul.f32 0.5, %v1086
      %v1088 = vsub.f32 1.5, %v1087
      %v1089 = vmul.f32 %v1084, %v1088
      %vm1090 = vweird.f32 %v960
      %vm1091 = vweird.f32 %v1084
      %vm1092 = vmor %vm1090, %vm1091
      %v1093 = vsel %vm1092, %v1084, %v1089
      %v1094 = vrsqrt.pop %v961
      %v1095 = vmul.f32 %v1094, %v961
      %v1096 = vmul.f32 %v1095, %v1094
      %v1097 = vmul.f32 0.5, %v1096
      %v1098 = vsub.f32 1.5, %v1097
      %v1099 = vmul.f32 %v1094, %v1098
      %vm1100 = vweird.f32 %v961
      %vm1101 = vweird.f32 %v1094
      %vm1102 = vmor %vm1100, %vm1101
      %v1103 = vsel %vm1102, %v1094, %v1099
      %v1104 = vrsqrt.pop %v962
      %v1105 = vmul.f32 %v1104, %v962
      %v1106 = vmul.f32 %v1105, %v1104
      %v1107 = vmul.f32 0.5, %v1106
      %v1108 = vsub.f32 1.5, %v1107
      %v1109 = vmul.f32 %v1104, %v1108
      %vm1110 = vweird.f32 %v962
      %vm1111 = vweird.f32 %v1104
      %vm1112 = vmor %vm1110, %vm1111
      %v1113 = vsel %vm1112, %v1104, %v1109
      %v1114 = vrsqrt.pop %v963
      %v1115 = vmul.f32 %v1114, %v963
      %v1116 = vmul.f32 %v1115, %v1114
      %v1117 = vmul.f32 0.5, %v1116
      %v1118 = vsub.f32 1.5, %v1117
      %v1119 = vmul.f32 %v1114, %v1118
      %vm1120 = vweird.f32 %v963
      %vm1121 = vweird.f32 %v1114
      %vm1122 = vmor %vm1120, %vm1121
      %v1123 = vsel %vm1122, %v1114, %v1119
      %v1124 = vmul.f32 %v420, %v973
      %v1125 = vmul.f32 %v423, %v983
      %v1126 = vmul.f32 %v426, %v993
      %v1127 = vmul.f32 %v429, %v1003
      %v1128 = vmul.f32 %v432, %v1013
      %v1129 = vmul.f32 %v435, %v1023
      %v1130 = vmul.f32 %v438, %v1033
      %v1131 = vmul.f32 %v441, %v1043
      %v1132 = vmul.f32 %v452, %v1053
      %v1133 = vmul.f32 %v454, %v1063
      %v1134 = vmul.f32 %v456, %v1073
      %v1135 = vmul.f32 %v458, %v1083
      %v1136 = vmul.f32 %v460, %v1093
      %v1137 = vmul.f32 %v462, %v1103
      %v1138 = vmul.f32 %v464, %v1113
      %v1139 = vmul.f32 %v466, %v1123
      %v1140 = vld [vmem:[%s8] sm:$0xff]
      %v1141 = vld [vmem:[%s8 + $0x8] sm:$0xff]
      %v1142 = vld [vmem:[%s8 + $0x10] sm:$0xff]
      %v1143 = vld [vmem:[%s8 + $0x18] sm:$0xff]
      %v1144 = vld [vmem:[%s8 + $0x20] sm:$0xff]
      %v1145 = vld [vmem:[%s8 + $0x28] sm:$0xff]
      %v1146 = vld [vmem:[%s8 + $0x30] sm:$0xff]
      %v1147 = vld [vmem:[%s8 + $0x38] sm:$0xff]
      %v1148 = vld [vmem:[%s8 + $0x40] sm:$0xff]
      %v1149 = vld [vmem:[%s8 + $0x48] sm:$0xff]
      %v1150 = vld [vmem:[%s8 + $0x50] sm:$0xff]
      %v1151 = vld [vmem:[%s8 + $0x58] sm:$0xff]
      %v1152 = vld [vmem:[%s8 + $0x60] sm:$0xff]
      %v1153 = vld [vmem:[%s8 + $0x68] sm:$0xff]
      %v1154 = vld [vmem:[%s8 + $0x70] sm:$0xff]
      %v1155 = vld [vmem:[%s8 + $0x78] sm:$0xff]
      %1164 = vrot.lane.b32.xlu0 %v1124, 96
      %v1165 = vpop.permute.xlu0 %1164
      %1166 = vrot.lane.b32.xlu0 %v1125, 96
      %v1167 = vpop.permute.xlu0 %1166
      %1168 = vrot.lane.b32.xlu0 %v1126, 96
      %v1169 = vpop.permute.xlu0 %1168
      %1170 = vrot.lane.b32.xlu0 %v1127, 96
      %v1171 = vpop.permute.xlu0 %1170
      %1172 = vrot.lane.b32.xlu0 %v1128, 96
      %v1173 = vpop.permute.xlu0 %1172
      %1174 = vrot.lane.b32.xlu0 %v1129, 96
      %v1175 = vpop.permute.xlu0 %1174
      %1176 = vrot.lane.b32.xlu0 %v1130, 96
      %v1177 = vpop.permute.xlu0 %1176
      %1178 = vrot.lane.b32.xlu0 %v1131, 96
      %v1179 = vpop.permute.xlu0 %1178
      %v1181 = vsel %vm491, %v820, 0
      %v1184 = vsel %vm491, %v821, 0
      %v1187 = vsel %vm491, %v822, 0
      %v1190 = vsel %vm491, %v823, 0
      %v1193 = vsel %vm491, %v824, 0
      %v1196 = vsel %vm491, %v825, 0
      %v1199 = vsel %vm491, %v826, 0
      %v1202 = vsel %vm491, %v827, 0
      %v1204 = vsel %vm491, %v1165, 0
      %v1206 = vsel %vm491, %v1167, 0
      %v1208 = vsel %vm491, %v1169, 0
      %v1210 = vsel %vm491, %v1171, 0
      %v1212 = vsel %vm491, %v1173, 0
      %v1214 = vsel %vm491, %v1175, 0
      %v1216 = vsel %vm491, %v1177, 0
      %v1218 = vsel %vm491, %v1179, 0
      %1220 = vmatpush.xpose.msra.mxu0 0.0
      %1221 = vmatpush.xpose.msra.mxu0 0.0
      %1222 = vmatpush.xpose.msra.mxu0 0.0
      %1223 = vmatpush.xpose.msra.mxu0 0.0
      %1224 = vmatpush.xpose.msra.mxu0 0.0
      %1225 = vmatpush.xpose.msra.mxu0 0.0
      %1226 = vmatpush.xpose.msra.mxu0 0.0
      %1227 = vmatpush.xpose.msra.mxu0 0.0
      %1228 = vmatpush.xpose.msra.mxu0 %v1218
      %1229 = vmatpush.xpose.msra.mxu0 %v1216
      %1230 = vmatpush.xpose.msra.mxu0 %v1214
      %1231 = vmatpush.xpose.msra.mxu0 %v1212
      %1232 = vmatpush.xpose.msra.mxu0 %v1210
      %1233 = vmatpush.xpose.msra.mxu0 %v1208
      %1234 = vmatpush.xpose.msra.mxu0 %v1206
      %1235 = vmatpush.xpose.msra.mxu0 %v1204
      %1236 = vmatmul.f32.gmra.mxu0 %v1181
      %v1237 = vpop.f32.mrf.mxu0
      %v1238 = vadd.f32 %v1140, %v1237
      %1239 = vmatmul.f32.gmra.mxu0 %v1184
      %v1240 = vpop.f32.mrf.mxu0
      %v1241 = vadd.f32 %v1141, %v1240
      %1242 = vmatmul.f32.gmra.mxu0 %v1187
      %v1243 = vpop.f32.mrf.mxu0
      %v1244 = vadd.f32 %v1142, %v1243
      %1245 = vmatmul.f32.gmra.mxu0 %v1190
      %v1246 = vpop.f32.mrf.mxu0
      %v1247 = vadd.f32 %v1143, %v1246
      %1248 = vmatmul.f32.gmra.mxu0 %v1193
      %v1249 = vpop.f32.mrf.mxu0
      %v1250 = vadd.f32 %v1144, %v1249
      %1251 = vmatmul.f32.gmra.mxu0 %v1196
      %v1252 = vpop.f32.mrf.mxu0
      %v1253 = vadd.f32 %v1145, %v1252
      %1254 = vmatmul.f32.gmra.mxu0 %v1199
      %v1255 = vpop.f32.mrf.mxu0
      %v1256 = vadd.f32 %v1146, %v1255
      %1257 = vmatmul.f32.gmra.mxu0 %v1202
      %v1258 = vpop.f32.mrf.mxu0
      %v1259 = vadd.f32 %v1147, %v1258
      %1260 = vdwg.mxu0
      %1269 = vrot.lane.b32.xlu0 %v1132, 96
      %v1270 = vpop.permute.xlu0 %1269
      %1271 = vrot.lane.b32.xlu0 %v1133, 96
      %v1272 = vpop.permute.xlu0 %1271
      %1273 = vrot.lane.b32.xlu0 %v1134, 96
      %v1274 = vpop.permute.xlu0 %1273
      %1275 = vrot.lane.b32.xlu0 %v1135, 96
      %v1276 = vpop.permute.xlu0 %1275
      %1277 = vrot.lane.b32.xlu0 %v1136, 96
      %v1278 = vpop.permute.xlu0 %1277
      %1279 = vrot.lane.b32.xlu0 %v1137, 96
      %v1280 = vpop.permute.xlu0 %1279
      %1281 = vrot.lane.b32.xlu0 %v1138, 96
      %v1282 = vpop.permute.xlu0 %1281
      %1283 = vrot.lane.b32.xlu0 %v1139, 96
      %v1284 = vpop.permute.xlu0 %1283
      %v1286 = vsel %vm491, %v828, 0
      %v1289 = vsel %vm491, %v829, 0
      %v1292 = vsel %vm491, %v830, 0
      %v1295 = vsel %vm491, %v831, 0
      %v1298 = vsel %vm491, %v832, 0
      %v1301 = vsel %vm491, %v833, 0
      %v1304 = vsel %vm491, %v834, 0
      %v1307 = vsel %vm491, %v835, 0
      %v1309 = vsel %vm491, %v1270, 0
      %v1311 = vsel %vm491, %v1272, 0
      %v1313 = vsel %vm491, %v1274, 0
      %v1315 = vsel %vm491, %v1276, 0
      %v1317 = vsel %vm491, %v1278, 0
      %v1319 = vsel %vm491, %v1280, 0
      %v1321 = vsel %vm491, %v1282, 0
      %v1323 = vsel %vm491, %v1284, 0
      %1325 = vmatpush.xpose.msra.mxu0 0.0
      %1326 = vmatpush.xpose.msra.mxu0 0.0
      %1327 = vmatpush.xpose.msra.mxu0 0.0
      %1328 = vmatpush.xpose.msra.mxu0 0.0
      %1329 = vmatpush.xpose.msra.mxu0 0.0
      %1330 = vmatpush.xpose.msra.mxu0 0.0
      %1331 = vmatpush.xpose.msra.mxu0 0.0
      %1332 = vmatpush.xpose.msra.mxu0 0.0
      %1333 = vmatpush.xpose.msra.mxu0 %v1323
      %1334 = vmatpush.xpose.msra.mxu0 %v1321
      %1335 = vmatpush.xpose.msra.mxu0 %v1319
      %1336 = vmatpush.xpose.msra.mxu0 %v1317
      %1337 = vmatpush.xpose.msra.mxu0 %v1315
      %1338 = vmatpush.xpose.msra.mxu0 %v1313
      %1339 = vmatpush.xpose.msra.mxu0 %v1311
      %1340 = vmatpush.xpose.msra.mxu0 %v1309
      %1341 = vmatmul.f32.gmra.mxu0 %v1286
      %v1342 = vpop.f32.mrf.mxu0
      %v1343 = vadd.f32 %v1148, %v1342
      %1344 = vmatmul.f32.gmra.mxu0 %v1289
      %v1345 = vpop.f32.mrf.mxu0
      %v1346 = vadd.f32 %v1149, %v1345
      %1347 = vmatmul.f32.gmra.mxu0 %v1292
      %v1348 = vpop.f32.mrf.mxu0
      %v1349 = vadd.f32 %v1150, %v1348
      %1350 = vmatmul.f32.gmra.mxu0 %v1295
      %v1351 = vpop.f32.mrf.mxu0
      %v1352 = vadd.f32 %v1151, %v1351
      %1353 = vmatmul.f32.gmra.mxu0 %v1298
      %v1354 = vpop.f32.mrf.mxu0
      %v1355 = vadd.f32 %v1152, %v1354
      %1356 = vmatmul.f32.gmra.mxu0 %v1301
      %v1357 = vpop.f32.mrf.mxu0
      %v1358 = vadd.f32 %v1153, %v1357
      %1359 = vmatmul.f32.gmra.mxu0 %v1304
      %v1360 = vpop.f32.mrf.mxu0
      %v1361 = vadd.f32 %v1154, %v1360
      %1362 = vmatmul.f32.gmra.mxu0 %v1307
      %v1363 = vpop.f32.mrf.mxu0
      %v1364 = vadd.f32 %v1155, %v1363
      %1365 = vdwg.mxu0
      %vm1366 = vcmask 523264
      %v1367 = vsel %vm1366, %v1238, -inf
      %1368 = vmax.xlane.f32.xlu0 %v1367
      %v1369 = vpop.xlane.xlu0 %1368
      %v1370 = vsel %vm1366, %v1241, -inf
      %1371 = vmax.xlane.f32.xlu0 %v1370
      %v1372 = vpop.xlane.xlu0 %1371
      %v1373 = vsel %vm1366, %v1244, -inf
      %1374 = vmax.xlane.f32.xlu0 %v1373
      %v1375 = vpop.xlane.xlu0 %1374
      %v1376 = vsel %vm1366, %v1247, -inf
      %1377 = vmax.xlane.f32.xlu0 %v1376
      %v1378 = vpop.xlane.xlu0 %1377
      %v1379 = vsel %vm1366, %v1250, -inf
      %1380 = vmax.xlane.f32.xlu0 %v1379
      %v1381 = vpop.xlane.xlu0 %1380
      %v1382 = vsel %vm1366, %v1253, -inf
      %1383 = vmax.xlane.f32.xlu0 %v1382
      %v1384 = vpop.xlane.xlu0 %1383
      %v1385 = vsel %vm1366, %v1256, -inf
      %1386 = vmax.xlane.f32.xlu0 %v1385
      %v1387 = vpop.xlane.xlu0 %1386
      %v1388 = vsel %vm1366, %v1259, -inf
      %1389 = vmax.xlane.f32.xlu0 %v1388
      %v1390 = vpop.xlane.xlu0 %1389
      %v1391 = vsel %vm1366, %v1343, -inf
      %1392 = vmax.xlane.f32.xlu0 %v1391
      %v1393 = vpop.xlane.xlu0 %1392
      %v1394 = vsel %vm1366, %v1346, -inf
      %1395 = vmax.xlane.f32.xlu0 %v1394
      %v1396 = vpop.xlane.xlu0 %1395
      %v1397 = vsel %vm1366, %v1349, -inf
      %1398 = vmax.xlane.f32.xlu0 %v1397
      %v1399 = vpop.xlane.xlu0 %1398
      %v1400 = vsel %vm1366, %v1352, -inf
      %1401 = vmax.xlane.f32.xlu0 %v1400
      %v1402 = vpop.xlane.xlu0 %1401
      %v1403 = vsel %vm1366, %v1355, -inf
      %1404 = vmax.xlane.f32.xlu0 %v1403
      %v1405 = vpop.xlane.xlu0 %1404
      %v1406 = vsel %vm1366, %v1358, -inf
      %1407 = vmax.xlane.f32.xlu0 %v1406
      %v1408 = vpop.xlane.xlu0 %1407
      %v1409 = vsel %vm1366, %v1361, -inf
      %1410 = vmax.xlane.f32.xlu0 %v1409
      %v1411 = vpop.xlane.xlu0 %1410
      %v1412 = vsel %vm1366, %v1364, -inf
      %1413 = vmax.xlane.f32.xlu0 %v1412
      %v1414 = vpop.xlane.xlu0 %1413
      %v1415 = vsub.f32 %v1238, %v1369
      %v1416 = vsub.f32 %v1241, %v1372
      %v1417 = vsub.f32 %v1244, %v1375
      %v1418 = vsub.f32 %v1247, %v1378
      %v1419 = vsub.f32 %v1250, %v1381
      %v1420 = vsub.f32 %v1253, %v1384
      %v1421 = vsub.f32 %v1256, %v1387
      %v1422 = vsub.f32 %v1259, %v1390
      %v1423 = vsub.f32 %v1343, %v1393
      %v1424 = vsub.f32 %v1346, %v1396
      %v1425 = vsub.f32 %v1349, %v1399
      %v1426 = vsub.f32 %v1352, %v1402
      %v1427 = vsub.f32 %v1355, %v1405
      %v1428 = vsub.f32 %v1358, %v1408
      %v1429 = vsub.f32 %v1361, %v1411
      %v1430 = vsub.f32 %v1364, %v1414
      %v1431 = vmul.f32 %v1415, 1.442695
      %v1432 = vpow.pop %v1431
      %v1433 = vmul.f32 %v1416, 1.442695
      %v1434 = vpow.pop %v1433
      %v1435 = vmul.f32 %v1417, 1.442695
      %v1436 = vpow.pop %v1435
      %v1437 = vmul.f32 %v1418, 1.442695
      %v1438 = vpow.pop %v1437
      %v1439 = vmul.f32 %v1419, 1.442695
      %v1440 = vpow.pop %v1439
      %v1441 = vmul.f32 %v1420, 1.442695
      %v1442 = vpow.pop %v1441
      %v1443 = vmul.f32 %v1421, 1.442695
      %v1444 = vpow.pop %v1443
      %v1445 = vmul.f32 %v1422, 1.442695
      %v1446 = vpow.pop %v1445
      %v1447 = vmul.f32 %v1423, 1.442695
      %v1448 = vpow.pop %v1447
      %v1449 = vmul.f32 %v1424, 1.442695
      %v1450 = vpow.pop %v1449
      %v1451 = vmul.f32 %v1425, 1.442695
      %v1452 = vpow.pop %v1451
      %v1453 = vmul.f32 %v1426, 1.442695
      %v1454 = vpow.pop %v1453
      %v1455 = vmul.f32 %v1427, 1.442695
      %v1456 = vpow.pop %v1455
      %v1457 = vmul.f32 %v1428, 1.442695
      %v1458 = vpow.pop %v1457
      %v1459 = vmul.f32 %v1429, 1.442695
      %v1460 = vpow.pop %v1459
      %v1461 = vmul.f32 %v1430, 1.442695
      %v1462 = vpow.pop %v1461
      %v1463 = vsel %vm1366, %v1432, 0.0
      %1464 = vadd.xlane.f32.xlu0 %v1463
      %v1465 = vpop.xlane.xlu0 %1464
      %v1466 = vsel %vm1366, %v1434, 0.0
      %1467 = vadd.xlane.f32.xlu0 %v1466
      %v1468 = vpop.xlane.xlu0 %1467
      %v1469 = vsel %vm1366, %v1436, 0.0
      %1470 = vadd.xlane.f32.xlu0 %v1469
      %v1471 = vpop.xlane.xlu0 %1470
      %v1472 = vsel %vm1366, %v1438, 0.0
      %1473 = vadd.xlane.f32.xlu0 %v1472
      %v1474 = vpop.xlane.xlu0 %1473
      %v1475 = vsel %vm1366, %v1440, 0.0
      %1476 = vadd.xlane.f32.xlu0 %v1475
      %v1477 = vpop.xlane.xlu0 %1476
      %v1478 = vsel %vm1366, %v1442, 0.0
      %1479 = vadd.xlane.f32.xlu0 %v1478
      %v1480 = vpop.xlane.xlu0 %1479
      %v1481 = vsel %vm1366, %v1444, 0.0
      %1482 = vadd.xlane.f32.xlu0 %v1481
      %v1483 = vpop.xlane.xlu0 %1482
      %v1484 = vsel %vm1366, %v1446, 0.0
      %1485 = vadd.xlane.f32.xlu0 %v1484
      %v1486 = vpop.xlane.xlu0 %1485
      %v1487 = vsel %vm1366, %v1448, 0.0
      %1488 = vadd.xlane.f32.xlu0 %v1487
      %v1489 = vpop.xlane.xlu0 %1488
      %v1490 = vsel %vm1366, %v1450, 0.0
      %1491 = vadd.xlane.f32.xlu0 %v1490
      %v1492 = vpop.xlane.xlu0 %1491
      %v1493 = vsel %vm1366, %v1452, 0.0
      %1494 = vadd.xlane.f32.xlu0 %v1493
      %v1495 = vpop.xlane.xlu0 %1494
      %v1496 = vsel %vm1366, %v1454, 0.0
      %1497 = vadd.xlane.f32.xlu0 %v1496
      %v1498 = vpop.xlane.xlu0 %1497
      %v1499 = vsel %vm1366, %v1456, 0.0
      %1500 = vadd.xlane.f32.xlu0 %v1499
      %v1501 = vpop.xlane.xlu0 %1500
      %v1502 = vsel %vm1366, %v1458, 0.0
      %1503 = vadd.xlane.f32.xlu0 %v1502
      %v1504 = vpop.xlane.xlu0 %1503
      %v1505 = vsel %vm1366, %v1460, 0.0
      %1506 = vadd.xlane.f32.xlu0 %v1505
      %v1507 = vpop.xlane.xlu0 %1506
      %v1508 = vsel %vm1366, %v1462, 0.0
      %1509 = vadd.xlane.f32.xlu0 %v1508
      %v1510 = vpop.xlane.xlu0 %1509
      %v1511 = vrcp.pop %v1465
      %v1512 = vrcp.pop %v1468
      %v1513 = vrcp.pop %v1471
      %v1514 = vrcp.pop %v1474
      %v1515 = vrcp.pop %v1477
      %v1516 = vrcp.pop %v1480
      %v1517 = vrcp.pop %v1483
      %v1518 = vrcp.pop %v1486
      %v1519 = vrcp.pop %v1489
      %v1520 = vrcp.pop %v1492
      %v1521 = vrcp.pop %v1495
      %v1522 = vrcp.pop %v1498
      %v1523 = vrcp.pop %v1501
      %v1524 = vrcp.pop %v1504
      %v1525 = vrcp.pop %v1507
      %v1526 = vrcp.pop %v1510
      %v1527 = vmul.f32 %v1432, %v1511
      %v1528 = vmul.f32 %v1434, %v1512
      %v1529 = vmul.f32 %v1436, %v1513
      %v1530 = vmul.f32 %v1438, %v1514
      %v1531 = vmul.f32 %v1440, %v1515
      %v1532 = vmul.f32 %v1442, %v1516
      %v1533 = vmul.f32 %v1444, %v1517
      %v1534 = vmul.f32 %v1446, %v1518
      %v1535 = vmul.f32 %v1448, %v1519
      %v1536 = vmul.f32 %v1450, %v1520
      %v1537 = vmul.f32 %v1452, %v1521
      %v1538 = vmul.f32 %v1454, %v1522
      %v1539 = vmul.f32 %v1456, %v1523
      %v1540 = vmul.f32 %v1458, %v1524
      %v1541 = vmul.f32 %v1460, %v1525
      %v1542 = vmul.f32 %v1462, %v1526
      %1543 = vrot.lane.b32.xlu0 %v420, 64
      %v1544 = vpop.permute.xlu0 %1543
      %1545 = vrot.lane.b32.xlu0 %v423, 64
      %v1546 = vpop.permute.xlu0 %1545
      %1547 = vrot.lane.b32.xlu0 %v426, 64
      %v1548 = vpop.permute.xlu0 %1547
      %1549 = vrot.lane.b32.xlu0 %v429, 64
      %v1550 = vpop.permute.xlu0 %1549
      %1551 = vrot.lane.b32.xlu0 %v432, 64
      %v1552 = vpop.permute.xlu0 %1551
      %1553 = vrot.lane.b32.xlu0 %v435, 64
      %v1554 = vpop.permute.xlu0 %1553
      %1555 = vrot.lane.b32.xlu0 %v438, 64
      %v1556 = vpop.permute.xlu0 %1555
      %1557 = vrot.lane.b32.xlu0 %v441, 64
      %v1558 = vpop.permute.xlu0 %1557
      %v1568 = vsel %vm1366, %v1527, 0
      %v1571 = vsel %vm1366, %v1528, 0
      %v1574 = vsel %vm1366, %v1529, 0
      %v1577 = vsel %vm1366, %v1530, 0
      %v1580 = vsel %vm1366, %v1531, 0
      %v1583 = vsel %vm1366, %v1532, 0
      %v1586 = vsel %vm1366, %v1533, 0
      %v1589 = vsel %vm1366, %v1534, 0
      %1591 = vmatpush.msra.mxu0 0.0
      %1592 = vmatpush.msra.mxu0 0.0
      %1593 = vmatpush.msra.mxu0 0.0
      %1594 = vmatpush.msra.mxu0 0.0
      %1595 = vmatpush.msra.mxu0 0.0
      %1596 = vmatpush.msra.mxu0 0.0
      %1597 = vmatpush.msra.mxu0 0.0
      %1598 = vmatpush.msra.mxu0 0.0
      %1599 = vmatpush.msra.mxu0 %v1558
      %1600 = vmatpush.msra.mxu0 %v1556
      %1601 = vmatpush.msra.mxu0 %v1554
      %1602 = vmatpush.msra.mxu0 %v1552
      %1603 = vmatpush.msra.mxu0 %v1550
      %1604 = vmatpush.msra.mxu0 %v1548
      %1605 = vmatpush.msra.mxu0 %v1546
      %1606 = vmatpush.msra.mxu0 %v1544
      %1607 = vmatmul.f32.gmra.mxu0 %v1568
      %v1608 = vpop.f32.mrf.mxu0
      %v1609 = vadd.f32 0.0, %v1608
      %1610 = vmatmul.f32.gmra.mxu0 %v1571
      %v1611 = vpop.f32.mrf.mxu0
      %v1612 = vadd.f32 0.0, %v1611
      %1613 = vmatmul.f32.gmra.mxu0 %v1574
      %v1614 = vpop.f32.mrf.mxu0
      %v1615 = vadd.f32 0.0, %v1614
      %1616 = vmatmul.f32.gmra.mxu0 %v1577
      %v1617 = vpop.f32.mrf.mxu0
      %v1618 = vadd.f32 0.0, %v1617
      %1619 = vmatmul.f32.gmra.mxu0 %v1580
      %v1620 = vpop.f32.mrf.mxu0
      %v1621 = vadd.f32 0.0, %v1620
      %1622 = vmatmul.f32.gmra.mxu0 %v1583
      %v1623 = vpop.f32.mrf.mxu0
      %v1624 = vadd.f32 0.0, %v1623
      %1625 = vmatmul.f32.gmra.mxu0 %v1586
      %v1626 = vpop.f32.mrf.mxu0
      %v1627 = vadd.f32 0.0, %v1626
      %1628 = vmatmul.f32.gmra.mxu0 %v1589
      %v1629 = vpop.f32.mrf.mxu0
      %v1630 = vadd.f32 0.0, %v1629
      %1631 = vdwg.mxu0
      %1632 = vrot.lane.b32.xlu0 %v452, 64
      %v1633 = vpop.permute.xlu0 %1632
      %1634 = vrot.lane.b32.xlu0 %v454, 64
      %v1635 = vpop.permute.xlu0 %1634
      %1636 = vrot.lane.b32.xlu0 %v456, 64
      %v1637 = vpop.permute.xlu0 %1636
      %1638 = vrot.lane.b32.xlu0 %v458, 64
      %v1639 = vpop.permute.xlu0 %1638
      %1640 = vrot.lane.b32.xlu0 %v460, 64
      %v1641 = vpop.permute.xlu0 %1640
      %1642 = vrot.lane.b32.xlu0 %v462, 64
      %v1643 = vpop.permute.xlu0 %1642
      %1644 = vrot.lane.b32.xlu0 %v464, 64
      %v1645 = vpop.permute.xlu0 %1644
      %1646 = vrot.lane.b32.xlu0 %v466, 64
      %v1647 = vpop.permute.xlu0 %1646
      %v1657 = vsel %vm1366, %v1535, 0
      %v1660 = vsel %vm1366, %v1536, 0
      %v1663 = vsel %vm1366, %v1537, 0
      %v1666 = vsel %vm1366, %v1538, 0
      %v1669 = vsel %vm1366, %v1539, 0
      %v1672 = vsel %vm1366, %v1540, 0
      %v1675 = vsel %vm1366, %v1541, 0
      %v1678 = vsel %vm1366, %v1542, 0
      %1680 = vmatpush.msra.mxu0 0.0
      %1681 = vmatpush.msra.mxu0 0.0
      %1682 = vmatpush.msra.mxu0 0.0
      %1683 = vmatpush.msra.mxu0 0.0
      %1684 = vmatpush.msra.mxu0 0.0
      %1685 = vmatpush.msra.mxu0 0.0
      %1686 = vmatpush.msra.mxu0 0.0
      %1687 = vmatpush.msra.mxu0 0.0
      %1688 = vmatpush.msra.mxu0 %v1647
      %1689 = vmatpush.msra.mxu0 %v1645
      %1690 = vmatpush.msra.mxu0 %v1643
      %1691 = vmatpush.msra.mxu0 %v1641
      %1692 = vmatpush.msra.mxu0 %v1639
      %1693 = vmatpush.msra.mxu0 %v1637
      %1694 = vmatpush.msra.mxu0 %v1635
      %1695 = vmatpush.msra.mxu0 %v1633
      %1696 = vmatmul.f32.gmra.mxu0 %v1657
      %v1697 = vpop.f32.mrf.mxu0
      %v1698 = vadd.f32 0.0, %v1697
      %1699 = vmatmul.f32.gmra.mxu0 %v1660
      %v1700 = vpop.f32.mrf.mxu0
      %v1701 = vadd.f32 0.0, %v1700
      %1702 = vmatmul.f32.gmra.mxu0 %v1663
      %v1703 = vpop.f32.mrf.mxu0
      %v1704 = vadd.f32 0.0, %v1703
      %1705 = vmatmul.f32.gmra.mxu0 %v1666
      %v1706 = vpop.f32.mrf.mxu0
      %v1707 = vadd.f32 0.0, %v1706
      %1708 = vmatmul.f32.gmra.mxu0 %v1669
      %v1709 = vpop.f32.mrf.mxu0
      %v1710 = vadd.f32 0.0, %v1709
      %1711 = vmatmul.f32.gmra.mxu0 %v1672
      %v1712 = vpop.f32.mrf.mxu0
      %v1713 = vadd.f32 0.0, %v1712
      %1714 = vmatmul.f32.gmra.mxu0 %v1675
      %v1715 = vpop.f32.mrf.mxu0
      %v1716 = vadd.f32 0.0, %v1715
      %1717 = vmatmul.f32.gmra.mxu0 %v1678
      %v1718 = vpop.f32.mrf.mxu0
      %v1719 = vadd.f32 0.0, %v1718
      %1720 = vdwg.mxu0
      %v1721 = vld [vmem:[%s3] sm:$0xff]
      %v1722 = vld [vmem:[%s3 + $0x8] sm:$0xff]
      %v1723 = vld [vmem:[%s3 + $0x10] sm:$0xff]
      %v1724 = vld [vmem:[%s3 + $0x18] sm:$0xff]
      %v1726 = vsel %vm491, %v1609, 0
      %v1729 = vsel %vm491, %v1612, 0
      %v1732 = vsel %vm491, %v1615, 0
      %v1735 = vsel %vm491, %v1618, 0
      %v1738 = vsel %vm491, %v1621, 0
      %v1741 = vsel %vm491, %v1624, 0
      %v1744 = vsel %vm491, %v1627, 0
      %v1747 = vsel %vm491, %v1630, 0
      %1749 = vmatpush.msra.mxu0 0.0
      %1750 = vmatpush.msra.mxu0 0.0
      %1751 = vmatpush.msra.mxu0 0.0
      %1752 = vmatpush.msra.mxu0 0.0
      %1753 = vmatpush.msra.mxu0 0.0
      %1754 = vmatpush.msra.mxu0 0.0
      %1755 = vmatpush.msra.mxu0 0.0
      %1756 = vmatpush.msra.mxu0 0.0
      %1757 = vmatpush.msra.mxu0 0.0
      %1758 = vmatpush.msra.mxu0 0.0
      %1759 = vmatpush.msra.mxu0 0.0
      %1760 = vmatpush.msra.mxu0 0.0
      %1761 = vmatpush.msra.mxu0 0.0
      %1762 = vmatpush.msra.mxu0 0.0
      %1763 = vmatpush.msra.mxu0 %v1722
      %1764 = vmatpush.msra.mxu0 %v1721
      %1765 = vmatmul.f32.gmra.mxu0 %v1726
      %v1766 = vpop.f32.mrf.mxu0
      %v1767 = vadd.f32 0.0, %v1766
      %1768 = vmatmul.f32.gmra.mxu0 %v1729
      %v1769 = vpop.f32.mrf.mxu0
      %v1770 = vadd.f32 0.0, %v1769
      %1771 = vmatmul.f32.gmra.mxu0 %v1732
      %v1772 = vpop.f32.mrf.mxu0
      %v1773 = vadd.f32 0.0, %v1772
      %1774 = vmatmul.f32.gmra.mxu0 %v1735
      %v1775 = vpop.f32.mrf.mxu0
      %v1776 = vadd.f32 0.0, %v1775
      %1777 = vmatmul.f32.gmra.mxu0 %v1738
      %v1778 = vpop.f32.mrf.mxu0
      %v1779 = vadd.f32 0.0, %v1778
      %1780 = vmatmul.f32.gmra.mxu0 %v1741
      %v1781 = vpop.f32.mrf.mxu0
      %v1782 = vadd.f32 0.0, %v1781
      %1783 = vmatmul.f32.gmra.mxu0 %v1744
      %v1784 = vpop.f32.mrf.mxu0
      %v1785 = vadd.f32 0.0, %v1784
      %1786 = vmatmul.f32.gmra.mxu0 %v1747
      %v1787 = vpop.f32.mrf.mxu0
      %v1788 = vadd.f32 0.0, %v1787
      %1789 = vdwg.mxu0
      %v1791 = vsel %vm491, %v1698, 0
      %v1794 = vsel %vm491, %v1701, 0
      %v1797 = vsel %vm491, %v1704, 0
      %v1800 = vsel %vm491, %v1707, 0
      %v1803 = vsel %vm491, %v1710, 0
      %v1806 = vsel %vm491, %v1713, 0
      %v1809 = vsel %vm491, %v1716, 0
      %v1812 = vsel %vm491, %v1719, 0
      %1814 = vmatpush.msra.mxu0 0.0
      %1815 = vmatpush.msra.mxu0 0.0
      %1816 = vmatpush.msra.mxu0 0.0
      %1817 = vmatpush.msra.mxu0 0.0
      %1818 = vmatpush.msra.mxu0 0.0
      %1819 = vmatpush.msra.mxu0 0.0
      %1820 = vmatpush.msra.mxu0 0.0
      %1821 = vmatpush.msra.mxu0 0.0
      %1822 = vmatpush.msra.mxu0 0.0
      %1823 = vmatpush.msra.mxu0 0.0
      %1824 = vmatpush.msra.mxu0 0.0
      %1825 = vmatpush.msra.mxu0 0.0
      %1826 = vmatpush.msra.mxu0 0.0
      %1827 = vmatpush.msra.mxu0 0.0
      %1828 = vmatpush.msra.mxu0 %v1724
      %1829 = vmatpush.msra.mxu0 %v1723
      %1830 = vmatmul.f32.gmra.mxu0 %v1791
      %v1831 = vpop.f32.mrf.mxu0
      %v1832 = vadd.f32 0.0, %v1831
      %1833 = vmatmul.f32.gmra.mxu0 %v1794
      %v1834 = vpop.f32.mrf.mxu0
      %v1835 = vadd.f32 0.0, %v1834
      %1836 = vmatmul.f32.gmra.mxu0 %v1797
      %v1837 = vpop.f32.mrf.mxu0
      %v1838 = vadd.f32 0.0, %v1837
      %1839 = vmatmul.f32.gmra.mxu0 %v1800
      %v1840 = vpop.f32.mrf.mxu0
      %v1841 = vadd.f32 0.0, %v1840
      %1842 = vmatmul.f32.gmra.mxu0 %v1803
      %v1843 = vpop.f32.mrf.mxu0
      %v1844 = vadd.f32 0.0, %v1843
      %1845 = vmatmul.f32.gmra.mxu0 %v1806
      %v1846 = vpop.f32.mrf.mxu0
      %v1847 = vadd.f32 0.0, %v1846
      %1848 = vmatmul.f32.gmra.mxu0 %v1809
      %v1849 = vpop.f32.mrf.mxu0
      %v1850 = vadd.f32 0.0, %v1849
      %1851 = vmatmul.f32.gmra.mxu0 %v1812
      %v1852 = vpop.f32.mrf.mxu0
      %v1853 = vadd.f32 0.0, %v1852
      %1854 = vdwg.mxu0
      %v1855 = vsel %vm377, %v1767, 0.0
      %v1856 = vsel %vm377, %v1832, 0.0
      %v1857 = vadd.f32 %v1855, %v1856
      %v1858 = vsel %vm377, %v1770, 0.0
      %v1859 = vsel %vm377, %v1835, 0.0
      %v1860 = vadd.f32 %v1858, %v1859
      %v1861 = vsel %vm377, %v1773, 0.0
      %v1862 = vsel %vm377, %v1838, 0.0
      %v1863 = vadd.f32 %v1861, %v1862
      %v1864 = vsel %vm377, %v1776, 0.0
      %v1865 = vsel %vm377, %v1841, 0.0
      %v1866 = vadd.f32 %v1864, %v1865
      %v1867 = vsel %vm377, %v1779, 0.0
      %v1868 = vsel %vm377, %v1844, 0.0
      %v1869 = vadd.f32 %v1867, %v1868
      %v1870 = vsel %vm377, %v1782, 0.0
      %v1871 = vsel %vm377, %v1847, 0.0
      %v1872 = vadd.f32 %v1870, %v1871
      %v1873 = vsel %vm377, %v1785, 0.0
      %v1874 = vsel %vm377, %v1850, 0.0
      %v1875 = vadd.f32 %v1873, %v1874
      %v1876 = vsel %vm377, %v1788, 0.0
      %v1877 = vsel %vm377, %v1853, 0.0
      %v1878 = vadd.f32 %v1876, %v1877
      %v1879 = vperm.slane %v368, 0
      %v1880 = vadd.f32 %v1857, %v1879
      %v1881 = vadd.f32 %v1860, %v1879
      %v1882 = vadd.f32 %v1863, %v1879
      %v1883 = vadd.f32 %v1866, %v1879
      %v1884 = vadd.f32 %v1869, %v1879
      %v1885 = vadd.f32 %v1872, %v1879
      %v1886 = vadd.f32 %v1875, %v1879
      %v1887 = vadd.f32 %v1878, %v1879
      %v1888 = vsel %vm377, %v1880, 0.0
      %1889 = vadd.xlane.f32.xlu0 %v1888
      %v1890 = vpop.xlane.xlu0 %1889
      %v1891 = vsel %vm377, %v1881, 0.0
      %1892 = vadd.xlane.f32.xlu0 %v1891
      %v1893 = vpop.xlane.xlu0 %1892
      %v1894 = vsel %vm377, %v1882, 0.0
      %1895 = vadd.xlane.f32.xlu0 %v1894
      %v1896 = vpop.xlane.xlu0 %1895
      %v1897 = vsel %vm377, %v1883, 0.0
      %1898 = vadd.xlane.f32.xlu0 %v1897
      %v1899 = vpop.xlane.xlu0 %1898
      %v1900 = vsel %vm377, %v1884, 0.0
      %1901 = vadd.xlane.f32.xlu0 %v1900
      %v1902 = vpop.xlane.xlu0 %1901
      %v1903 = vsel %vm377, %v1885, 0.0
      %1904 = vadd.xlane.f32.xlu0 %v1903
      %v1905 = vpop.xlane.xlu0 %1904
      %v1906 = vsel %vm377, %v1886, 0.0
      %1907 = vadd.xlane.f32.xlu0 %v1906
      %v1908 = vpop.xlane.xlu0 %1907
      %v1909 = vsel %vm377, %v1887, 0.0
      %1910 = vadd.xlane.f32.xlu0 %v1909
      %v1911 = vpop.xlane.xlu0 %1910
      %v1912 = vrcp.pop 32.0
      %v1913 = vmul.f32 32.0, %v1912
      %v1914 = vsub.f32 1.0, %v1913
      %v1915 = vmul.f32 %v1912, %v1914
      %v1916 = vadd.f32 %v1912, %v1915
      %vm1917 = vweird.f32 %v1912
      %v1918 = vsel %vm1917, %v1912, %v1916
      %v1919 = vmul.f32 %v1890, %v1918
      %v1920 = vmul.f32 %v1893, %v1918
      %v1921 = vmul.f32 %v1896, %v1918
      %v1922 = vmul.f32 %v1899, %v1918
      %v1923 = vmul.f32 %v1902, %v1918
      %v1924 = vmul.f32 %v1905, %v1918
      %v1925 = vmul.f32 %v1908, %v1918
      %v1926 = vmul.f32 %v1911, %v1918
      %v1927 = vsub.f32 %v1880, %v1919
      %v1928 = vsub.f32 %v1881, %v1920
      %v1929 = vsub.f32 %v1882, %v1921
      %v1930 = vsub.f32 %v1883, %v1922
      %v1931 = vsub.f32 %v1884, %v1923
      %v1932 = vsub.f32 %v1885, %v1924
      %v1933 = vsub.f32 %v1886, %v1925
      %v1934 = vsub.f32 %v1887, %v1926
      %v1935 = vmul.f32 %v1927, %v1927
      %v1936 = vmul.f32 %v1928, %v1928
      %v1937 = vmul.f32 %v1929, %v1929
      %v1938 = vmul.f32 %v1930, %v1930
      %v1939 = vmul.f32 %v1931, %v1931
      %v1940 = vmul.f32 %v1932, %v1932
      %v1941 = vmul.f32 %v1933, %v1933
      %v1942 = vmul.f32 %v1934, %v1934
      %v1943 = vsel %vm377, %v1935, 0.0
      %1944 = vadd.xlane.f32.xlu0 %v1943
      %v1945 = vpop.xlane.xlu0 %1944
      %v1946 = vsel %vm377, %v1936, 0.0
      %1947 = vadd.xlane.f32.xlu0 %v1946
      %v1948 = vpop.xlane.xlu0 %1947
      %v1949 = vsel %vm377, %v1937, 0.0
      %1950 = vadd.xlane.f32.xlu0 %v1949
      %v1951 = vpop.xlane.xlu0 %1950
      %v1952 = vsel %vm377, %v1938, 0.0
      %1953 = vadd.xlane.f32.xlu0 %v1952
      %v1954 = vpop.xlane.xlu0 %1953
      %v1955 = vsel %vm377, %v1939, 0.0
      %1956 = vadd.xlane.f32.xlu0 %v1955
      %v1957 = vpop.xlane.xlu0 %1956
      %v1958 = vsel %vm377, %v1940, 0.0
      %1959 = vadd.xlane.f32.xlu0 %v1958
      %v1960 = vpop.xlane.xlu0 %1959
      %v1961 = vsel %vm377, %v1941, 0.0
      %1962 = vadd.xlane.f32.xlu0 %v1961
      %v1963 = vpop.xlane.xlu0 %1962
      %v1964 = vsel %vm377, %v1942, 0.0
      %1965 = vadd.xlane.f32.xlu0 %v1964
      %v1966 = vpop.xlane.xlu0 %1965
      %v1967 = vmul.f32 %v1945, %v1918
      %v1968 = vmul.f32 %v1948, %v1918
      %v1969 = vmul.f32 %v1951, %v1918
      %v1970 = vmul.f32 %v1954, %v1918
      %v1971 = vmul.f32 %v1957, %v1918
      %v1972 = vmul.f32 %v1960, %v1918
      %v1973 = vmul.f32 %v1963, %v1918
      %v1974 = vmul.f32 %v1966, %v1918
      %v1975 = vadd.f32 %v1967, 1e-05
      %v1976 = vadd.f32 %v1968, 1e-05
      %v1977 = vadd.f32 %v1969, 1e-05
      %v1978 = vadd.f32 %v1970, 1e-05
      %v1979 = vadd.f32 %v1971, 1e-05
      %v1980 = vadd.f32 %v1972, 1e-05
      %v1981 = vadd.f32 %v1973, 1e-05
      %v1982 = vadd.f32 %v1974, 1e-05
      %v1983 = vrsqrt.pop %v1975
      %v1984 = vmul.f32 %v1983, %v1975
      %v1985 = vmul.f32 %v1984, %v1983
      %v1986 = vmul.f32 0.5, %v1985
      %v1987 = vsub.f32 1.5, %v1986
      %v1988 = vmul.f32 %v1983, %v1987
      %vm1989 = vweird.f32 %v1975
      %vm1990 = vweird.f32 %v1983
      %vm1991 = vmor %vm1989, %vm1990
      %v1992 = vsel %vm1991, %v1983, %v1988
      %v1993 = vrsqrt.pop %v1976
      %v1994 = vmul.f32 %v1993, %v1976
      %v1995 = vmul.f32 %v1994, %v1993
      %v1996 = vmul.f32 0.5, %v1995
      %v1997 = vsub.f32 1.5, %v1996
      %v1998 = vmul.f32 %v1993, %v1997
      %vm1999 = vweird.f32 %v1976
      %vm2000 = vweird.f32 %v1993
      %vm2001 = vmor %vm1999, %vm2000
      %v2002 = vsel %vm2001, %v1993, %v1998
      %v2003 = vrsqrt.pop %v1977
      %v2004 = vmul.f32 %v2003, %v1977
      %v2005 = vmul.f32 %v2004, %v2003
      %v2006 = vmul.f32 0.5, %v2005
      %v2007 = vsub.f32 1.5, %v2006
      %v2008 = vmul.f32 %v2003, %v2007
      %vm2009 = vweird.f32 %v1977
      %vm2010 = vweird.f32 %v2003
      %vm2011 = vmor %vm2009, %vm2010
      %v2012 = vsel %vm2011, %v2003, %v2008
      %v2013 = vrsqrt.pop %v1978
      %v2014 = vmul.f32 %v2013, %v1978
      %v2015 = vmul.f32 %v2014, %v2013
      %v2016 = vmul.f32 0.5, %v2015
      %v2017 = vsub.f32 1.5, %v2016
      %v2018 = vmul.f32 %v2013, %v2017
      %vm2019 = vweird.f32 %v1978
      %vm2020 = vweird.f32 %v2013
      %vm2021 = vmor %vm2019, %vm2020
      %v2022 = vsel %vm2021, %v2013, %v2018
      %v2023 = vrsqrt.pop %v1979
      %v2024 = vmul.f32 %v2023, %v1979
      %v2025 = vmul.f32 %v2024, %v2023
      %v2026 = vmul.f32 0.5, %v2025
      %v2027 = vsub.f32 1.5, %v2026
      %v2028 = vmul.f32 %v2023, %v2027
      %vm2029 = vweird.f32 %v1979
      %vm2030 = vweird.f32 %v2023
      %vm2031 = vmor %vm2029, %vm2030
      %v2032 = vsel %vm2031, %v2023, %v2028
      %v2033 = vrsqrt.pop %v1980
      %v2034 = vmul.f32 %v2033, %v1980
      %v2035 = vmul.f32 %v2034, %v2033
      %v2036 = vmul.f32 0.5, %v2035
      %v2037 = vsub.f32 1.5, %v2036
      %v2038 = vmul.f32 %v2033, %v2037
      %vm2039 = vweird.f32 %v1980
      %vm2040 = vweird.f32 %v2033
      %vm2041 = vmor %vm2039, %vm2040
      %v2042 = vsel %vm2041, %v2033, %v2038
      %v2043 = vrsqrt.pop %v1981
      %v2044 = vmul.f32 %v2043, %v1981
      %v2045 = vmul.f32 %v2044, %v2043
      %v2046 = vmul.f32 0.5, %v2045
      %v2047 = vsub.f32 1.5, %v2046
      %v2048 = vmul.f32 %v2043, %v2047
      %vm2049 = vweird.f32 %v1981
      %vm2050 = vweird.f32 %v2043
      %vm2051 = vmor %vm2049, %vm2050
      %v2052 = vsel %vm2051, %v2043, %v2048
      %v2053 = vrsqrt.pop %v1982
      %v2054 = vmul.f32 %v2053, %v1982
      %v2055 = vmul.f32 %v2054, %v2053
      %v2056 = vmul.f32 0.5, %v2055
      %v2057 = vsub.f32 1.5, %v2056
      %v2058 = vmul.f32 %v2053, %v2057
      %vm2059 = vweird.f32 %v1982
      %vm2060 = vweird.f32 %v2053
      %vm2061 = vmor %vm2059, %vm2060
      %v2062 = vsel %vm2061, %v2053, %v2058
      %v2063 = vmul.f32 %v1927, %v1992
      %v2064 = vmul.f32 %v1928, %v2002
      %v2065 = vmul.f32 %v1929, %v2012
      %v2066 = vmul.f32 %v1930, %v2022
      %v2067 = vmul.f32 %v1931, %v2032
      %v2068 = vmul.f32 %v1932, %v2042
      %v2069 = vmul.f32 %v1933, %v2052
      %v2070 = vmul.f32 %v1934, %v2062
      %v2071 = vperm.slane %v368, 2
      %v2072 = vmul.f32 %v2063, %v2071
      %v2073 = vmul.f32 %v2064, %v2071
      %v2074 = vmul.f32 %v2065, %v2071
      %v2075 = vmul.f32 %v2066, %v2071
      %v2076 = vmul.f32 %v2067, %v2071
      %v2077 = vmul.f32 %v2068, %v2071
      %v2078 = vmul.f32 %v2069, %v2071
      %v2079 = vmul.f32 %v2070, %v2071
      %v2080 = vperm.slane %v368, 3
      %v2081 = vadd.f32 %v2072, %v2080
      %v2082 = vadd.f32 %v2073, %v2080
      %v2083 = vadd.f32 %v2074, %v2080
      %v2084 = vadd.f32 %v2075, %v2080
      %v2085 = vadd.f32 %v2076, %v2080
      %v2086 = vadd.f32 %v2077, %v2080
      %v2087 = vadd.f32 %v2078, %v2080
      %v2088 = vadd.f32 %v2079, %v2080
      %v2089 = vadd.f32 %v360, %v2081
      %v2090 = vadd.f32 %v361, %v2082
      %v2091 = vadd.f32 %v362, %v2083
      %v2092 = vadd.f32 %v363, %v2084
      %v2093 = vadd.f32 %v364, %v2085
      %v2094 = vadd.f32 %v365, %v2086
      %v2095 = vadd.f32 %v366, %v2087
      %v2096 = vadd.f32 %v367, %v2088
      %v2097 = vld [vmem:[%s5] sm:$0xff]
      %v2098 = vld [vmem:[%s5 + $0x8] sm:$0xff]
      %v2099 = vld [vmem:[%s5 + $0x10] sm:$0xff]
      %v2100 = vld [vmem:[%s5 + $0x18] sm:$0xff]
      %v2101 = vld [vmem:[%s6] sm:$0x1]
      %v2103 = vperm.slane %v2101, 0
      %v2106 = vsel %vm377, %v2089, 0
      %v2109 = vsel %vm377, %v2090, 0
      %v2112 = vsel %vm377, %v2091, 0
      %v2115 = vsel %vm377, %v2092, 0
      %v2118 = vsel %vm377, %v2093, 0
      %v2121 = vsel %vm377, %v2094, 0
      %v2124 = vsel %vm377, %v2095, 0
      %v2127 = vsel %vm377, %v2096, 0
      %2129 = vmatpush.msra.mxu0 0.0
      %2130 = vmatpush.msra.mxu0 0.0
      %2131 = vmatpush.msra.mxu0 0.0
      %2132 = vmatpush.msra.mxu0 0.0
      %2133 = vmatpush.msra.mxu0 0.0
      %2134 = vmatpush.msra.mxu0 0.0
      %2135 = vmatpush.msra.mxu0 0.0
      %2136 = vmatpush.msra.mxu0 0.0
      %2137 = vmatpush.msra.mxu0 0.0
      %2138 = vmatpush.msra.mxu0 0.0
      %2139 = vmatpush.msra.mxu0 0.0
      %2140 = vmatpush.msra.mxu0 0.0
      %2141 = vmatpush.msra.mxu0 %v2100
      %2142 = vmatpush.msra.mxu0 %v2099
      %2143 = vmatpush.msra.mxu0 %v2098
      %2144 = vmatpush.msra.mxu0 %v2097
      %2145 = vmatmul.f32.gmra.mxu0 %v2106
      %v2146 = vpop.f32.mrf.mxu0
      %v2147 = vadd.f32 %v2103, %v2146
      %2148 = vmatmul.f32.gmra.mxu0 %v2109
      %v2149 = vpop.f32.mrf.mxu0
      %v2150 = vadd.f32 %v2103, %v2149
      %2151 = vmatmul.f32.gmra.mxu0 %v2112
      %v2152 = vpop.f32.mrf.mxu0
      %v2153 = vadd.f32 %v2103, %v2152
      %2154 = vmatmul.f32.gmra.mxu0 %v2115
      %v2155 = vpop.f32.mrf.mxu0
      %v2156 = vadd.f32 %v2103, %v2155
      %2157 = vmatmul.f32.gmra.mxu0 %v2118
      %v2158 = vpop.f32.mrf.mxu0
      %v2159 = vadd.f32 %v2103, %v2158
      %2160 = vmatmul.f32.gmra.mxu0 %v2121
      %v2161 = vpop.f32.mrf.mxu0
      %v2162 = vadd.f32 %v2103, %v2161
      %2163 = vmatmul.f32.gmra.mxu0 %v2124
      %v2164 = vpop.f32.mrf.mxu0
      %v2165 = vadd.f32 %v2103, %v2164
      %2166 = vmatmul.f32.gmra.mxu0 %v2127
      %v2167 = vpop.f32.mrf.mxu0
      %v2168 = vadd.f32 %v2103, %v2167
      %2169 = vdwg.mxu0
      %v2170 = vmul.f32 %v2147, 0.5
      %v2171 = vmul.f32 %v2150, 0.5
      %v2172 = vmul.f32 %v2153, 0.5
      %v2173 = vmul.f32 %v2156, 0.5
      %v2174 = vmul.f32 %v2159, 0.5
      %v2175 = vmul.f32 %v2162, 0.5
      %v2176 = vmul.f32 %v2165, 0.5
      %v2177 = vmul.f32 %v2168, 0.5
      %v2178 = vmul.f32 %v2147, 0.70710677
      %v2179 = vmul.f32 %v2150, 0.70710677
      %v2180 = vmul.f32 %v2153, 0.70710677
      %v2181 = vmul.f32 %v2156, 0.70710677
      %v2182 = vmul.f32 %v2159, 0.70710677
      %v2183 = vmul.f32 %v2162, 0.70710677
      %v2184 = vmul.f32 %v2165, 0.70710677
      %v2185 = vmul.f32 %v2168, 0.70710677
      %v2186 = vmul.f32 %v2178, %v2178
      %v2187 = vmin.f32 16.0, %v2186
      %v2188 = vmul.f32 %v2187, 2.1237322e-06
      %v2189 = vadd.f32 %v2188, 0.00028619796
      %v2190 = vmul.f32 %v2187, %v2189
      %v2191 = vadd.f32 %v2190, 0.0036580483
      %v2192 = vmul.f32 %v2187, %v2191
      %v2193 = vadd.f32 %v2192, 0.05243302
      %v2194 = vmul.f32 %v2187, %v2193
      %v2195 = vadd.f32 %v2194, 0.18741608
      %v2196 = vmul.f32 %v2187, %v2195
      %v2197 = vadd.f32 %v2196, 1.1283791
      %v2198 = vmul.f32 %v2178, %v2197
      %v2199 = vmul.f32 %v2187, 3.8918573e-05
      %v2200 = vadd.f32 %v2199, 0.001143296
      %v2201 = vmul.f32 %v2187, %v2200
      %v2202 = vadd.f32 %v2201, 0.014752088
      %v2203 = vmul.f32 %v2187, %v2202
      %v2204 = vadd.f32 %v2203, 0.112945676
      %v2205 = vmul.f32 %v2187, %v2204
      %v2206 = vadd.f32 %v2205, 0.4994258
      %v2207 = vmul.f32 %v2187, %v2206
      %v2208 = vadd.f32 %v2207, 1.0
      %v2209 = vrcp.pop %v2208
      %v2210 = vmul.f32 %v2208, %v2209
      %v2211 = vsub.f32 1.0, %v2210
      %v2212 = vmul.f32 %v2209, %v2211
      %v2213 = vadd.f32 %v2209, %v2212
      %vm2214 = vweird.f32 %v2208
      %vm2215 = vweird.f32 %v2209
      %vm2216 = vmor %vm2214, %vm2215
      %v2217 = vsel %vm2216, %v2209, %v2213
      %v2218 = vand.u32 2147483647, %v2208
      %vm2219 = vcmp.eq.f32.partialorder %v2218, 8.507059e+37
      %v2220 = vand.u32 %v2208, 2147483648
      %v2221 = vor.u32 1.1754944e-38, %v2220
      %v2222 = vsel %vm2219, %v2221, %v2217
      %v2223 = vmul.f32 %v2198, %v2222
      %v2224 = vmin.f32 %v2223, 1.0
      %v2225 = vmax.f32 %v2224, -1.0
      %v2226 = vmul.f32 %v2179, %v2179
      %v2227 = vmin.f32 16.0, %v2226
      %v2228 = vmul.f32 %v2227, 2.1237322e-06
      %v2229 = vadd.f32 %v2228, 0.00028619796
      %v2230 = vmul.f32 %v2227, %v2229
      %v2231 = vadd.f32 %v2230, 0.0036580483
      %v2232 = vmul.f32 %v2227, %v2231
      %v2233 = vadd.f32 %v2232, 0.05243302
      %v2234 = vmul.f32 %v2227, %v2233
      %v2235 = vadd.f32 %v2234, 0.18741608
      %v2236 = vmul.f32 %v2227, %v2235
      %v2237 = vadd.f32 %v2236, 1.1283791
      %v2238 = vmul.f32 %v2179, %v2237
      %v2239 = vmul.f32 %v2227, 3.8918573e-05
      %v2240 = vadd.f32 %v2239, 0.001143296
      %v2241 = vmul.f32 %v2227, %v2240
      %v2242 = vadd.f32 %v2241, 0.014752088
      %v2243 = vmul.f32 %v2227, %v2242
      %v2244 = vadd.f32 %v2243, 0.112945676
      %v2245 = vmul.f32 %v2227, %v2244
      %v2246 = vadd.f32 %v2245, 0.4994258
      %v2247 = vmul.f32 %v2227, %v2246
      %v2248 = vadd.f32 %v2247, 1.0
      %v2249 = vrcp.pop %v2248
      %v2250 = vmul.f32 %v2248, %v2249
      %v2251 = vsub.f32 1.0, %v2250
      %v2252 = vmul.f32 %v2249, %v2251
      %v2253 = vadd.f32 %v2249, %v2252
      %vm2254 = vweird.f32 %v2248
      %vm2255 = vweird.f32 %v2249
      %vm2256 = vmor %vm2254, %vm2255
      %v2257 = vsel %vm2256, %v2249, %v2253
      %v2258 = vand.u32 2147483647, %v2248
      %vm2259 = vcmp.eq.f32.partialorder %v2258, 8.507059e+37
      %v2260 = vand.u32 %v2248, 2147483648
      %v2261 = vor.u32 1.1754944e-38, %v2260
      %v2262 = vsel %vm2259, %v2261, %v2257
      %v2263 = vmul.f32 %v2238, %v2262
      %v2264 = vmin.f32 %v2263, 1.0
      %v2265 = vmax.f32 %v2264, -1.0
      %v2266 = vmul.f32 %v2180, %v2180
      %v2267 = vmin.f32 16.0, %v2266
      %v2268 = vmul.f32 %v2267, 2.1237322e-06
      %v2269 = vadd.f32 %v2268, 0.00028619796
      %v2270 = vmul.f32 %v2267, %v2269
      %v2271 = vadd.f32 %v2270, 0.0036580483
      %v2272 = vmul.f32 %v2267, %v2271
      %v2273 = vadd.f32 %v2272, 0.05243302
      %v2274 = vmul.f32 %v2267, %v2273
      %v2275 = vadd.f32 %v2274, 0.18741608
      %v2276 = vmul.f32 %v2267, %v2275
      %v2277 = vadd.f32 %v2276, 1.1283791
      %v2278 = vmul.f32 %v2180, %v2277
      %v2279 = vmul.f32 %v2267, 3.8918573e-05
      %v2280 = vadd.f32 %v2279, 0.001143296
      %v2281 = vmul.f32 %v2267, %v2280
      %v2282 = vadd.f32 %v2281, 0.014752088
      %v2283 = vmul.f32 %v2267, %v2282
      %v2284 = vadd.f32 %v2283, 0.112945676
      %v2285 = vmul.f32 %v2267, %v2284
      %v2286 = vadd.f32 %v2285, 0.4994258
      %v2287 = vmul.f32 %v2267, %v2286
      %v2288 = vadd.f32 %v2287, 1.0
      %v2289 = vrcp.pop %v2288
      %v2290 = vmul.f32 %v2288, %v2289
      %v2291 = vsub.f32 1.0, %v2290
      %v2292 = vmul.f32 %v2289, %v2291
      %v2293 = vadd.f32 %v2289, %v2292
      %vm2294 = vweird.f32 %v2288
      %vm2295 = vweird.f32 %v2289
      %vm2296 = vmor %vm2294, %vm2295
      %v2297 = vsel %vm2296, %v2289, %v2293
      %v2298 = vand.u32 2147483647, %v2288
      %vm2299 = vcmp.eq.f32.partialorder %v2298, 8.507059e+37
      %v2300 = vand.u32 %v2288, 2147483648
      %v2301 = vor.u32 1.1754944e-38, %v2300
      %v2302 = vsel %vm2299, %v2301, %v2297
      %v2303 = vmul.f32 %v2278, %v2302
      %v2304 = vmin.f32 %v2303, 1.0
      %v2305 = vmax.f32 %v2304, -1.0
      %v2306 = vmul.f32 %v2181, %v2181
      %v2307 = vmin.f32 16.0, %v2306
      %v2308 = vmul.f32 %v2307, 2.1237322e-06
      %v2309 = vadd.f32 %v2308, 0.00028619796
      %v2310 = vmul.f32 %v2307, %v2309
      %v2311 = vadd.f32 %v2310, 0.0036580483
      %v2312 = vmul.f32 %v2307, %v2311
      %v2313 = vadd.f32 %v2312, 0.05243302
      %v2314 = vmul.f32 %v2307, %v2313
      %v2315 = vadd.f32 %v2314, 0.18741608
      %v2316 = vmul.f32 %v2307, %v2315
      %v2317 = vadd.f32 %v2316, 1.1283791
      %v2318 = vmul.f32 %v2181, %v2317
      %v2319 = vmul.f32 %v2307, 3.8918573e-05
      %v2320 = vadd.f32 %v2319, 0.001143296
      %v2321 = vmul.f32 %v2307, %v2320
      %v2322 = vadd.f32 %v2321, 0.014752088
      %v2323 = vmul.f32 %v2307, %v2322
      %v2324 = vadd.f32 %v2323, 0.112945676
      %v2325 = vmul.f32 %v2307, %v2324
      %v2326 = vadd.f32 %v2325, 0.4994258
      %v2327 = vmul.f32 %v2307, %v2326
      %v2328 = vadd.f32 %v2327, 1.0
      %v2329 = vrcp.pop %v2328
      %v2330 = vmul.f32 %v2328, %v2329
      %v2331 = vsub.f32 1.0, %v2330
      %v2332 = vmul.f32 %v2329, %v2331
      %v2333 = vadd.f32 %v2329, %v2332
      %vm2334 = vweird.f32 %v2328
      %vm2335 = vweird.f32 %v2329
      %vm2336 = vmor %vm2334, %vm2335
      %v2337 = vsel %vm2336, %v2329, %v2333
      %v2338 = vand.u32 2147483647, %v2328
      %vm2339 = vcmp.eq.f32.partialorder %v2338, 8.507059e+37
      %v2340 = vand.u32 %v2328, 2147483648
      %v2341 = vor.u32 1.1754944e-38, %v2340
      %v2342 = vsel %vm2339, %v2341, %v2337
      %v2343 = vmul.f32 %v2318, %v2342
      %v2344 = vmin.f32 %v2343, 1.0
      %v2345 = vmax.f32 %v2344, -1.0
      %v2346 = vmul.f32 %v2182, %v2182
      %v2347 = vmin.f32 16.0, %v2346
      %v2348 = vmul.f32 %v2347, 2.1237322e-06
      %v2349 = vadd.f32 %v2348, 0.00028619796
      %v2350 = vmul.f32 %v2347, %v2349
      %v2351 = vadd.f32 %v2350, 0.0036580483
      %v2352 = vmul.f32 %v2347, %v2351
      %v2353 = vadd.f32 %v2352, 0.05243302
      %v2354 = vmul.f32 %v2347, %v2353
      %v2355 = vadd.f32 %v2354, 0.18741608
      %v2356 = vmul.f32 %v2347, %v2355
      %v2357 = vadd.f32 %v2356, 1.1283791
      %v2358 = vmul.f32 %v2182, %v2357
      %v2359 = vmul.f32 %v2347, 3.8918573e-05
      %v2360 = vadd.f32 %v2359, 0.001143296
      %v2361 = vmul.f32 %v2347, %v2360
      %v2362 = vadd.f32 %v2361, 0.014752088
      %v2363 = vmul.f32 %v2347, %v2362
      %v2364 = vadd.f32 %v2363, 0.112945676
      %v2365 = vmul.f32 %v2347, %v2364
      %v2366 = vadd.f32 %v2365, 0.4994258
      %v2367 = vmul.f32 %v2347, %v2366
      %v2368 = vadd.f32 %v2367, 1.0
      %v2369 = vrcp.pop %v2368
      %v2370 = vmul.f32 %v2368, %v2369
      %v2371 = vsub.f32 1.0, %v2370
      %v2372 = vmul.f32 %v2369, %v2371
      %v2373 = vadd.f32 %v2369, %v2372
      %vm2374 = vweird.f32 %v2368
      %vm2375 = vweird.f32 %v2369
      %vm2376 = vmor %vm2374, %vm2375
      %v2377 = vsel %vm2376, %v2369, %v2373
      %v2378 = vand.u32 2147483647, %v2368
      %vm2379 = vcmp.eq.f32.partialorder %v2378, 8.507059e+37
      %v2380 = vand.u32 %v2368, 2147483648
      %v2381 = vor.u32 1.1754944e-38, %v2380
      %v2382 = vsel %vm2379, %v2381, %v2377
      %v2383 = vmul.f32 %v2358, %v2382
      %v2384 = vmin.f32 %v2383, 1.0
      %v2385 = vmax.f32 %v2384, -1.0
      %v2386 = vmul.f32 %v2183, %v2183
      %v2387 = vmin.f32 16.0, %v2386
      %v2388 = vmul.f32 %v2387, 2.1237322e-06
      %v2389 = vadd.f32 %v2388, 0.00028619796
      %v2390 = vmul.f32 %v2387, %v2389
      %v2391 = vadd.f32 %v2390, 0.0036580483
      %v2392 = vmul.f32 %v2387, %v2391
      %v2393 = vadd.f32 %v2392, 0.05243302
      %v2394 = vmul.f32 %v2387, %v2393
      %v2395 = vadd.f32 %v2394, 0.18741608
      %v2396 = vmul.f32 %v2387, %v2395
      %v2397 = vadd.f32 %v2396, 1.1283791
      %v2398 = vmul.f32 %v2183, %v2397
      %v2399 = vmul.f32 %v2387, 3.8918573e-05
      %v2400 = vadd.f32 %v2399, 0.001143296
      %v2401 = vmul.f32 %v2387, %v2400
      %v2402 = vadd.f32 %v2401, 0.014752088
      %v2403 = vmul.f32 %v2387, %v2402
      %v2404 = vadd.f32 %v2403, 0.112945676
      %v2405 = vmul.f32 %v2387, %v2404
      %v2406 = vadd.f32 %v2405, 0.4994258
      %v2407 = vmul.f32 %v2387, %v2406
      %v2408 = vadd.f32 %v2407, 1.0
      %v2409 = vrcp.pop %v2408
      %v2410 = vmul.f32 %v2408, %v2409
      %v2411 = vsub.f32 1.0, %v2410
      %v2412 = vmul.f32 %v2409, %v2411
      %v2413 = vadd.f32 %v2409, %v2412
      %vm2414 = vweird.f32 %v2408
      %vm2415 = vweird.f32 %v2409
      %vm2416 = vmor %vm2414, %vm2415
      %v2417 = vsel %vm2416, %v2409, %v2413
      %v2418 = vand.u32 2147483647, %v2408
      %vm2419 = vcmp.eq.f32.partialorder %v2418, 8.507059e+37
      %v2420 = vand.u32 %v2408, 2147483648
      %v2421 = vor.u32 1.1754944e-38, %v2420
      %v2422 = vsel %vm2419, %v2421, %v2417
      %v2423 = vmul.f32 %v2398, %v2422
      %v2424 = vmin.f32 %v2423, 1.0
      %v2425 = vmax.f32 %v2424, -1.0
      %v2426 = vmul.f32 %v2184, %v2184
      %v2427 = vmin.f32 16.0, %v2426
      %v2428 = vmul.f32 %v2427, 2.1237322e-06
      %v2429 = vadd.f32 %v2428, 0.00028619796
      %v2430 = vmul.f32 %v2427, %v2429
      %v2431 = vadd.f32 %v2430, 0.0036580483
      %v2432 = vmul.f32 %v2427, %v2431
      %v2433 = vadd.f32 %v2432, 0.05243302
      %v2434 = vmul.f32 %v2427, %v2433
      %v2435 = vadd.f32 %v2434, 0.18741608
      %v2436 = vmul.f32 %v2427, %v2435
      %v2437 = vadd.f32 %v2436, 1.1283791
      %v2438 = vmul.f32 %v2184, %v2437
      %v2439 = vmul.f32 %v2427, 3.8918573e-05
      %v2440 = vadd.f32 %v2439, 0.001143296
      %v2441 = vmul.f32 %v2427, %v2440
      %v2442 = vadd.f32 %v2441, 0.014752088
      %v2443 = vmul.f32 %v2427, %v2442
      %v2444 = vadd.f32 %v2443, 0.112945676
      %v2445 = vmul.f32 %v2427, %v2444
      %v2446 = vadd.f32 %v2445, 0.4994258
      %v2447 = vmul.f32 %v2427, %v2446
      %v2448 = vadd.f32 %v2447, 1.0
      %v2449 = vrcp.pop %v2448
      %v2450 = vmul.f32 %v2448, %v2449
      %v2451 = vsub.f32 1.0, %v2450
      %v2452 = vmul.f32 %v2449, %v2451
      %v2453 = vadd.f32 %v2449, %v2452
      %vm2454 = vweird.f32 %v2448
      %vm2455 = vweird.f32 %v2449
      %vm2456 = vmor %vm2454, %vm2455
      %v2457 = vsel %vm2456, %v2449, %v2453
      %v2458 = vand.u32 2147483647, %v2448
      %vm2459 = vcmp.eq.f32.partialorder %v2458, 8.507059e+37
      %v2460 = vand.u32 %v2448, 2147483648
      %v2461 = vor.u32 1.1754944e-38, %v2460
      %v2462 = vsel %vm2459, %v2461, %v2457
      %v2463 = vmul.f32 %v2438, %v2462
      %v2464 = vmin.f32 %v2463, 1.0
      %v2465 = vmax.f32 %v2464, -1.0
      %v2466 = vmul.f32 %v2185, %v2185
      %v2467 = vmin.f32 16.0, %v2466
      %v2468 = vmul.f32 %v2467, 2.1237322e-06
      %v2469 = vadd.f32 %v2468, 0.00028619796
      %v2470 = vmul.f32 %v2467, %v2469
      %v2471 = vadd.f32 %v2470, 0.0036580483
      %v2472 = vmul.f32 %v2467, %v2471
      %v2473 = vadd.f32 %v2472, 0.05243302
      %v2474 = vmul.f32 %v2467, %v2473
      %v2475 = vadd.f32 %v2474, 0.18741608
      %v2476 = vmul.f32 %v2467, %v2475
      %v2477 = vadd.f32 %v2476, 1.1283791
      %v2478 = vmul.f32 %v2185, %v2477
      %v2479 = vmul.f32 %v2467, 3.8918573e-05
      %v2480 = vadd.f32 %v2479, 0.001143296
      %v2481 = vmul.f32 %v2467, %v2480
      %v2482 = vadd.f32 %v2481, 0.014752088
      %v2483 = vmul.f32 %v2467, %v2482
      %v2484 = vadd.f32 %v2483, 0.112945676
      %v2485 = vmul.f32 %v2467, %v2484
      %v2486 = vadd.f32 %v2485, 0.4994258
      %v2487 = vmul.f32 %v2467, %v2486
      %v2488 = vadd.f32 %v2487, 1.0
      %v2489 = vrcp.pop %v2488
      %v2490 = vmul.f32 %v2488, %v2489
      %v2491 = vsub.f32 1.0, %v2490
      %v2492 = vmul.f32 %v2489, %v2491
      %v2493 = vadd.f32 %v2489, %v2492
      %vm2494 = vweird.f32 %v2488
      %vm2495 = vweird.f32 %v2489
      %vm2496 = vmor %vm2494, %vm2495
      %v2497 = vsel %vm2496, %v2489, %v2493
      %v2498 = vand.u32 2147483647, %v2488
      %vm2499 = vcmp.eq.f32.partialorder %v2498, 8.507059e+37
      %v2500 = vand.u32 %v2488, 2147483648
      %v2501 = vor.u32 1.1754944e-38, %v2500
      %v2502 = vsel %vm2499, %v2501, %v2497
      %v2503 = vmul.f32 %v2478, %v2502
      %v2504 = vmin.f32 %v2503, 1.0
      %v2505 = vmax.f32 %v2504, -1.0
      %v2506 = vadd.f32 %v2225, 1.0
      %v2507 = vadd.f32 %v2265, 1.0
      %v2508 = vadd.f32 %v2305, 1.0
      %v2509 = vadd.f32 %v2345, 1.0
      %v2510 = vadd.f32 %v2385, 1.0
      %v2511 = vadd.f32 %v2425, 1.0
      %v2512 = vadd.f32 %v2465, 1.0
      %v2513 = vadd.f32 %v2505, 1.0
      %v2514 = vmul.f32 %v2170, %v2506
      %v2515 = vmul.f32 %v2171, %v2507
      %v2516 = vmul.f32 %v2172, %v2508
      %v2517 = vmul.f32 %v2173, %v2509
      %v2518 = vmul.f32 %v2174, %v2510
      %v2519 = vmul.f32 %v2175, %v2511
      %v2520 = vmul.f32 %v2176, %v2512
      %v2521 = vmul.f32 %v2177, %v2513
      %v2522 = vld [vmem:[%s7] sm:$0xff]
      %v2523 = vld [vmem:[%s7 + $0x8] sm:$0xff]
      %v2524 = vld [vmem:[%s7 + $0x10] sm:$0xff]
      %v2525 = vld [vmem:[%s7 + $0x18] sm:$0xff]
      %v2526 = vld [vmem:[%s7 + $0x20] sm:$0xff]
      %v2527 = vld [vmem:[%s7 + $0x28] sm:$0xff]
      %v2528 = vld [vmem:[%s7 + $0x30] sm:$0xff]
      %v2529 = vld [vmem:[%s7 + $0x38] sm:$0xff]
      %v2530 = vld [vmem:[%s7 + $0x40] sm:$0xff]
      %v2531 = vld [vmem:[%s7 + $0x48] sm:$0xff]
      %v2532 = vld [vmem:[%s7 + $0x50] sm:$0xff]
      %v2533 = vld [vmem:[%s7 + $0x58] sm:$0xff]
      %v2534 = vld [vmem:[%s7 + $0x60] sm:$0xff]
      %v2535 = vld [vmem:[%s7 + $0x68] sm:$0xff]
      %v2536 = vld [vmem:[%s7 + $0x70] sm:$0xff]
      %v2537 = vld [vmem:[%s7 + $0x78] sm:$0xff]
      %v2538 = vperm.slane %v368, 1
      %2539 = vmatpush.msra.mxu0 %v2537
      %2540 = vmatpush.msra.mxu0 %v2536
      %2541 = vmatpush.msra.mxu0 %v2535
      %2542 = vmatpush.msra.mxu0 %v2534
      %2543 = vmatpush.msra.mxu0 %v2533
      %2544 = vmatpush.msra.mxu0 %v2532
      %2545 = vmatpush.msra.mxu0 %v2531
      %2546 = vmatpush.msra.mxu0 %v2530
      %2547 = vmatpush.msra.mxu0 %v2529
      %2548 = vmatpush.msra.mxu0 %v2528
      %2549 = vmatpush.msra.mxu0 %v2527
      %2550 = vmatpush.msra.mxu0 %v2526
      %2551 = vmatpush.msra.mxu0 %v2525
      %2552 = vmatpush.msra.mxu0 %v2524
      %2553 = vmatpush.msra.mxu0 %v2523
      %2554 = vmatpush.msra.mxu0 %v2522
      %2555 = vmatmul.f32.gmra.mxu0 %v2514
      %v2556 = vpop.f32.mrf.mxu0
      %v2557 = vadd.f32 %v2538, %v2556
      %2558 = vmatmul.f32.gmra.mxu0 %v2515
      %v2559 = vpop.f32.mrf.mxu0
      %v2560 = vadd.f32 %v2538, %v2559
      %2561 = vmatmul.f32.gmra.mxu0 %v2516
      %v2562 = vpop.f32.mrf.mxu0
      %v2563 = vadd.f32 %v2538, %v2562
      %2564 = vmatmul.f32.gmra.mxu0 %v2517
      %v2565 = vpop.f32.mrf.mxu0
      %v2566 = vadd.f32 %v2538, %v2565
      %2567 = vmatmul.f32.gmra.mxu0 %v2518
      %v2568 = vpop.f32.mrf.mxu0
      %v2569 = vadd.f32 %v2538, %v2568
      %2570 = vmatmul.f32.gmra.mxu0 %v2519
      %v2571 = vpop.f32.mrf.mxu0
      %v2572 = vadd.f32 %v2538, %v2571
      %2573 = vmatmul.f32.gmra.mxu0 %v2520
      %v2574 = vpop.f32.mrf.mxu0
      %v2575 = vadd.f32 %v2538, %v2574
      %2576 = vmatmul.f32.gmra.mxu0 %v2521
      %v2577 = vpop.f32.mrf.mxu0
      %v2578 = vadd.f32 %v2538, %v2577
      %2579 = vdwg.mxu0
      %v2580 = vsel %vm377, %v2557, 0.0
      %2581 = vadd.xlane.f32.xlu0 %v2580
      %v2582 = vpop.xlane.xlu0 %2581
      %v2583 = vsel %vm377, %v2560, 0.0
      %2584 = vadd.xlane.f32.xlu0 %v2583
      %v2585 = vpop.xlane.xlu0 %2584
      %v2586 = vsel %vm377, %v2563, 0.0
      %2587 = vadd.xlane.f32.xlu0 %v2586
      %v2588 = vpop.xlane.xlu0 %2587
      %v2589 = vsel %vm377, %v2566, 0.0
      %2590 = vadd.xlane.f32.xlu0 %v2589
      %v2591 = vpop.xlane.xlu0 %2590
      %v2592 = vsel %vm377, %v2569, 0.0
      %2593 = vadd.xlane.f32.xlu0 %v2592
      %v2594 = vpop.xlane.xlu0 %2593
      %v2595 = vsel %vm377, %v2572, 0.0
      %2596 = vadd.xlane.f32.xlu0 %v2595
      %v2597 = vpop.xlane.xlu0 %2596
      %v2598 = vsel %vm377, %v2575, 0.0
      %2599 = vadd.xlane.f32.xlu0 %v2598
      %v2600 = vpop.xlane.xlu0 %2599
      %v2601 = vsel %vm377, %v2578, 0.0
      %2602 = vadd.xlane.f32.xlu0 %v2601
      %v2603 = vpop.xlane.xlu0 %2602
      %v2604 = vmul.f32 %v2582, %v1918
      %v2605 = vmul.f32 %v2585, %v1918
      %v2606 = vmul.f32 %v2588, %v1918
      %v2607 = vmul.f32 %v2591, %v1918
      %v2608 = vmul.f32 %v2594, %v1918
      %v2609 = vmul.f32 %v2597, %v1918
      %v2610 = vmul.f32 %v2600, %v1918
      %v2611 = vmul.f32 %v2603, %v1918
      %v2612 = vsub.f32 %v2557, %v2604
      %v2613 = vsub.f32 %v2560, %v2605
      %v2614 = vsub.f32 %v2563, %v2606
      %v2615 = vsub.f32 %v2566, %v2607
      %v2616 = vsub.f32 %v2569, %v2608
      %v2617 = vsub.f32 %v2572, %v2609
      %v2618 = vsub.f32 %v2575, %v2610
      %v2619 = vsub.f32 %v2578, %v2611
      %v2620 = vmul.f32 %v2612, %v2612
      %v2621 = vmul.f32 %v2613, %v2613
      %v2622 = vmul.f32 %v2614, %v2614
      %v2623 = vmul.f32 %v2615, %v2615
      %v2624 = vmul.f32 %v2616, %v2616
      %v2625 = vmul.f32 %v2617, %v2617
      %v2626 = vmul.f32 %v2618, %v2618
      %v2627 = vmul.f32 %v2619, %v2619
      %v2628 = vsel %vm377, %v2620, 0.0
      %2629 = vadd.xlane.f32.xlu0 %v2628
      %v2630 = vpop.xlane.xlu0 %2629
      %v2631 = vsel %vm377, %v2621, 0.0
      %2632 = vadd.xlane.f32.xlu0 %v2631
      %v2633 = vpop.xlane.xlu0 %2632
      %v2634 = vsel %vm377, %v2622, 0.0
      %2635 = vadd.xlane.f32.xlu0 %v2634
      %v2636 = vpop.xlane.xlu0 %2635
      %v2637 = vsel %vm377, %v2623, 0.0
      %2638 = vadd.xlane.f32.xlu0 %v2637
      %v2639 = vpop.xlane.xlu0 %2638
      %v2640 = vsel %vm377, %v2624, 0.0
      %2641 = vadd.xlane.f32.xlu0 %v2640
      %v2642 = vpop.xlane.xlu0 %2641
      %v2643 = vsel %vm377, %v2625, 0.0
      %2644 = vadd.xlane.f32.xlu0 %v2643
      %v2645 = vpop.xlane.xlu0 %2644
      %v2646 = vsel %vm377, %v2626, 0.0
      %2647 = vadd.xlane.f32.xlu0 %v2646
      %v2648 = vpop.xlane.xlu0 %2647
      %v2649 = vsel %vm377, %v2627, 0.0
      %2650 = vadd.xlane.f32.xlu0 %v2649
      %v2651 = vpop.xlane.xlu0 %2650
      %v2652 = vmul.f32 %v2630, %v1918
      %v2653 = vmul.f32 %v2633, %v1918
      %v2654 = vmul.f32 %v2636, %v1918
      %v2655 = vmul.f32 %v2639, %v1918
      %v2656 = vmul.f32 %v2642, %v1918
      %v2657 = vmul.f32 %v2645, %v1918
      %v2658 = vmul.f32 %v2648, %v1918
      %v2659 = vmul.f32 %v2651, %v1918
      %v2660 = vadd.f32 %v2652, 1e-05
      %v2661 = vadd.f32 %v2653, 1e-05
      %v2662 = vadd.f32 %v2654, 1e-05
      %v2663 = vadd.f32 %v2655, 1e-05
      %v2664 = vadd.f32 %v2656, 1e-05
      %v2665 = vadd.f32 %v2657, 1e-05
      %v2666 = vadd.f32 %v2658, 1e-05
      %v2667 = vadd.f32 %v2659, 1e-05
      %v2668 = vrsqrt.pop %v2660
      %v2669 = vmul.f32 %v2668, %v2660
      %v2670 = vmul.f32 %v2669, %v2668
      %v2671 = vmul.f32 0.5, %v2670
      %v2672 = vsub.f32 1.5, %v2671
      %v2673 = vmul.f32 %v2668, %v2672
      %vm2674 = vweird.f32 %v2660
      %vm2675 = vweird.f32 %v2668
      %vm2676 = vmor %vm2674, %vm2675
      %v2677 = vsel %vm2676, %v2668, %v2673
      %v2678 = vrsqrt.pop %v2661
      %v2679 = vmul.f32 %v2678, %v2661
      %v2680 = vmul.f32 %v2679, %v2678
      %v2681 = vmul.f32 0.5, %v2680
      %v2682 = vsub.f32 1.5, %v2681
      %v2683 = vmul.f32 %v2678, %v2682
      %vm2684 = vweird.f32 %v2661
      %vm2685 = vweird.f32 %v2678
      %vm2686 = vmor %vm2684, %vm2685
      %v2687 = vsel %vm2686, %v2678, %v2683
      %v2688 = vrsqrt.pop %v2662
      %v2689 = vmul.f32 %v2688, %v2662
      %v2690 = vmul.f32 %v2689, %v2688
      %v2691 = vmul.f32 0.5, %v2690
      %v2692 = vsub.f32 1.5, %v2691
      %v2693 = vmul.f32 %v2688, %v2692
      %vm2694 = vweird.f32 %v2662
      %vm2695 = vweird.f32 %v2688
      %vm2696 = vmor %vm2694, %vm2695
      %v2697 = vsel %vm2696, %v2688, %v2693
      %v2698 = vrsqrt.pop %v2663
      %v2699 = vmul.f32 %v2698, %v2663
      %v2700 = vmul.f32 %v2699, %v2698
      %v2701 = vmul.f32 0.5, %v2700
      %v2702 = vsub.f32 1.5, %v2701
      %v2703 = vmul.f32 %v2698, %v2702
      %vm2704 = vweird.f32 %v2663
      %vm2705 = vweird.f32 %v2698
      %vm2706 = vmor %vm2704, %vm2705
      %v2707 = vsel %vm2706, %v2698, %v2703
      %v2708 = vrsqrt.pop %v2664
      %v2709 = vmul.f32 %v2708, %v2664
      %v2710 = vmul.f32 %v2709, %v2708
      %v2711 = vmul.f32 0.5, %v2710
      %v2712 = vsub.f32 1.5, %v2711
      %v2713 = vmul.f32 %v2708, %v2712
      %vm2714 = vweird.f32 %v2664
      %vm2715 = vweird.f32 %v2708
      %vm2716 = vmor %vm2714, %vm2715
      %v2717 = vsel %vm2716, %v2708, %v2713
      %v2718 = vrsqrt.pop %v2665
      %v2719 = vmul.f32 %v2718, %v2665
      %v2720 = vmul.f32 %v2719, %v2718
      %v2721 = vmul.f32 0.5, %v2720
      %v2722 = vsub.f32 1.5, %v2721
      %v2723 = vmul.f32 %v2718, %v2722
      %vm2724 = vweird.f32 %v2665
      %vm2725 = vweird.f32 %v2718
      %vm2726 = vmor %vm2724, %vm2725
      %v2727 = vsel %vm2726, %v2718, %v2723
      %v2728 = vrsqrt.pop %v2666
      %v2729 = vmul.f32 %v2728, %v2666
      %v2730 = vmul.f32 %v2729, %v2728
      %v2731 = vmul.f32 0.5, %v2730
      %v2732 = vsub.f32 1.5, %v2731
      %v2733 = vmul.f32 %v2728, %v2732
      %vm2734 = vweird.f32 %v2666
      %vm2735 = vweird.f32 %v2728
      %vm2736 = vmor %vm2734, %vm2735
      %v2737 = vsel %vm2736, %v2728, %v2733
      %v2738 = vrsqrt.pop %v2667
      %v2739 = vmul.f32 %v2738, %v2667
      %v2740 = vmul.f32 %v2739, %v2738
      %v2741 = vmul.f32 0.5, %v2740
      %v2742 = vsub.f32 1.5, %v2741
      %v2743 = vmul.f32 %v2738, %v2742
      %vm2744 = vweird.f32 %v2667
      %vm2745 = vweird.f32 %v2738
      %vm2746 = vmor %vm2744, %vm2745
      %v2747 = vsel %vm2746, %v2738, %v2743
      %v2748 = vmul.f32 %v2612, %v2677
      %v2749 = vmul.f32 %v2613, %v2687
      %v2750 = vmul.f32 %v2614, %v2697
      %v2751 = vmul.f32 %v2615, %v2707
      %v2752 = vmul.f32 %v2616, %v2717
      %v2753 = vmul.f32 %v2617, %v2727
      %v2754 = vmul.f32 %v2618, %v2737
      %v2755 = vmul.f32 %v2619, %v2747
      %v2756 = vperm.slane %v368, 4
      %v2757 = vmul.f32 %v2748, %v2756
      %v2758 = vmul.f32 %v2749, %v2756
      %v2759 = vmul.f32 %v2750, %v2756
      %v2760 = vmul.f32 %v2751, %v2756
      %v2761 = vmul.f32 %v2752, %v2756
      %v2762 = vmul.f32 %v2753, %v2756
      %v2763 = vmul.f32 %v2754, %v2756
      %v2764 = vmul.f32 %v2755, %v2756
      %v2765 = vperm.slane %v368, 5
      %v2766 = vadd.f32 %v2757, %v2765
      %v2767 = vadd.f32 %v2758, %v2765
      %v2768 = vadd.f32 %v2759, %v2765
      %v2769 = vadd.f32 %v2760, %v2765
      %v2770 = vadd.f32 %v2761, %v2765
      %v2771 = vadd.f32 %v2762, %v2765
      %v2772 = vadd.f32 %v2763, %v2765
      %v2773 = vadd.f32 %v2764, %v2765
      %v2774 = vadd.f32 %v2089, %v2766
      %v2775 = vadd.f32 %v2090, %v2767
      %v2776 = vadd.f32 %v2091, %v2768
      %v2777 = vadd.f32 %v2092, %v2769
      %v2778 = vadd.f32 %v2093, %v2770
      %v2779 = vadd.f32 %v2094, %v2771
      %v2780 = vadd.f32 %v2095, %v2772
      %v2781 = vadd.f32 %v2096, %v2773
      %s2782 = scalar_lea.vmem %s4, 8
      %v2783 = vld [vmem:[%s2782] sm:$0x3f]
      %s2784 = scalar_lea.vmem %s1, 32
      %v2785 = vld [vmem:[%s2784] sm:$0xff]
      %v2786 = vld [vmem:[%s2784 + $0x8] sm:$0xff]
      %v2787 = vld [vmem:[%s2784 + $0x10] sm:$0xff]
      %v2788 = vld [vmem:[%s2784 + $0x18] sm:$0xff]
      %s2789 = scalar_lea.vmem %s2, 1
      %v2790 = vld [vmem:[%s2789] sm:$0x1]
      %v2792 = vperm.slane %v2790, 0
      %v2795 = vsel %vm377, %v2774, 0
      %v2798 = vsel %vm377, %v2775, 0
      %v2801 = vsel %vm377, %v2776, 0
      %v2804 = vsel %vm377, %v2777, 0
      %v2807 = vsel %vm377, %v2778, 0
      %v2810 = vsel %vm377, %v2779, 0
      %v2813 = vsel %vm377, %v2780, 0
      %v2816 = vsel %vm377, %v2781, 0
      %2818 = vmatpush.msra.mxu0 0.0
      %2819 = vmatpush.msra.mxu0 0.0
      %2820 = vmatpush.msra.mxu0 0.0
      %2821 = vmatpush.msra.mxu0 0.0
      %2822 = vmatpush.msra.mxu0 0.0
      %2823 = vmatpush.msra.mxu0 0.0
      %2824 = vmatpush.msra.mxu0 0.0
      %2825 = vmatpush.msra.mxu0 0.0
      %2826 = vmatpush.msra.mxu0 0.0
      %2827 = vmatpush.msra.mxu0 0.0
      %2828 = vmatpush.msra.mxu0 0.0
      %2829 = vmatpush.msra.mxu0 0.0
      %2830 = vmatpush.msra.mxu0 %v2788
      %2831 = vmatpush.msra.mxu0 %v2787
      %2832 = vmatpush.msra.mxu0 %v2786
      %2833 = vmatpush.msra.mxu0 %v2785
      %2834 = vmatmul.f32.gmra.mxu0 %v2795
      %v2835 = vpop.f32.mrf.mxu0
      %v2836 = vadd.f32 %v2792, %v2835
      %2837 = vmatmul.f32.gmra.mxu0 %v2798
      %v2838 = vpop.f32.mrf.mxu0
      %v2839 = vadd.f32 %v2792, %v2838
      %2840 = vmatmul.f32.gmra.mxu0 %v2801
      %v2841 = vpop.f32.mrf.mxu0
      %v2842 = vadd.f32 %v2792, %v2841
      %2843 = vmatmul.f32.gmra.mxu0 %v2804
      %v2844 = vpop.f32.mrf.mxu0
      %v2845 = vadd.f32 %v2792, %v2844
      %2846 = vmatmul.f32.gmra.mxu0 %v2807
      %v2847 = vpop.f32.mrf.mxu0
      %v2848 = vadd.f32 %v2792, %v2847
      %2849 = vmatmul.f32.gmra.mxu0 %v2810
      %v2850 = vpop.f32.mrf.mxu0
      %v2851 = vadd.f32 %v2792, %v2850
      %2852 = vmatmul.f32.gmra.mxu0 %v2813
      %v2853 = vpop.f32.mrf.mxu0
      %v2854 = vadd.f32 %v2792, %v2853
      %2855 = vmatmul.f32.gmra.mxu0 %v2816
      %v2856 = vpop.f32.mrf.mxu0
      %v2857 = vadd.f32 %v2792, %v2856
      %2858 = vdwg.mxu0
      %2867 = vrot.lane.b32.xlu0 %v2836, 112
      %v2868 = vpop.permute.xlu0 %2867
      %2869 = vrot.lane.b32.xlu0 %v2839, 112
      %v2870 = vpop.permute.xlu0 %2869
      %2871 = vrot.lane.b32.xlu0 %v2842, 112
      %v2872 = vpop.permute.xlu0 %2871
      %2873 = vrot.lane.b32.xlu0 %v2845, 112
      %v2874 = vpop.permute.xlu0 %2873
      %2875 = vrot.lane.b32.xlu0 %v2848, 112
      %v2876 = vpop.permute.xlu0 %2875
      %2877 = vrot.lane.b32.xlu0 %v2851, 112
      %v2878 = vpop.permute.xlu0 %2877
      %2879 = vrot.lane.b32.xlu0 %v2854, 112
      %v2880 = vpop.permute.xlu0 %2879
      %2881 = vrot.lane.b32.xlu0 %v2857, 112
      %v2882 = vpop.permute.xlu0 %2881
      %v2891 = vmul.f32 %v2836, %v2836
      %v2892 = vmul.f32 %v2839, %v2839
      %v2893 = vmul.f32 %v2842, %v2842
      %v2894 = vmul.f32 %v2845, %v2845
      %v2895 = vmul.f32 %v2848, %v2848
      %v2896 = vmul.f32 %v2851, %v2851
      %v2897 = vmul.f32 %v2854, %v2854
      %v2898 = vmul.f32 %v2857, %v2857
      %v2899 = vmul.f32 %v2868, %v2868
      %v2900 = vmul.f32 %v2870, %v2870
      %v2901 = vmul.f32 %v2872, %v2872
      %v2902 = vmul.f32 %v2874, %v2874
      %v2903 = vmul.f32 %v2876, %v2876
      %v2904 = vmul.f32 %v2878, %v2878
      %v2905 = vmul.f32 %v2880, %v2880
      %v2906 = vmul.f32 %v2882, %v2882
      %v2907 = vsel %vm491, %v2891, 0.0
      %2908 = vadd.xlane.f32.xlu0 %v2907
      %v2909 = vpop.xlane.xlu0 %2908
      %v2910 = vsel %vm491, %v2892, 0.0
      %2911 = vadd.xlane.f32.xlu0 %v2910
      %v2912 = vpop.xlane.xlu0 %2911
      %v2913 = vsel %vm491, %v2893, 0.0
      %2914 = vadd.xlane.f32.xlu0 %v2913
      %v2915 = vpop.xlane.xlu0 %2914
      %v2916 = vsel %vm491, %v2894, 0.0
      %2917 = vadd.xlane.f32.xlu0 %v2916
      %v2918 = vpop.xlane.xlu0 %2917
      %v2919 = vsel %vm491, %v2895, 0.0
      %2920 = vadd.xlane.f32.xlu0 %v2919
      %v2921 = vpop.xlane.xlu0 %2920
      %v2922 = vsel %vm491, %v2896, 0.0
      %2923 = vadd.xlane.f32.xlu0 %v2922
      %v2924 = vpop.xlane.xlu0 %2923
      %v2925 = vsel %vm491, %v2897, 0.0
      %2926 = vadd.xlane.f32.xlu0 %v2925
      %v2927 = vpop.xlane.xlu0 %2926
      %v2928 = vsel %vm491, %v2898, 0.0
      %2929 = vadd.xlane.f32.xlu0 %v2928
      %v2930 = vpop.xlane.xlu0 %2929
      %v2931 = vsel %vm491, %v2899, 0.0
      %2932 = vadd.xlane.f32.xlu0 %v2931
      %v2933 = vpop.xlane.xlu0 %2932
      %v2934 = vsel %vm491, %v2900, 0.0
      %2935 = vadd.xlane.f32.xlu0 %v2934
      %v2936 = vpop.xlane.xlu0 %2935
      %v2937 = vsel %vm491, %v2901, 0.0
      %2938 = vadd.xlane.f32.xlu0 %v2937
      %v2939 = vpop.xlane.xlu0 %2938
      %v2940 = vsel %vm491, %v2902, 0.0
      %2941 = vadd.xlane.f32.xlu0 %v2940
      %v2942 = vpop.xlane.xlu0 %2941
      %v2943 = vsel %vm491, %v2903, 0.0
      %2944 = vadd.xlane.f32.xlu0 %v2943
      %v2945 = vpop.xlane.xlu0 %2944
      %v2946 = vsel %vm491, %v2904, 0.0
      %2947 = vadd.xlane.f32.xlu0 %v2946
      %v2948 = vpop.xlane.xlu0 %2947
      %v2949 = vsel %vm491, %v2905, 0.0
      %2950 = vadd.xlane.f32.xlu0 %v2949
      %v2951 = vpop.xlane.xlu0 %2950
      %v2952 = vsel %vm491, %v2906, 0.0
      %2953 = vadd.xlane.f32.xlu0 %v2952
      %v2954 = vpop.xlane.xlu0 %2953
      %v2955 = vmax.f32 %v2909, 1e-24
      %v2956 = vmax.f32 %v2912, 1e-24
      %v2957 = vmax.f32 %v2915, 1e-24
      %v2958 = vmax.f32 %v2918, 1e-24
      %v2959 = vmax.f32 %v2921, 1e-24
      %v2960 = vmax.f32 %v2924, 1e-24
      %v2961 = vmax.f32 %v2927, 1e-24
      %v2962 = vmax.f32 %v2930, 1e-24
      %v2963 = vmax.f32 %v2933, 1e-24
      %v2964 = vmax.f32 %v2936, 1e-24
      %v2965 = vmax.f32 %v2939, 1e-24
      %v2966 = vmax.f32 %v2942, 1e-24
      %v2967 = vmax.f32 %v2945, 1e-24
      %v2968 = vmax.f32 %v2948, 1e-24
      %v2969 = vmax.f32 %v2951, 1e-24
      %v2970 = vmax.f32 %v2954, 1e-24
      %v2971 = vrsqrt.pop %v2955
      %v2972 = vmul.f32 %v2971, %v2955
      %v2973 = vmul.f32 %v2972, %v2971
      %v2974 = vmul.f32 0.5, %v2973
      %v2975 = vsub.f32 1.5, %v2974
      %v2976 = vmul.f32 %v2971, %v2975
      %vm2977 = vweird.f32 %v2955
      %vm2978 = vweird.f32 %v2971
      %vm2979 = vmor %vm2977, %vm2978
      %v2980 = vsel %vm2979, %v2971, %v2976
      %v2981 = vrsqrt.pop %v2956
      %v2982 = vmul.f32 %v2981, %v2956
      %v2983 = vmul.f32 %v2982, %v2981
      %v2984 = vmul.f32 0.5, %v2983
      %v2985 = vsub.f32 1.5, %v2984
      %v2986 = vmul.f32 %v2981, %v2985
      %vm2987 = vweird.f32 %v2956
      %vm2988 = vweird.f32 %v2981
      %vm2989 = vmor %vm2987, %vm2988
      %v2990 = vsel %vm2989, %v2981, %v2986
      %v2991 = vrsqrt.pop %v2957
      %v2992 = vmul.f32 %v2991, %v2957
      %v2993 = vmul.f32 %v2992, %v2991
      %v2994 = vmul.f32 0.5, %v2993
      %v2995 = vsub.f32 1.5, %v2994
      %v2996 = vmul.f32 %v2991, %v2995
      %vm2997 = vweird.f32 %v2957
      %vm2998 = vweird.f32 %v2991
      %vm2999 = vmor %vm2997, %vm2998
      %v3000 = vsel %vm2999, %v2991, %v2996
      %v3001 = vrsqrt.pop %v2958
      %v3002 = vmul.f32 %v3001, %v2958
      %v3003 = vmul.f32 %v3002, %v3001
      %v3004 = vmul.f32 0.5, %v3003
      %v3005 = vsub.f32 1.5, %v3004
      %v3006 = vmul.f32 %v3001, %v3005
      %vm3007 = vweird.f32 %v2958
      %vm3008 = vweird.f32 %v3001
      %vm3009 = vmor %vm3007, %vm3008
      %v3010 = vsel %vm3009, %v3001, %v3006
      %v3011 = vrsqrt.pop %v2959
      %v3012 = vmul.f32 %v3011, %v2959
      %v3013 = vmul.f32 %v3012, %v3011
      %v3014 = vmul.f32 0.5, %v3013
      %v3015 = vsub.f32 1.5, %v3014
      %v3016 = vmul.f32 %v3011, %v3015
      %vm3017 = vweird.f32 %v2959
      %vm3018 = vweird.f32 %v3011
      %vm3019 = vmor %vm3017, %vm3018
      %v3020 = vsel %vm3019, %v3011, %v3016
      %v3021 = vrsqrt.pop %v2960
      %v3022 = vmul.f32 %v3021, %v2960
      %v3023 = vmul.f32 %v3022, %v3021
      %v3024 = vmul.f32 0.5, %v3023
      %v3025 = vsub.f32 1.5, %v3024
      %v3026 = vmul.f32 %v3021, %v3025
      %vm3027 = vweird.f32 %v2960
      %vm3028 = vweird.f32 %v3021
      %vm3029 = vmor %vm3027, %vm3028
      %v3030 = vsel %vm3029, %v3021, %v3026
      %v3031 = vrsqrt.pop %v2961
      %v3032 = vmul.f32 %v3031, %v2961
      %v3033 = vmul.f32 %v3032, %v3031
      %v3034 = vmul.f32 0.5, %v3033
      %v3035 = vsub.f32 1.5, %v3034
      %v3036 = vmul.f32 %v3031, %v3035
      %vm3037 = vweird.f32 %v2961
      %vm3038 = vweird.f32 %v3031
      %vm3039 = vmor %vm3037, %vm3038
      %v3040 = vsel %vm3039, %v3031, %v3036
      %v3041 = vrsqrt.pop %v2962
      %v3042 = vmul.f32 %v3041, %v2962
      %v3043 = vmul.f32 %v3042, %v3041
      %v3044 = vmul.f32 0.5, %v3043
      %v3045 = vsub.f32 1.5, %v3044
      %v3046 = vmul.f32 %v3041, %v3045
      %vm3047 = vweird.f32 %v2962
      %vm3048 = vweird.f32 %v3041
      %vm3049 = vmor %vm3047, %vm3048
      %v3050 = vsel %vm3049, %v3041, %v3046
      %v3051 = vrsqrt.pop %v2963
      %v3052 = vmul.f32 %v3051, %v2963
      %v3053 = vmul.f32 %v3052, %v3051
      %v3054 = vmul.f32 0.5, %v3053
      %v3055 = vsub.f32 1.5, %v3054
      %v3056 = vmul.f32 %v3051, %v3055
      %vm3057 = vweird.f32 %v2963
      %vm3058 = vweird.f32 %v3051
      %vm3059 = vmor %vm3057, %vm3058
      %v3060 = vsel %vm3059, %v3051, %v3056
      %v3061 = vrsqrt.pop %v2964
      %v3062 = vmul.f32 %v3061, %v2964
      %v3063 = vmul.f32 %v3062, %v3061
      %v3064 = vmul.f32 0.5, %v3063
      %v3065 = vsub.f32 1.5, %v3064
      %v3066 = vmul.f32 %v3061, %v3065
      %vm3067 = vweird.f32 %v2964
      %vm3068 = vweird.f32 %v3061
      %vm3069 = vmor %vm3067, %vm3068
      %v3070 = vsel %vm3069, %v3061, %v3066
      %v3071 = vrsqrt.pop %v2965
      %v3072 = vmul.f32 %v3071, %v2965
      %v3073 = vmul.f32 %v3072, %v3071
      %v3074 = vmul.f32 0.5, %v3073
      %v3075 = vsub.f32 1.5, %v3074
      %v3076 = vmul.f32 %v3071, %v3075
      %vm3077 = vweird.f32 %v2965
      %vm3078 = vweird.f32 %v3071
      %vm3079 = vmor %vm3077, %vm3078
      %v3080 = vsel %vm3079, %v3071, %v3076
      %v3081 = vrsqrt.pop %v2966
      %v3082 = vmul.f32 %v3081, %v2966
      %v3083 = vmul.f32 %v3082, %v3081
      %v3084 = vmul.f32 0.5, %v3083
      %v3085 = vsub.f32 1.5, %v3084
      %v3086 = vmul.f32 %v3081, %v3085
      %vm3087 = vweird.f32 %v2966
      %vm3088 = vweird.f32 %v3081
      %vm3089 = vmor %vm3087, %vm3088
      %v3090 = vsel %vm3089, %v3081, %v3086
      %v3091 = vrsqrt.pop %v2967
      %v3092 = vmul.f32 %v3091, %v2967
      %v3093 = vmul.f32 %v3092, %v3091
      %v3094 = vmul.f32 0.5, %v3093
      %v3095 = vsub.f32 1.5, %v3094
      %v3096 = vmul.f32 %v3091, %v3095
      %vm3097 = vweird.f32 %v2967
      %vm3098 = vweird.f32 %v3091
      %vm3099 = vmor %vm3097, %vm3098
      %v3100 = vsel %vm3099, %v3091, %v3096
      %v3101 = vrsqrt.pop %v2968
      %v3102 = vmul.f32 %v3101, %v2968
      %v3103 = vmul.f32 %v3102, %v3101
      %v3104 = vmul.f32 0.5, %v3103
      %v3105 = vsub.f32 1.5, %v3104
      %v3106 = vmul.f32 %v3101, %v3105
      %vm3107 = vweird.f32 %v2968
      %vm3108 = vweird.f32 %v3101
      %vm3109 = vmor %vm3107, %vm3108
      %v3110 = vsel %vm3109, %v3101, %v3106
      %v3111 = vrsqrt.pop %v2969
      %v3112 = vmul.f32 %v3111, %v2969
      %v3113 = vmul.f32 %v3112, %v3111
      %v3114 = vmul.f32 0.5, %v3113
      %v3115 = vsub.f32 1.5, %v3114
      %v3116 = vmul.f32 %v3111, %v3115
      %vm3117 = vweird.f32 %v2969
      %vm3118 = vweird.f32 %v3111
      %vm3119 = vmor %vm3117, %vm3118
      %v3120 = vsel %vm3119, %v3111, %v3116
      %v3121 = vrsqrt.pop %v2970
      %v3122 = vmul.f32 %v3121, %v2970
      %v3123 = vmul.f32 %v3122, %v3121
      %v3124 = vmul.f32 0.5, %v3123
      %v3125 = vsub.f32 1.5, %v3124
      %v3126 = vmul.f32 %v3121, %v3125
      %vm3127 = vweird.f32 %v2970
      %vm3128 = vweird.f32 %v3121
      %vm3129 = vmor %vm3127, %vm3128
      %v3130 = vsel %vm3129, %v3121, %v3126
      %s3131 = scalar_lea.vmem %s9, 2
      %v3132 = vld [vmem:[%s3131] sm:$0x1]
      %v3133 = vld [vmem:[%s3131 + $0x1] sm:$0x1]
      %v3136 = vperm.slane %v3132, 0
      %v3137 = vperm.slane %v3133, 0
      %v3140 = vmul.f32 %v2980, %v3136
      %v3141 = vmul.f32 %v2990, %v3136
      %v3142 = vmul.f32 %v3000, %v3136
      %v3143 = vmul.f32 %v3010, %v3136
      %v3144 = vmul.f32 %v3020, %v3136
      %v3145 = vmul.f32 %v3030, %v3136
      %v3146 = vmul.f32 %v3040, %v3136
      %v3147 = vmul.f32 %v3050, %v3136
      %v3148 = vmul.f32 %v3060, %v3137
      %v3149 = vmul.f32 %v3070, %v3137
      %v3150 = vmul.f32 %v3080, %v3137
      %v3151 = vmul.f32 %v3090, %v3137
      %v3152 = vmul.f32 %v3100, %v3137
      %v3153 = vmul.f32 %v3110, %v3137
      %v3154 = vmul.f32 %v3120, %v3137
      %v3155 = vmul.f32 %v3130, %v3137
      %3157 = vset.pattern.permute.xlu0 0
      %3158 = vperm.xlu0 %3157, %v3140
      %v3159 = vpop.permute.xlu0 %3158
      %3162 = vset.pattern.permute.xlu0 0
      %3163 = vperm.xlu0 %3162, %v3141
      %v3164 = vpop.permute.xlu0 %3163
      %3167 = vset.pattern.permute.xlu0 0
      %3168 = vperm.xlu0 %3167, %v3142
      %v3169 = vpop.permute.xlu0 %3168
      %3172 = vset.pattern.permute.xlu0 0
      %3173 = vperm.xlu0 %3172, %v3143
      %v3174 = vpop.permute.xlu0 %3173
      %3177 = vset.pattern.permute.xlu0 0
      %3178 = vperm.xlu0 %3177, %v3144
      %v3179 = vpop.permute.xlu0 %3178
      %3182 = vset.pattern.permute.xlu0 0
      %3183 = vperm.xlu0 %3182, %v3145
      %v3184 = vpop.permute.xlu0 %3183
      %3187 = vset.pattern.permute.xlu0 0
      %3188 = vperm.xlu0 %3187, %v3146
      %v3189 = vpop.permute.xlu0 %3188
      %3192 = vset.pattern.permute.xlu0 0
      %3193 = vperm.xlu0 %3192, %v3147
      %v3194 = vpop.permute.xlu0 %3193
      %3197 = vset.pattern.permute.xlu0 0
      %3198 = vperm.xlu0 %3197, %v3148
      %v3199 = vpop.permute.xlu0 %3198
      %3202 = vset.pattern.permute.xlu0 0
      %3203 = vperm.xlu0 %3202, %v3149
      %v3204 = vpop.permute.xlu0 %3203
      %3207 = vset.pattern.permute.xlu0 0
      %3208 = vperm.xlu0 %3207, %v3150
      %v3209 = vpop.permute.xlu0 %3208
      %3212 = vset.pattern.permute.xlu0 0
      %3213 = vperm.xlu0 %3212, %v3151
      %v3214 = vpop.permute.xlu0 %3213
      %3217 = vset.pattern.permute.xlu0 0
      %3218 = vperm.xlu0 %3217, %v3152
      %v3219 = vpop.permute.xlu0 %3218
      %3222 = vset.pattern.permute.xlu0 0
      %3223 = vperm.xlu0 %3222, %v3153
      %v3224 = vpop.permute.xlu0 %3223
      %3227 = vset.pattern.permute.xlu0 0
      %3228 = vperm.xlu0 %3227, %v3154
      %v3229 = vpop.permute.xlu0 %3228
      %3232 = vset.pattern.permute.xlu0 0
      %3233 = vperm.xlu0 %3232, %v3155
      %v3234 = vpop.permute.xlu0 %3233
      %v3236 = vmul.f32 %v2836, %v3159
      %v3237 = vmul.f32 %v2839, %v3164
      %v3238 = vmul.f32 %v2842, %v3169
      %v3239 = vmul.f32 %v2845, %v3174
      %v3240 = vmul.f32 %v2848, %v3179
      %v3241 = vmul.f32 %v2851, %v3184
      %v3242 = vmul.f32 %v2854, %v3189
      %v3243 = vmul.f32 %v2857, %v3194
      %v3244 = vmul.f32 %v2868, %v3199
      %v3245 = vmul.f32 %v2870, %v3204
      %v3246 = vmul.f32 %v2872, %v3209
      %v3247 = vmul.f32 %v2874, %v3214
      %v3248 = vmul.f32 %v2876, %v3219
      %v3249 = vmul.f32 %v2878, %v3224
      %v3250 = vmul.f32 %v2880, %v3229
      %v3251 = vmul.f32 %v2882, %v3234
      %3268 = vrot.lane.b32.xlu0 %v2891, 96
      %v3269 = vpop.permute.xlu0 %3268
      %3270 = vrot.lane.b32.xlu0 %v2892, 96
      %v3271 = vpop.permute.xlu0 %3270
      %3272 = vrot.lane.b32.xlu0 %v2893, 96
      %v3273 = vpop.permute.xlu0 %3272
      %3274 = vrot.lane.b32.xlu0 %v2894, 96
      %v3275 = vpop.permute.xlu0 %3274
      %3276 = vrot.lane.b32.xlu0 %v2895, 96
      %v3277 = vpop.permute.xlu0 %3276
      %3278 = vrot.lane.b32.xlu0 %v2896, 96
      %v3279 = vpop.permute.xlu0 %3278
      %3280 = vrot.lane.b32.xlu0 %v2897, 96
      %v3281 = vpop.permute.xlu0 %3280
      %3282 = vrot.lane.b32.xlu0 %v2898, 96
      %v3283 = vpop.permute.xlu0 %3282
      %3284 = vrot.lane.b32.xlu0 %v2899, 96
      %v3285 = vpop.permute.xlu0 %3284
      %3286 = vrot.lane.b32.xlu0 %v2900, 96
      %v3287 = vpop.permute.xlu0 %3286
      %3288 = vrot.lane.b32.xlu0 %v2901, 96
      %v3289 = vpop.permute.xlu0 %3288
      %3290 = vrot.lane.b32.xlu0 %v2902, 96
      %v3291 = vpop.permute.xlu0 %3290
      %3292 = vrot.lane.b32.xlu0 %v2903, 96
      %v3293 = vpop.permute.xlu0 %3292
      %3294 = vrot.lane.b32.xlu0 %v2904, 96
      %v3295 = vpop.permute.xlu0 %3294
      %3296 = vrot.lane.b32.xlu0 %v2905, 96
      %v3297 = vpop.permute.xlu0 %3296
      %3298 = vrot.lane.b32.xlu0 %v2906, 96
      %v3299 = vpop.permute.xlu0 %3298
      %v3316 = vsel %vm491, %v3269, 0.0
      %3317 = vadd.xlane.f32.xlu0 %v3316
      %v3318 = vpop.xlane.xlu0 %3317
      %v3319 = vsel %vm491, %v3271, 0.0
      %3320 = vadd.xlane.f32.xlu0 %v3319
      %v3321 = vpop.xlane.xlu0 %3320
      %v3322 = vsel %vm491, %v3273, 0.0
      %3323 = vadd.xlane.f32.xlu0 %v3322
      %v3324 = vpop.xlane.xlu0 %3323
      %v3325 = vsel %vm491, %v3275, 0.0
      %3326 = vadd.xlane.f32.xlu0 %v3325
      %v3327 = vpop.xlane.xlu0 %3326
      %v3328 = vsel %vm491, %v3277, 0.0
      %3329 = vadd.xlane.f32.xlu0 %v3328
      %v3330 = vpop.xlane.xlu0 %3329
      %v3331 = vsel %vm491, %v3279, 0.0
      %3332 = vadd.xlane.f32.xlu0 %v3331
      %v3333 = vpop.xlane.xlu0 %3332
      %v3334 = vsel %vm491, %v3281, 0.0
      %3335 = vadd.xlane.f32.xlu0 %v3334
      %v3336 = vpop.xlane.xlu0 %3335
      %v3337 = vsel %vm491, %v3283, 0.0
      %3338 = vadd.xlane.f32.xlu0 %v3337
      %v3339 = vpop.xlane.xlu0 %3338
      %v3340 = vsel %vm491, %v3285, 0.0
      %3341 = vadd.xlane.f32.xlu0 %v3340
      %v3342 = vpop.xlane.xlu0 %3341
      %v3343 = vsel %vm491, %v3287, 0.0
      %3344 = vadd.xlane.f32.xlu0 %v3343
      %v3345 = vpop.xlane.xlu0 %3344
      %v3346 = vsel %vm491, %v3289, 0.0
      %3347 = vadd.xlane.f32.xlu0 %v3346
      %v3348 = vpop.xlane.xlu0 %3347
      %v3349 = vsel %vm491, %v3291, 0.0
      %3350 = vadd.xlane.f32.xlu0 %v3349
      %v3351 = vpop.xlane.xlu0 %3350
      %v3352 = vsel %vm491, %v3293, 0.0
      %3353 = vadd.xlane.f32.xlu0 %v3352
      %v3354 = vpop.xlane.xlu0 %3353
      %v3355 = vsel %vm491, %v3295, 0.0
      %3356 = vadd.xlane.f32.xlu0 %v3355
      %v3357 = vpop.xlane.xlu0 %3356
      %v3358 = vsel %vm491, %v3297, 0.0
      %3359 = vadd.xlane.f32.xlu0 %v3358
      %v3360 = vpop.xlane.xlu0 %3359
      %v3361 = vsel %vm491, %v3299, 0.0
      %3362 = vadd.xlane.f32.xlu0 %v3361
      %v3363 = vpop.xlane.xlu0 %3362
      %v3364 = vmax.f32 %v3318, 1e-24
      %v3365 = vmax.f32 %v3321, 1e-24
      %v3366 = vmax.f32 %v3324, 1e-24
      %v3367 = vmax.f32 %v3327, 1e-24
      %v3368 = vmax.f32 %v3330, 1e-24
      %v3369 = vmax.f32 %v3333, 1e-24
      %v3370 = vmax.f32 %v3336, 1e-24
      %v3371 = vmax.f32 %v3339, 1e-24
      %v3372 = vmax.f32 %v3342, 1e-24
      %v3373 = vmax.f32 %v3345, 1e-24
      %v3374 = vmax.f32 %v3348, 1e-24
      %v3375 = vmax.f32 %v3351, 1e-24
      %v3376 = vmax.f32 %v3354, 1e-24
      %v3377 = vmax.f32 %v3357, 1e-24
      %v3378 = vmax.f32 %v3360, 1e-24
      %v3379 = vmax.f32 %v3363, 1e-24
      %v3380 = vrsqrt.pop %v3364
      %v3381 = vmul.f32 %v3380, %v3364
      %v3382 = vmul.f32 %v3381, %v3380
      %v3383 = vmul.f32 0.5, %v3382
      %v3384 = vsub.f32 1.5, %v3383
      %v3385 = vmul.f32 %v3380, %v3384
      %vm3386 = vweird.f32 %v3364
      %vm3387 = vweird.f32 %v3380
      %vm3388 = vmor %vm3386, %vm3387
      %v3389 = vsel %vm3388, %v3380, %v3385
      %v3390 = vrsqrt.pop %v3365
      %v3391 = vmul.f32 %v3390, %v3365
      %v3392 = vmul.f32 %v3391, %v3390
      %v3393 = vmul.f32 0.5, %v3392
      %v3394 = vsub.f32 1.5, %v3393
      %v3395 = vmul.f32 %v3390, %v3394
      %vm3396 = vweird.f32 %v3365
      %vm3397 = vweird.f32 %v3390
      %vm3398 = vmor %vm3396, %vm3397
      %v3399 = vsel %vm3398, %v3390, %v3395
      %v3400 = vrsqrt.pop %v3366
      %v3401 = vmul.f32 %v3400, %v3366
      %v3402 = vmul.f32 %v3401, %v3400
      %v3403 = vmul.f32 0.5, %v3402
      %v3404 = vsub.f32 1.5, %v3403
      %v3405 = vmul.f32 %v3400, %v3404
      %vm3406 = vweird.f32 %v3366
      %vm3407 = vweird.f32 %v3400
      %vm3408 = vmor %vm3406, %vm3407
      %v3409 = vsel %vm3408, %v3400, %v3405
      %v3410 = vrsqrt.pop %v3367
      %v3411 = vmul.f32 %v3410, %v3367
      %v3412 = vmul.f32 %v3411, %v3410
      %v3413 = vmul.f32 0.5, %v3412
      %v3414 = vsub.f32 1.5, %v3413
      %v3415 = vmul.f32 %v3410, %v3414
      %vm3416 = vweird.f32 %v3367
      %vm3417 = vweird.f32 %v3410
      %vm3418 = vmor %vm3416, %vm3417
      %v3419 = vsel %vm3418, %v3410, %v3415
      %v3420 = vrsqrt.pop %v3368
      %v3421 = vmul.f32 %v3420, %v3368
      %v3422 = vmul.f32 %v3421, %v3420
      %v3423 = vmul.f32 0.5, %v3422
      %v3424 = vsub.f32 1.5, %v3423
      %v3425 = vmul.f32 %v3420, %v3424
      %vm3426 = vweird.f32 %v3368
      %vm3427 = vweird.f32 %v3420
      %vm3428 = vmor %vm3426, %vm3427
      %v3429 = vsel %vm3428, %v3420, %v3425
      %v3430 = vrsqrt.pop %v3369
      %v3431 = vmul.f32 %v3430, %v3369
      %v3432 = vmul.f32 %v3431, %v3430
      %v3433 = vmul.f32 0.5, %v3432
      %v3434 = vsub.f32 1.5, %v3433
      %v3435 = vmul.f32 %v3430, %v3434
      %vm3436 = vweird.f32 %v3369
      %vm3437 = vweird.f32 %v3430
      %vm3438 = vmor %vm3436, %vm3437
      %v3439 = vsel %vm3438, %v3430, %v3435
      %v3440 = vrsqrt.pop %v3370
      %v3441 = vmul.f32 %v3440, %v3370
      %v3442 = vmul.f32 %v3441, %v3440
      %v3443 = vmul.f32 0.5, %v3442
      %v3444 = vsub.f32 1.5, %v3443
      %v3445 = vmul.f32 %v3440, %v3444
      %vm3446 = vweird.f32 %v3370
      %vm3447 = vweird.f32 %v3440
      %vm3448 = vmor %vm3446, %vm3447
      %v3449 = vsel %vm3448, %v3440, %v3445
      %v3450 = vrsqrt.pop %v3371
      %v3451 = vmul.f32 %v3450, %v3371
      %v3452 = vmul.f32 %v3451, %v3450
      %v3453 = vmul.f32 0.5, %v3452
      %v3454 = vsub.f32 1.5, %v3453
      %v3455 = vmul.f32 %v3450, %v3454
      %vm3456 = vweird.f32 %v3371
      %vm3457 = vweird.f32 %v3450
      %vm3458 = vmor %vm3456, %vm3457
      %v3459 = vsel %vm3458, %v3450, %v3455
      %v3460 = vrsqrt.pop %v3372
      %v3461 = vmul.f32 %v3460, %v3372
      %v3462 = vmul.f32 %v3461, %v3460
      %v3463 = vmul.f32 0.5, %v3462
      %v3464 = vsub.f32 1.5, %v3463
      %v3465 = vmul.f32 %v3460, %v3464
      %vm3466 = vweird.f32 %v3372
      %vm3467 = vweird.f32 %v3460
      %vm3468 = vmor %vm3466, %vm3467
      %v3469 = vsel %vm3468, %v3460, %v3465
      %v3470 = vrsqrt.pop %v3373
      %v3471 = vmul.f32 %v3470, %v3373
      %v3472 = vmul.f32 %v3471, %v3470
      %v3473 = vmul.f32 0.5, %v3472
      %v3474 = vsub.f32 1.5, %v3473
      %v3475 = vmul.f32 %v3470, %v3474
      %vm3476 = vweird.f32 %v3373
      %vm3477 = vweird.f32 %v3470
      %vm3478 = vmor %vm3476, %vm3477
      %v3479 = vsel %vm3478, %v3470, %v3475
      %v3480 = vrsqrt.pop %v3374
      %v3481 = vmul.f32 %v3480, %v3374
      %v3482 = vmul.f32 %v3481, %v3480
      %v3483 = vmul.f32 0.5, %v3482
      %v3484 = vsub.f32 1.5, %v3483
      %v3485 = vmul.f32 %v3480, %v3484
      %vm3486 = vweird.f32 %v3374
      %vm3487 = vweird.f32 %v3480
      %vm3488 = vmor %vm3486, %vm3487
      %v3489 = vsel %vm3488, %v3480, %v3485
      %v3490 = vrsqrt.pop %v3375
      %v3491 = vmul.f32 %v3490, %v3375
      %v3492 = vmul.f32 %v3491, %v3490
      %v3493 = vmul.f32 0.5, %v3492
      %v3494 = vsub.f32 1.5, %v3493
      %v3495 = vmul.f32 %v3490, %v3494
      %vm3496 = vweird.f32 %v3375
      %vm3497 = vweird.f32 %v3490
      %vm3498 = vmor %vm3496, %vm3497
      %v3499 = vsel %vm3498, %v3490, %v3495
      %v3500 = vrsqrt.pop %v3376
      %v3501 = vmul.f32 %v3500, %v3376
      %v3502 = vmul.f32 %v3501, %v3500
      %v3503 = vmul.f32 0.5, %v3502
      %v3504 = vsub.f32 1.5, %v3503
      %v3505 = vmul.f32 %v3500, %v3504
      %vm3506 = vweird.f32 %v3376
      %vm3507 = vweird.f32 %v3500
      %vm3508 = vmor %vm3506, %vm3507
      %v3509 = vsel %vm3508, %v3500, %v3505
      %v3510 = vrsqrt.pop %v3377
      %v3511 = vmul.f32 %v3510, %v3377
      %v3512 = vmul.f32 %v3511, %v3510
      %v3513 = vmul.f32 0.5, %v3512
      %v3514 = vsub.f32 1.5, %v3513
      %v3515 = vmul.f32 %v3510, %v3514
      %vm3516 = vweird.f32 %v3377
      %vm3517 = vweird.f32 %v3510
      %vm3518 = vmor %vm3516, %vm3517
      %v3519 = vsel %vm3518, %v3510, %v3515
      %v3520 = vrsqrt.pop %v3378
      %v3521 = vmul.f32 %v3520, %v3378
      %v3522 = vmul.f32 %v3521, %v3520
      %v3523 = vmul.f32 0.5, %v3522
      %v3524 = vsub.f32 1.5, %v3523
      %v3525 = vmul.f32 %v3520, %v3524
      %vm3526 = vweird.f32 %v3378
      %vm3527 = vweird.f32 %v3520
      %vm3528 = vmor %vm3526, %vm3527
      %v3529 = vsel %vm3528, %v3520, %v3525
      %v3530 = vrsqrt.pop %v3379
      %v3531 = vmul.f32 %v3530, %v3379
      %v3532 = vmul.f32 %v3531, %v3530
      %v3533 = vmul.f32 0.5, %v3532
      %v3534 = vsub.f32 1.5, %v3533
      %v3535 = vmul.f32 %v3530, %v3534
      %vm3536 = vweird.f32 %v3379
      %vm3537 = vweird.f32 %v3530
      %vm3538 = vmor %vm3536, %vm3537
      %v3539 = vsel %vm3538, %v3530, %v3535
      %v3540 = vmul.f32 %v2836, %v3389
      %v3541 = vmul.f32 %v2839, %v3399
      %v3542 = vmul.f32 %v2842, %v3409
      %v3543 = vmul.f32 %v2845, %v3419
      %v3544 = vmul.f32 %v2848, %v3429
      %v3545 = vmul.f32 %v2851, %v3439
      %v3546 = vmul.f32 %v2854, %v3449
      %v3547 = vmul.f32 %v2857, %v3459
      %v3548 = vmul.f32 %v2868, %v3469
      %v3549 = vmul.f32 %v2870, %v3479
      %v3550 = vmul.f32 %v2872, %v3489
      %v3551 = vmul.f32 %v2874, %v3499
      %v3552 = vmul.f32 %v2876, %v3509
      %v3553 = vmul.f32 %v2878, %v3519
      %v3554 = vmul.f32 %v2880, %v3529
      %v3555 = vmul.f32 %v2882, %v3539
      %s3556 = scalar_lea.vmem %s8, 128
      %v3557 = vld [vmem:[%s3556] sm:$0xff]
      %v3558 = vld [vmem:[%s3556 + $0x8] sm:$0xff]
      %v3559 = vld [vmem:[%s3556 + $0x10] sm:$0xff]
      %v3560 = vld [vmem:[%s3556 + $0x18] sm:$0xff]
      %v3561 = vld [vmem:[%s3556 + $0x20] sm:$0xff]
      %v3562 = vld [vmem:[%s3556 + $0x28] sm:$0xff]
      %v3563 = vld [vmem:[%s3556 + $0x30] sm:$0xff]
      %v3564 = vld [vmem:[%s3556 + $0x38] sm:$0xff]
      %v3565 = vld [vmem:[%s3556 + $0x40] sm:$0xff]
      %v3566 = vld [vmem:[%s3556 + $0x48] sm:$0xff]
      %v3567 = vld [vmem:[%s3556 + $0x50] sm:$0xff]
      %v3568 = vld [vmem:[%s3556 + $0x58] sm:$0xff]
      %v3569 = vld [vmem:[%s3556 + $0x60] sm:$0xff]
      %v3570 = vld [vmem:[%s3556 + $0x68] sm:$0xff]
      %v3571 = vld [vmem:[%s3556 + $0x70] sm:$0xff]
      %v3572 = vld [vmem:[%s3556 + $0x78] sm:$0xff]
      %3581 = vrot.lane.b32.xlu0 %v3540, 96
      %v3582 = vpop.permute.xlu0 %3581
      %3583 = vrot.lane.b32.xlu0 %v3541, 96
      %v3584 = vpop.permute.xlu0 %3583
      %3585 = vrot.lane.b32.xlu0 %v3542, 96
      %v3586 = vpop.permute.xlu0 %3585
      %3587 = vrot.lane.b32.xlu0 %v3543, 96
      %v3588 = vpop.permute.xlu0 %3587
      %3589 = vrot.lane.b32.xlu0 %v3544, 96
      %v3590 = vpop.permute.xlu0 %3589
      %3591 = vrot.lane.b32.xlu0 %v3545, 96
      %v3592 = vpop.permute.xlu0 %3591
      %3593 = vrot.lane.b32.xlu0 %v3546, 96
      %v3594 = vpop.permute.xlu0 %3593
      %3595 = vrot.lane.b32.xlu0 %v3547, 96
      %v3596 = vpop.permute.xlu0 %3595
      %v3598 = vsel %vm491, %v3236, 0
      %v3601 = vsel %vm491, %v3237, 0
      %v3604 = vsel %vm491, %v3238, 0
      %v3607 = vsel %vm491, %v3239, 0
      %v3610 = vsel %vm491, %v3240, 0
      %v3613 = vsel %vm491, %v3241, 0
      %v3616 = vsel %vm491, %v3242, 0
      %v3619 = vsel %vm491, %v3243, 0
      %v3621 = vsel %vm491, %v3582, 0
      %v3623 = vsel %vm491, %v3584, 0
      %v3625 = vsel %vm491, %v3586, 0
      %v3627 = vsel %vm491, %v3588, 0
      %v3629 = vsel %vm491, %v3590, 0
      %v3631 = vsel %vm491, %v3592, 0
      %v3633 = vsel %vm491, %v3594, 0
      %v3635 = vsel %vm491, %v3596, 0
      %3637 = vmatpush.xpose.msra.mxu0 0.0
      %3638 = vmatpush.xpose.msra.mxu0 0.0
      %3639 = vmatpush.xpose.msra.mxu0 0.0
      %3640 = vmatpush.xpose.msra.mxu0 0.0
      %3641 = vmatpush.xpose.msra.mxu0 0.0
      %3642 = vmatpush.xpose.msra.mxu0 0.0
      %3643 = vmatpush.xpose.msra.mxu0 0.0
      %3644 = vmatpush.xpose.msra.mxu0 0.0
      %3645 = vmatpush.xpose.msra.mxu0 %v3635
      %3646 = vmatpush.xpose.msra.mxu0 %v3633
      %3647 = vmatpush.xpose.msra.mxu0 %v3631
      %3648 = vmatpush.xpose.msra.mxu0 %v3629
      %3649 = vmatpush.xpose.msra.mxu0 %v3627
      %3650 = vmatpush.xpose.msra.mxu0 %v3625
      %3651 = vmatpush.xpose.msra.mxu0 %v3623
      %3652 = vmatpush.xpose.msra.mxu0 %v3621
      %3653 = vmatmul.f32.gmra.mxu0 %v3598
      %v3654 = vpop.f32.mrf.mxu0
      %v3655 = vadd.f32 %v3557, %v3654
      %3656 = vmatmul.f32.gmra.mxu0 %v3601
      %v3657 = vpop.f32.mrf.mxu0
      %v3658 = vadd.f32 %v3558, %v3657
      %3659 = vmatmul.f32.gmra.mxu0 %v3604
      %v3660 = vpop.f32.mrf.mxu0
      %v3661 = vadd.f32 %v3559, %v3660
      %3662 = vmatmul.f32.gmra.mxu0 %v3607
      %v3663 = vpop.f32.mrf.mxu0
      %v3664 = vadd.f32 %v3560, %v3663
      %3665 = vmatmul.f32.gmra.mxu0 %v3610
      %v3666 = vpop.f32.mrf.mxu0
      %v3667 = vadd.f32 %v3561, %v3666
      %3668 = vmatmul.f32.gmra.mxu0 %v3613
      %v3669 = vpop.f32.mrf.mxu0
      %v3670 = vadd.f32 %v3562, %v3669
      %3671 = vmatmul.f32.gmra.mxu0 %v3616
      %v3672 = vpop.f32.mrf.mxu0
      %v3673 = vadd.f32 %v3563, %v3672
      %3674 = vmatmul.f32.gmra.mxu0 %v3619
      %v3675 = vpop.f32.mrf.mxu0
      %v3676 = vadd.f32 %v3564, %v3675
      %3677 = vdwg.mxu0
      %3686 = vrot.lane.b32.xlu0 %v3548, 96
      %v3687 = vpop.permute.xlu0 %3686
      %3688 = vrot.lane.b32.xlu0 %v3549, 96
      %v3689 = vpop.permute.xlu0 %3688
      %3690 = vrot.lane.b32.xlu0 %v3550, 96
      %v3691 = vpop.permute.xlu0 %3690
      %3692 = vrot.lane.b32.xlu0 %v3551, 96
      %v3693 = vpop.permute.xlu0 %3692
      %3694 = vrot.lane.b32.xlu0 %v3552, 96
      %v3695 = vpop.permute.xlu0 %3694
      %3696 = vrot.lane.b32.xlu0 %v3553, 96
      %v3697 = vpop.permute.xlu0 %3696
      %3698 = vrot.lane.b32.xlu0 %v3554, 96
      %v3699 = vpop.permute.xlu0 %3698
      %3700 = vrot.lane.b32.xlu0 %v3555, 96
      %v3701 = vpop.permute.xlu0 %3700
      %v3703 = vsel %vm491, %v3244, 0
      %v3706 = vsel %vm491, %v3245, 0
      %v3709 = vsel %vm491, %v3246, 0
      %v3712 = vsel %vm491, %v3247, 0
      %v3715 = vsel %vm491, %v3248, 0
      %v3718 = vsel %vm491, %v3249, 0
      %v3721 = vsel %vm491, %v3250, 0
      %v3724 = vsel %vm491, %v3251, 0
      %v3726 = vsel %vm491, %v3687, 0
      %v3728 = vsel %vm491, %v3689, 0
      %v3730 = vsel %vm491, %v3691, 0
      %v3732 = vsel %vm491, %v3693, 0
      %v3734 = vsel %vm491, %v3695, 0
      %v3736 = vsel %vm491, %v3697, 0
      %v3738 = vsel %vm491, %v3699, 0
      %v3740 = vsel %vm491, %v3701, 0
      %3742 = vmatpush.xpose.msra.mxu0 0.0
      %3743 = vmatpush.xpose.msra.mxu0 0.0
      %3744 = vmatpush.xpose.msra.mxu0 0.0
      %3745 = vmatpush.xpose.msra.mxu0 0.0
      %3746 = vmatpush.xpose.msra.mxu0 0.0
      %3747 = vmatpush.xpose.msra.mxu0 0.0
      %3748 = vmatpush.xpose.msra.mxu0 0.0
      %3749 = vmatpush.xpose.msra.mxu0 0.0
      %3750 = vmatpush.xpose.msra.mxu0 %v3740
      %3751 = vmatpush.xpose.msra.mxu0 %v3738
      %3752 = vmatpush.xpose.msra.mxu0 %v3736
      %3753 = vmatpush.xpose.msra.mxu0 %v3734
      %3754 = vmatpush.xpose.msra.mxu0 %v3732
      %3755 = vmatpush.xpose.msra.mxu0 %v3730
      %3756 = vmatpush.xpose.msra.mxu0 %v3728
      %3757 = vmatpush.xpose.msra.mxu0 %v3726
      %3758 = vmatmul.f32.gmra.mxu0 %v3703
      %v3759 = vpop.f32.mrf.mxu0
      %v3760 = vadd.f32 %v3565, %v3759
      %3761 = vmatmul.f32.gmra.mxu0 %v3706
      %v3762 = vpop.f32.mrf.mxu0
      %v3763 = vadd.f32 %v3566, %v3762
      %3764 = vmatmul.f32.gmra.mxu0 %v3709
      %v3765 = vpop.f32.mrf.mxu0
      %v3766 = vadd.f32 %v3567, %v3765
      %3767 = vmatmul.f32.gmra.mxu0 %v3712
      %v3768 = vpop.f32.mrf.mxu0
      %v3769 = vadd.f32 %v3568, %v3768
      %3770 = vmatmul.f32.gmra.mxu0 %v3715
      %v3771 = vpop.f32.mrf.mxu0
      %v3772 = vadd.f32 %v3569, %v3771
      %3773 = vmatmul.f32.gmra.mxu0 %v3718
      %v3774 = vpop.f32.mrf.mxu0
      %v3775 = vadd.f32 %v3570, %v3774
      %3776 = vmatmul.f32.gmra.mxu0 %v3721
      %v3777 = vpop.f32.mrf.mxu0
      %v3778 = vadd.f32 %v3571, %v3777
      %3779 = vmatmul.f32.gmra.mxu0 %v3724
      %v3780 = vpop.f32.mrf.mxu0
      %v3781 = vadd.f32 %v3572, %v3780
      %3782 = vdwg.mxu0
      %v3783 = vsel %vm1366, %v3655, -inf
      %3784 = vmax.xlane.f32.xlu0 %v3783
      %v3785 = vpop.xlane.xlu0 %3784
      %v3786 = vsel %vm1366, %v3658, -inf
      %3787 = vmax.xlane.f32.xlu0 %v3786
      %v3788 = vpop.xlane.xlu0 %3787
      %v3789 = vsel %vm1366, %v3661, -inf
      %3790 = vmax.xlane.f32.xlu0 %v3789
      %v3791 = vpop.xlane.xlu0 %3790
      %v3792 = vsel %vm1366, %v3664, -inf
      %3793 = vmax.xlane.f32.xlu0 %v3792
      %v3794 = vpop.xlane.xlu0 %3793
      %v3795 = vsel %vm1366, %v3667, -inf
      %3796 = vmax.xlane.f32.xlu0 %v3795
      %v3797 = vpop.xlane.xlu0 %3796
      %v3798 = vsel %vm1366, %v3670, -inf
      %3799 = vmax.xlane.f32.xlu0 %v3798
      %v3800 = vpop.xlane.xlu0 %3799
      %v3801 = vsel %vm1366, %v3673, -inf
      %3802 = vmax.xlane.f32.xlu0 %v3801
      %v3803 = vpop.xlane.xlu0 %3802
      %v3804 = vsel %vm1366, %v3676, -inf
      %3805 = vmax.xlane.f32.xlu0 %v3804
      %v3806 = vpop.xlane.xlu0 %3805
      %v3807 = vsel %vm1366, %v3760, -inf
      %3808 = vmax.xlane.f32.xlu0 %v3807
      %v3809 = vpop.xlane.xlu0 %3808
      %v3810 = vsel %vm1366, %v3763, -inf
      %3811 = vmax.xlane.f32.xlu0 %v3810
      %v3812 = vpop.xlane.xlu0 %3811
      %v3813 = vsel %vm1366, %v3766, -inf
      %3814 = vmax.xlane.f32.xlu0 %v3813
      %v3815 = vpop.xlane.xlu0 %3814
      %v3816 = vsel %vm1366, %v3769, -inf
      %3817 = vmax.xlane.f32.xlu0 %v3816
      %v3818 = vpop.xlane.xlu0 %3817
      %v3819 = vsel %vm1366, %v3772, -inf
      %3820 = vmax.xlane.f32.xlu0 %v3819
      %v3821 = vpop.xlane.xlu0 %3820
      %v3822 = vsel %vm1366, %v3775, -inf
      %3823 = vmax.xlane.f32.xlu0 %v3822
      %v3824 = vpop.xlane.xlu0 %3823
      %v3825 = vsel %vm1366, %v3778, -inf
      %3826 = vmax.xlane.f32.xlu0 %v3825
      %v3827 = vpop.xlane.xlu0 %3826
      %v3828 = vsel %vm1366, %v3781, -inf
      %3829 = vmax.xlane.f32.xlu0 %v3828
      %v3830 = vpop.xlane.xlu0 %3829
      %v3831 = vsub.f32 %v3655, %v3785
      %v3832 = vsub.f32 %v3658, %v3788
      %v3833 = vsub.f32 %v3661, %v3791
      %v3834 = vsub.f32 %v3664, %v3794
      %v3835 = vsub.f32 %v3667, %v3797
      %v3836 = vsub.f32 %v3670, %v3800
      %v3837 = vsub.f32 %v3673, %v3803
      %v3838 = vsub.f32 %v3676, %v3806
      %v3839 = vsub.f32 %v3760, %v3809
      %v3840 = vsub.f32 %v3763, %v3812
      %v3841 = vsub.f32 %v3766, %v3815
      %v3842 = vsub.f32 %v3769, %v3818
      %v3843 = vsub.f32 %v3772, %v3821
      %v3844 = vsub.f32 %v3775, %v3824
      %v3845 = vsub.f32 %v3778, %v3827
      %v3846 = vsub.f32 %v3781, %v3830
      %v3847 = vmul.f32 %v3831, 1.442695
      %v3848 = vpow.pop %v3847
      %v3849 = vmul.f32 %v3832, 1.442695
      %v3850 = vpow.pop %v3849
      %v3851 = vmul.f32 %v3833, 1.442695
      %v3852 = vpow.pop %v3851
      %v3853 = vmul.f32 %v3834, 1.442695
      %v3854 = vpow.pop %v3853
      %v3855 = vmul.f32 %v3835, 1.442695
      %v3856 = vpow.pop %v3855
      %v3857 = vmul.f32 %v3836, 1.442695
      %v3858 = vpow.pop %v3857
      %v3859 = vmul.f32 %v3837, 1.442695
      %v3860 = vpow.pop %v3859
      %v3861 = vmul.f32 %v3838, 1.442695
      %v3862 = vpow.pop %v3861
      %v3863 = vmul.f32 %v3839, 1.442695
      %v3864 = vpow.pop %v3863
      %v3865 = vmul.f32 %v3840, 1.442695
      %v3866 = vpow.pop %v3865
      %v3867 = vmul.f32 %v3841, 1.442695
      %v3868 = vpow.pop %v3867
      %v3869 = vmul.f32 %v3842, 1.442695
      %v3870 = vpow.pop %v3869
      %v3871 = vmul.f32 %v3843, 1.442695
      %v3872 = vpow.pop %v3871
      %v3873 = vmul.f32 %v3844, 1.442695
      %v3874 = vpow.pop %v3873
      %v3875 = vmul.f32 %v3845, 1.442695
      %v3876 = vpow.pop %v3875
      %v3877 = vmul.f32 %v3846, 1.442695
      %v3878 = vpow.pop %v3877
      %v3879 = vsel %vm1366, %v3848, 0.0
      %3880 = vadd.xlane.f32.xlu0 %v3879
      %v3881 = vpop.xlane.xlu0 %3880
      %v3882 = vsel %vm1366, %v3850, 0.0
      %3883 = vadd.xlane.f32.xlu0 %v3882
      %v3884 = vpop.xlane.xlu0 %3883
      %v3885 = vsel %vm1366, %v3852, 0.0
      %3886 = vadd.xlane.f32.xlu0 %v3885
      %v3887 = vpop.xlane.xlu0 %3886
      %v3888 = vsel %vm1366, %v3854, 0.0
      %3889 = vadd.xlane.f32.xlu0 %v3888
      %v3890 = vpop.xlane.xlu0 %3889
      %v3891 = vsel %vm1366, %v3856, 0.0
      %3892 = vadd.xlane.f32.xlu0 %v3891
      %v3893 = vpop.xlane.xlu0 %3892
      %v3894 = vsel %vm1366, %v3858, 0.0
      %3895 = vadd.xlane.f32.xlu0 %v3894
      %v3896 = vpop.xlane.xlu0 %3895
      %v3897 = vsel %vm1366, %v3860, 0.0
      %3898 = vadd.xlane.f32.xlu0 %v3897
      %v3899 = vpop.xlane.xlu0 %3898
      %v3900 = vsel %vm1366, %v3862, 0.0
      %3901 = vadd.xlane.f32.xlu0 %v3900
      %v3902 = vpop.xlane.xlu0 %3901
      %v3903 = vsel %vm1366, %v3864, 0.0
      %3904 = vadd.xlane.f32.xlu0 %v3903
      %v3905 = vpop.xlane.xlu0 %3904
      %v3906 = vsel %vm1366, %v3866, 0.0
      %3907 = vadd.xlane.f32.xlu0 %v3906
      %v3908 = vpop.xlane.xlu0 %3907
      %v3909 = vsel %vm1366, %v3868, 0.0
      %3910 = vadd.xlane.f32.xlu0 %v3909
      %v3911 = vpop.xlane.xlu0 %3910
      %v3912 = vsel %vm1366, %v3870, 0.0
      %3913 = vadd.xlane.f32.xlu0 %v3912
      %v3914 = vpop.xlane.xlu0 %3913
      %v3915 = vsel %vm1366, %v3872, 0.0
      %3916 = vadd.xlane.f32.xlu0 %v3915
      %v3917 = vpop.xlane.xlu0 %3916
      %v3918 = vsel %vm1366, %v3874, 0.0
      %3919 = vadd.xlane.f32.xlu0 %v3918
      %v3920 = vpop.xlane.xlu0 %3919
      %v3921 = vsel %vm1366, %v3876, 0.0
      %3922 = vadd.xlane.f32.xlu0 %v3921
      %v3923 = vpop.xlane.xlu0 %3922
      %v3924 = vsel %vm1366, %v3878, 0.0
      %3925 = vadd.xlane.f32.xlu0 %v3924
      %v3926 = vpop.xlane.xlu0 %3925
      %v3927 = vrcp.pop %v3881
      %v3928 = vrcp.pop %v3884
      %v3929 = vrcp.pop %v3887
      %v3930 = vrcp.pop %v3890
      %v3931 = vrcp.pop %v3893
      %v3932 = vrcp.pop %v3896
      %v3933 = vrcp.pop %v3899
      %v3934 = vrcp.pop %v3902
      %v3935 = vrcp.pop %v3905
      %v3936 = vrcp.pop %v3908
      %v3937 = vrcp.pop %v3911
      %v3938 = vrcp.pop %v3914
      %v3939 = vrcp.pop %v3917
      %v3940 = vrcp.pop %v3920
      %v3941 = vrcp.pop %v3923
      %v3942 = vrcp.pop %v3926
      %v3943 = vmul.f32 %v3848, %v3927
      %v3944 = vmul.f32 %v3850, %v3928
      %v3945 = vmul.f32 %v3852, %v3929
      %v3946 = vmul.f32 %v3854, %v3930
      %v3947 = vmul.f32 %v3856, %v3931
      %v3948 = vmul.f32 %v3858, %v3932
      %v3949 = vmul.f32 %v3860, %v3933
      %v3950 = vmul.f32 %v3862, %v3934
      %v3951 = vmul.f32 %v3864, %v3935
      %v3952 = vmul.f32 %v3866, %v3936
      %v3953 = vmul.f32 %v3868, %v3937
      %v3954 = vmul.f32 %v3870, %v3938
      %v3955 = vmul.f32 %v3872, %v3939
      %v3956 = vmul.f32 %v3874, %v3940
      %v3957 = vmul.f32 %v3876, %v3941
      %v3958 = vmul.f32 %v3878, %v3942
      %3959 = vrot.lane.b32.xlu0 %v2836, 64
      %v3960 = vpop.permute.xlu0 %3959
      %3961 = vrot.lane.b32.xlu0 %v2839, 64
      %v3962 = vpop.permute.xlu0 %3961
      %3963 = vrot.lane.b32.xlu0 %v2842, 64
      %v3964 = vpop.permute.xlu0 %3963
      %3965 = vrot.lane.b32.xlu0 %v2845, 64
      %v3966 = vpop.permute.xlu0 %3965
      %3967 = vrot.lane.b32.xlu0 %v2848, 64
      %v3968 = vpop.permute.xlu0 %3967
      %3969 = vrot.lane.b32.xlu0 %v2851, 64
      %v3970 = vpop.permute.xlu0 %3969
      %3971 = vrot.lane.b32.xlu0 %v2854, 64
      %v3972 = vpop.permute.xlu0 %3971
      %3973 = vrot.lane.b32.xlu0 %v2857, 64
      %v3974 = vpop.permute.xlu0 %3973
      %v3984 = vsel %vm1366, %v3943, 0
      %v3987 = vsel %vm1366, %v3944, 0
      %v3990 = vsel %vm1366, %v3945, 0
      %v3993 = vsel %vm1366, %v3946, 0
      %v3996 = vsel %vm1366, %v3947, 0
      %v3999 = vsel %vm1366, %v3948, 0
      %v4002 = vsel %vm1366, %v3949, 0
      %v4005 = vsel %vm1366, %v3950, 0
      %4007 = vmatpush.msra.mxu0 0.0
      %4008 = vmatpush.msra.mxu0 0.0
      %4009 = vmatpush.msra.mxu0 0.0
      %4010 = vmatpush.msra.mxu0 0.0
      %4011 = vmatpush.msra.mxu0 0.0
      %4012 = vmatpush.msra.mxu0 0.0
      %4013 = vmatpush.msra.mxu0 0.0
      %4014 = vmatpush.msra.mxu0 0.0
      %4015 = vmatpush.msra.mxu0 %v3974
      %4016 = vmatpush.msra.mxu0 %v3972
      %4017 = vmatpush.msra.mxu0 %v3970
      %4018 = vmatpush.msra.mxu0 %v3968
      %4019 = vmatpush.msra.mxu0 %v3966
      %4020 = vmatpush.msra.mxu0 %v3964
      %4021 = vmatpush.msra.mxu0 %v3962
      %4022 = vmatpush.msra.mxu0 %v3960
      %4023 = vmatmul.f32.gmra.mxu0 %v3984
      %v4024 = vpop.f32.mrf.mxu0
      %v4025 = vadd.f32 0.0, %v4024
      %4026 = vmatmul.f32.gmra.mxu0 %v3987
      %v4027 = vpop.f32.mrf.mxu0
      %v4028 = vadd.f32 0.0, %v4027
      %4029 = vmatmul.f32.gmra.mxu0 %v3990
      %v4030 = vpop.f32.mrf.mxu0
      %v4031 = vadd.f32 0.0, %v4030
      %4032 = vmatmul.f32.gmra.mxu0 %v3993
      %v4033 = vpop.f32.mrf.mxu0
      %v4034 = vadd.f32 0.0, %v4033
      %4035 = vmatmul.f32.gmra.mxu0 %v3996
      %v4036 = vpop.f32.mrf.mxu0
      %v4037 = vadd.f32 0.0, %v4036
      %4038 = vmatmul.f32.gmra.mxu0 %v3999
      %v4039 = vpop.f32.mrf.mxu0
      %v4040 = vadd.f32 0.0, %v4039
      %4041 = vmatmul.f32.gmra.mxu0 %v4002
      %v4042 = vpop.f32.mrf.mxu0
      %v4043 = vadd.f32 0.0, %v4042
      %4044 = vmatmul.f32.gmra.mxu0 %v4005
      %v4045 = vpop.f32.mrf.mxu0
      %v4046 = vadd.f32 0.0, %v4045
      %4047 = vdwg.mxu0
      %4048 = vrot.lane.b32.xlu0 %v2868, 64
      %v4049 = vpop.permute.xlu0 %4048
      %4050 = vrot.lane.b32.xlu0 %v2870, 64
      %v4051 = vpop.permute.xlu0 %4050
      %4052 = vrot.lane.b32.xlu0 %v2872, 64
      %v4053 = vpop.permute.xlu0 %4052
      %4054 = vrot.lane.b32.xlu0 %v2874, 64
      %v4055 = vpop.permute.xlu0 %4054
      %4056 = vrot.lane.b32.xlu0 %v2876, 64
      %v4057 = vpop.permute.xlu0 %4056
      %4058 = vrot.lane.b32.xlu0 %v2878, 64
      %v4059 = vpop.permute.xlu0 %4058
      %4060 = vrot.lane.b32.xlu0 %v2880, 64
      %v4061 = vpop.permute.xlu0 %4060
      %4062 = vrot.lane.b32.xlu0 %v2882, 64
      %v4063 = vpop.permute.xlu0 %4062
      %v4073 = vsel %vm1366, %v3951, 0
      %v4076 = vsel %vm1366, %v3952, 0
      %v4079 = vsel %vm1366, %v3953, 0
      %v4082 = vsel %vm1366, %v3954, 0
      %v4085 = vsel %vm1366, %v3955, 0
      %v4088 = vsel %vm1366, %v3956, 0
      %v4091 = vsel %vm1366, %v3957, 0
      %v4094 = vsel %vm1366, %v3958, 0
      %4096 = vmatpush.msra.mxu0 0.0
      %4097 = vmatpush.msra.mxu0 0.0
      %4098 = vmatpush.msra.mxu0 0.0
      %4099 = vmatpush.msra.mxu0 0.0
      %4100 = vmatpush.msra.mxu0 0.0
      %4101 = vmatpush.msra.mxu0 0.0
      %4102 = vmatpush.msra.mxu0 0.0
      %4103 = vmatpush.msra.mxu0 0.0
      %4104 = vmatpush.msra.mxu0 %v4063
      %4105 = vmatpush.msra.mxu0 %v4061
      %4106 = vmatpush.msra.mxu0 %v4059
      %4107 = vmatpush.msra.mxu0 %v4057
      %4108 = vmatpush.msra.mxu0 %v4055
      %4109 = vmatpush.msra.mxu0 %v4053
      %4110 = vmatpush.msra.mxu0 %v4051
      %4111 = vmatpush.msra.mxu0 %v4049
      %4112 = vmatmul.f32.gmra.mxu0 %v4073
      %v4113 = vpop.f32.mrf.mxu0
      %v4114 = vadd.f32 0.0, %v4113
      %4115 = vmatmul.f32.gmra.mxu0 %v4076
      %v4116 = vpop.f32.mrf.mxu0
      %v4117 = vadd.f32 0.0, %v4116
      %4118 = vmatmul.f32.gmra.mxu0 %v4079
      %v4119 = vpop.f32.mrf.mxu0
      %v4120 = vadd.f32 0.0, %v4119
      %4121 = vmatmul.f32.gmra.mxu0 %v4082
      %v4122 = vpop.f32.mrf.mxu0
      %v4123 = vadd.f32 0.0, %v4122
      %4124 = vmatmul.f32.gmra.mxu0 %v4085
      %v4125 = vpop.f32.mrf.mxu0
      %v4126 = vadd.f32 0.0, %v4125
      %4127 = vmatmul.f32.gmra.mxu0 %v4088
      %v4128 = vpop.f32.mrf.mxu0
      %v4129 = vadd.f32 0.0, %v4128
      %4130 = vmatmul.f32.gmra.mxu0 %v4091
      %v4131 = vpop.f32.mrf.mxu0
      %v4132 = vadd.f32 0.0, %v4131
      %4133 = vmatmul.f32.gmra.mxu0 %v4094
      %v4134 = vpop.f32.mrf.mxu0
      %v4135 = vadd.f32 0.0, %v4134
      %4136 = vdwg.mxu0
      %s4137 = scalar_lea.vmem %s3, 32
      %v4138 = vld [vmem:[%s4137] sm:$0xff]
      %v4139 = vld [vmem:[%s4137 + $0x8] sm:$0xff]
      %v4140 = vld [vmem:[%s4137 + $0x10] sm:$0xff]
      %v4141 = vld [vmem:[%s4137 + $0x18] sm:$0xff]
      %v4143 = vsel %vm491, %v4025, 0
      %v4146 = vsel %vm491, %v4028, 0
      %v4149 = vsel %vm491, %v4031, 0
      %v4152 = vsel %vm491, %v4034, 0
      %v4155 = vsel %vm491, %v4037, 0
      %v4158 = vsel %vm491, %v4040, 0
      %v4161 = vsel %vm491, %v4043, 0
      %v4164 = vsel %vm491, %v4046, 0
      %4166 = vmatpush.msra.mxu0 0.0
      %4167 = vmatpush.msra.mxu0 0.0
      %4168 = vmatpush.msra.mxu0 0.0
      %4169 = vmatpush.msra.mxu0 0.0
      %4170 = vmatpush.msra.mxu0 0.0
      %4171 = vmatpush.msra.mxu0 0.0
      %4172 = vmatpush.msra.mxu0 0.0
      %4173 = vmatpush.msra.mxu0 0.0
      %4174 = vmatpush.msra.mxu0 0.0
      %4175 = vmatpush.msra.mxu0 0.0
      %4176 = vmatpush.msra.mxu0 0.0
      %4177 = vmatpush.msra.mxu0 0.0
      %4178 = vmatpush.msra.mxu0 0.0
      %4179 = vmatpush.msra.mxu0 0.0
      %4180 = vmatpush.msra.mxu0 %v4139
      %4181 = vmatpush.msra.mxu0 %v4138
      %4182 = vmatmul.f32.gmra.mxu0 %v4143
      %v4183 = vpop.f32.mrf.mxu0
      %v4184 = vadd.f32 0.0, %v4183
      %4185 = vmatmul.f32.gmra.mxu0 %v4146
      %v4186 = vpop.f32.mrf.mxu0
      %v4187 = vadd.f32 0.0, %v4186
      %4188 = vmatmul.f32.gmra.mxu0 %v4149
      %v4189 = vpop.f32.mrf.mxu0
      %v4190 = vadd.f32 0.0, %v4189
      %4191 = vmatmul.f32.gmra.mxu0 %v4152
      %v4192 = vpop.f32.mrf.mxu0
      %v4193 = vadd.f32 0.0, %v4192
      %4194 = vmatmul.f32.gmra.mxu0 %v4155
      %v4195 = vpop.f32.mrf.mxu0
      %v4196 = vadd.f32 0.0, %v4195
      %4197 = vmatmul.f32.gmra.mxu0 %v4158
      %v4198 = vpop.f32.mrf.mxu0
      %v4199 = vadd.f32 0.0, %v4198
      %4200 = vmatmul.f32.gmra.mxu0 %v4161
      %v4201 = vpop.f32.mrf.mxu0
      %v4202 = vadd.f32 0.0, %v4201
      %4203 = vmatmul.f32.gmra.mxu0 %v4164
      %v4204 = vpop.f32.mrf.mxu0
      %v4205 = vadd.f32 0.0, %v4204
      %4206 = vdwg.mxu0
      %v4208 = vsel %vm491, %v4114, 0
      %v4211 = vsel %vm491, %v4117, 0
      %v4214 = vsel %vm491, %v4120, 0
      %v4217 = vsel %vm491, %v4123, 0
      %v4220 = vsel %vm491, %v4126, 0
      %v4223 = vsel %vm491, %v4129, 0
      %v4226 = vsel %vm491, %v4132, 0
      %v4229 = vsel %vm491, %v4135, 0
      %4231 = vmatpush.msra.mxu0 0.0
      %4232 = vmatpush.msra.mxu0 0.0
      %4233 = vmatpush.msra.mxu0 0.0
      %4234 = vmatpush.msra.mxu0 0.0
      %4235 = vmatpush.msra.mxu0 0.0
      %4236 = vmatpush.msra.mxu0 0.0
      %4237 = vmatpush.msra.mxu0 0.0
      %4238 = vmatpush.msra.mxu0 0.0
      %4239 = vmatpush.msra.mxu0 0.0
      %4240 = vmatpush.msra.mxu0 0.0
      %4241 = vmatpush.msra.mxu0 0.0
      %4242 = vmatpush.msra.mxu0 0.0
      %4243 = vmatpush.msra.mxu0 0.0
      %4244 = vmatpush.msra.mxu0 0.0
      %4245 = vmatpush.msra.mxu0 %v4141
      %4246 = vmatpush.msra.mxu0 %v4140
      %4247 = vmatmul.f32.gmra.mxu0 %v4208
      %v4248 = vpop.f32.mrf.mxu0
      %v4249 = vadd.f32 0.0, %v4248
      %4250 = vmatmul.f32.gmra.mxu0 %v4211
      %v4251 = vpop.f32.mrf.mxu0
      %v4252 = vadd.f32 0.0, %v4251
      %4253 = vmatmul.f32.gmra.mxu0 %v4214
      %v4254 = vpop.f32.mrf.mxu0
      %v4255 = vadd.f32 0.0, %v4254
      %4256 = vmatmul.f32.gmra.mxu0 %v4217
      %v4257 = vpop.f32.mrf.mxu0
      %v4258 = vadd.f32 0.0, %v4257
      %4259 = vmatmul.f32.gmra.mxu0 %v4220
      %v4260 = vpop.f32.mrf.mxu0
      %v4261 = vadd.f32 0.0, %v4260
      %4262 = vmatmul.f32.gmra.mxu0 %v4223
      %v4263 = vpop.f32.mrf.mxu0
      %v4264 = vadd.f32 0.0, %v4263
      %4265 = vmatmul.f32.gmra.mxu0 %v4226
      %v4266 = vpop.f32.mrf.mxu0
      %v4267 = vadd.f32 0.0, %v4266
      %4268 = vmatmul.f32.gmra.mxu0 %v4229
      %v4269 = vpop.f32.mrf.mxu0
      %v4270 = vadd.f32 0.0, %v4269
      %4271 = vdwg.mxu0
      %v4272 = vsel %vm377, %v4184, 0.0
      %v4273 = vsel %vm377, %v4249, 0.0
      %v4274 = vadd.f32 %v4272, %v4273
      %v4275 = vsel %vm377, %v4187, 0.0
      %v4276 = vsel %vm377, %v4252, 0.0
      %v4277 = vadd.f32 %v4275, %v4276
      %v4278 = vsel %vm377, %v4190, 0.0
      %v4279 = vsel %vm377, %v4255, 0.0
      %v4280 = vadd.f32 %v4278, %v4279
      %v4281 = vsel %vm377, %v4193, 0.0
      %v4282 = vsel %vm377, %v4258, 0.0
      %v4283 = vadd.f32 %v4281, %v4282
      %v4284 = vsel %vm377, %v4196, 0.0
      %v4285 = vsel %vm377, %v4261, 0.0
      %v4286 = vadd.f32 %v4284, %v4285
      %v4287 = vsel %vm377, %v4199, 0.0
      %v4288 = vsel %vm377, %v4264, 0.0
      %v4289 = vadd.f32 %v4287, %v4288
      %v4290 = vsel %vm377, %v4202, 0.0
      %v4291 = vsel %vm377, %v4267, 0.0
      %v4292 = vadd.f32 %v4290, %v4291
      %v4293 = vsel %vm377, %v4205, 0.0
      %v4294 = vsel %vm377, %v4270, 0.0
      %v4295 = vadd.f32 %v4293, %v4294
      %v4296 = vperm.slane %v2783, 0
      %v4297 = vadd.f32 %v4274, %v4296
      %v4298 = vadd.f32 %v4277, %v4296
      %v4299 = vadd.f32 %v4280, %v4296
      %v4300 = vadd.f32 %v4283, %v4296
      %v4301 = vadd.f32 %v4286, %v4296
      %v4302 = vadd.f32 %v4289, %v4296
      %v4303 = vadd.f32 %v4292, %v4296
      %v4304 = vadd.f32 %v4295, %v4296
      %v4305 = vsel %vm377, %v4297, 0.0
      %4306 = vadd.xlane.f32.xlu0 %v4305
      %v4307 = vpop.xlane.xlu0 %4306
      %v4308 = vsel %vm377, %v4298, 0.0
      %4309 = vadd.xlane.f32.xlu0 %v4308
      %v4310 = vpop.xlane.xlu0 %4309
      %v4311 = vsel %vm377, %v4299, 0.0
      %4312 = vadd.xlane.f32.xlu0 %v4311
      %v4313 = vpop.xlane.xlu0 %4312
      %v4314 = vsel %vm377, %v4300, 0.0
      %4315 = vadd.xlane.f32.xlu0 %v4314
      %v4316 = vpop.xlane.xlu0 %4315
      %v4317 = vsel %vm377, %v4301, 0.0
      %4318 = vadd.xlane.f32.xlu0 %v4317
      %v4319 = vpop.xlane.xlu0 %4318
      %v4320 = vsel %vm377, %v4302, 0.0
      %4321 = vadd.xlane.f32.xlu0 %v4320
      %v4322 = vpop.xlane.xlu0 %4321
      %v4323 = vsel %vm377, %v4303, 0.0
      %4324 = vadd.xlane.f32.xlu0 %v4323
      %v4325 = vpop.xlane.xlu0 %4324
      %v4326 = vsel %vm377, %v4304, 0.0
      %4327 = vadd.xlane.f32.xlu0 %v4326
      %v4328 = vpop.xlane.xlu0 %4327
      %v4329 = vmul.f32 %v4307, %v1918
      %v4330 = vmul.f32 %v4310, %v1918
      %v4331 = vmul.f32 %v4313, %v1918
      %v4332 = vmul.f32 %v4316, %v1918
      %v4333 = vmul.f32 %v4319, %v1918
      %v4334 = vmul.f32 %v4322, %v1918
      %v4335 = vmul.f32 %v4325, %v1918
      %v4336 = vmul.f32 %v4328, %v1918
      %v4337 = vsub.f32 %v4297, %v4329
      %v4338 = vsub.f32 %v4298, %v4330
      %v4339 = vsub.f32 %v4299, %v4331
      %v4340 = vsub.f32 %v4300, %v4332
      %v4341 = vsub.f32 %v4301, %v4333
      %v4342 = vsub.f32 %v4302, %v4334
      %v4343 = vsub.f32 %v4303, %v4335
      %v4344 = vsub.f32 %v4304, %v4336
      %v4345 = vmul.f32 %v4337, %v4337
      %v4346 = vmul.f32 %v4338, %v4338
      %v4347 = vmul.f32 %v4339, %v4339
      %v4348 = vmul.f32 %v4340, %v4340
      %v4349 = vmul.f32 %v4341, %v4341
      %v4350 = vmul.f32 %v4342, %v4342
      %v4351 = vmul.f32 %v4343, %v4343
      %v4352 = vmul.f32 %v4344, %v4344
      %v4353 = vsel %vm377, %v4345, 0.0
      %4354 = vadd.xlane.f32.xlu0 %v4353
      %v4355 = vpop.xlane.xlu0 %4354
      %v4356 = vsel %vm377, %v4346, 0.0
      %4357 = vadd.xlane.f32.xlu0 %v4356
      %v4358 = vpop.xlane.xlu0 %4357
      %v4359 = vsel %vm377, %v4347, 0.0
      %4360 = vadd.xlane.f32.xlu0 %v4359
      %v4361 = vpop.xlane.xlu0 %4360
      %v4362 = vsel %vm377, %v4348, 0.0
      %4363 = vadd.xlane.f32.xlu0 %v4362
      %v4364 = vpop.xlane.xlu0 %4363
      %v4365 = vsel %vm377, %v4349, 0.0
      %4366 = vadd.xlane.f32.xlu0 %v4365
      %v4367 = vpop.xlane.xlu0 %4366
      %v4368 = vsel %vm377, %v4350, 0.0
      %4369 = vadd.xlane.f32.xlu0 %v4368
      %v4370 = vpop.xlane.xlu0 %4369
      %v4371 = vsel %vm377, %v4351, 0.0
      %4372 = vadd.xlane.f32.xlu0 %v4371
      %v4373 = vpop.xlane.xlu0 %4372
      %v4374 = vsel %vm377, %v4352, 0.0
      %4375 = vadd.xlane.f32.xlu0 %v4374
      %v4376 = vpop.xlane.xlu0 %4375
      %v4377 = vmul.f32 %v4355, %v1918
      %v4378 = vmul.f32 %v4358, %v1918
      %v4379 = vmul.f32 %v4361, %v1918
      %v4380 = vmul.f32 %v4364, %v1918
      %v4381 = vmul.f32 %v4367, %v1918
      %v4382 = vmul.f32 %v4370, %v1918
      %v4383 = vmul.f32 %v4373, %v1918
      %v4384 = vmul.f32 %v4376, %v1918
      %v4385 = vadd.f32 %v4377, 1e-05
      %v4386 = vadd.f32 %v4378, 1e-05
      %v4387 = vadd.f32 %v4379, 1e-05
      %v4388 = vadd.f32 %v4380, 1e-05
      %v4389 = vadd.f32 %v4381, 1e-05
      %v4390 = vadd.f32 %v4382, 1e-05
      %v4391 = vadd.f32 %v4383, 1e-05
      %v4392 = vadd.f32 %v4384, 1e-05
      %v4393 = vrsqrt.pop %v4385
      %v4394 = vmul.f32 %v4393, %v4385
      %v4395 = vmul.f32 %v4394, %v4393
      %v4396 = vmul.f32 0.5, %v4395
      %v4397 = vsub.f32 1.5, %v4396
      %v4398 = vmul.f32 %v4393, %v4397
      %vm4399 = vweird.f32 %v4385
      %vm4400 = vweird.f32 %v4393
      %vm4401 = vmor %vm4399, %vm4400
      %v4402 = vsel %vm4401, %v4393, %v4398
      %v4403 = vrsqrt.pop %v4386
      %v4404 = vmul.f32 %v4403, %v4386
      %v4405 = vmul.f32 %v4404, %v4403
      %v4406 = vmul.f32 0.5, %v4405
      %v4407 = vsub.f32 1.5, %v4406
      %v4408 = vmul.f32 %v4403, %v4407
      %vm4409 = vweird.f32 %v4386
      %vm4410 = vweird.f32 %v4403
      %vm4411 = vmor %vm4409, %vm4410
      %v4412 = vsel %vm4411, %v4403, %v4408
      %v4413 = vrsqrt.pop %v4387
      %v4414 = vmul.f32 %v4413, %v4387
      %v4415 = vmul.f32 %v4414, %v4413
      %v4416 = vmul.f32 0.5, %v4415
      %v4417 = vsub.f32 1.5, %v4416
      %v4418 = vmul.f32 %v4413, %v4417
      %vm4419 = vweird.f32 %v4387
      %vm4420 = vweird.f32 %v4413
      %vm4421 = vmor %vm4419, %vm4420
      %v4422 = vsel %vm4421, %v4413, %v4418
      %v4423 = vrsqrt.pop %v4388
      %v4424 = vmul.f32 %v4423, %v4388
      %v4425 = vmul.f32 %v4424, %v4423
      %v4426 = vmul.f32 0.5, %v4425
      %v4427 = vsub.f32 1.5, %v4426
      %v4428 = vmul.f32 %v4423, %v4427
      %vm4429 = vweird.f32 %v4388
      %vm4430 = vweird.f32 %v4423
      %vm4431 = vmor %vm4429, %vm4430
      %v4432 = vsel %vm4431, %v4423, %v4428
      %v4433 = vrsqrt.pop %v4389
      %v4434 = vmul.f32 %v4433, %v4389
      %v4435 = vmul.f32 %v4434, %v4433
      %v4436 = vmul.f32 0.5, %v4435
      %v4437 = vsub.f32 1.5, %v4436
      %v4438 = vmul.f32 %v4433, %v4437
      %vm4439 = vweird.f32 %v4389
      %vm4440 = vweird.f32 %v4433
      %vm4441 = vmor %vm4439, %vm4440
      %v4442 = vsel %vm4441, %v4433, %v4438
      %v4443 = vrsqrt.pop %v4390
      %v4444 = vmul.f32 %v4443, %v4390
      %v4445 = vmul.f32 %v4444, %v4443
      %v4446 = vmul.f32 0.5, %v4445
      %v4447 = vsub.f32 1.5, %v4446
      %v4448 = vmul.f32 %v4443, %v4447
      %vm4449 = vweird.f32 %v4390
      %vm4450 = vweird.f32 %v4443
      %vm4451 = vmor %vm4449, %vm4450
      %v4452 = vsel %vm4451, %v4443, %v4448
      %v4453 = vrsqrt.pop %v4391
      %v4454 = vmul.f32 %v4453, %v4391
      %v4455 = vmul.f32 %v4454, %v4453
      %v4456 = vmul.f32 0.5, %v4455
      %v4457 = vsub.f32 1.5, %v4456
      %v4458 = vmul.f32 %v4453, %v4457
      %vm4459 = vweird.f32 %v4391
      %vm4460 = vweird.f32 %v4453
      %vm4461 = vmor %vm4459, %vm4460
      %v4462 = vsel %vm4461, %v4453, %v4458
      %v4463 = vrsqrt.pop %v4392
      %v4464 = vmul.f32 %v4463, %v4392
      %v4465 = vmul.f32 %v4464, %v4463
      %v4466 = vmul.f32 0.5, %v4465
      %v4467 = vsub.f32 1.5, %v4466
      %v4468 = vmul.f32 %v4463, %v4467
      %vm4469 = vweird.f32 %v4392
      %vm4470 = vweird.f32 %v4463
      %vm4471 = vmor %vm4469, %vm4470
      %v4472 = vsel %vm4471, %v4463, %v4468
      %v4473 = vmul.f32 %v4337, %v4402
      %v4474 = vmul.f32 %v4338, %v4412
      %v4475 = vmul.f32 %v4339, %v4422
      %v4476 = vmul.f32 %v4340, %v4432
      %v4477 = vmul.f32 %v4341, %v4442
      %v4478 = vmul.f32 %v4342, %v4452
      %v4479 = vmul.f32 %v4343, %v4462
      %v4480 = vmul.f32 %v4344, %v4472
      %v4481 = vperm.slane %v2783, 2
      %v4482 = vmul.f32 %v4473, %v4481
      %v4483 = vmul.f32 %v4474, %v4481
      %v4484 = vmul.f32 %v4475, %v4481
      %v4485 = vmul.f32 %v4476, %v4481
      %v4486 = vmul.f32 %v4477, %v4481
      %v4487 = vmul.f32 %v4478, %v4481
      %v4488 = vmul.f32 %v4479, %v4481
      %v4489 = vmul.f32 %v4480, %v4481
      %v4490 = vperm.slane %v2783, 3
      %v4491 = vadd.f32 %v4482, %v4490
      %v4492 = vadd.f32 %v4483, %v4490
      %v4493 = vadd.f32 %v4484, %v4490
      %v4494 = vadd.f32 %v4485, %v4490
      %v4495 = vadd.f32 %v4486, %v4490
      %v4496 = vadd.f32 %v4487, %v4490
      %v4497 = vadd.f32 %v4488, %v4490
      %v4498 = vadd.f32 %v4489, %v4490
      %v4499 = vadd.f32 %v2774, %v4491
      %v4500 = vadd.f32 %v2775, %v4492
      %v4501 = vadd.f32 %v2776, %v4493
      %v4502 = vadd.f32 %v2777, %v4494
      %v4503 = vadd.f32 %v2778, %v4495
      %v4504 = vadd.f32 %v2779, %v4496
      %v4505 = vadd.f32 %v2780, %v4497
      %v4506 = vadd.f32 %v2781, %v4498
      %s4507 = scalar_lea.vmem %s5, 32
      %v4508 = vld [vmem:[%s4507] sm:$0xff]
      %v4509 = vld [vmem:[%s4507 + $0x8] sm:$0xff]
      %v4510 = vld [vmem:[%s4507 + $0x10] sm:$0xff]
      %v4511 = vld [vmem:[%s4507 + $0x18] sm:$0xff]
      %s4512 = scalar_lea.vmem %s6, 1
      %v4513 = vld [vmem:[%s4512] sm:$0x1]
      %v4515 = vperm.slane %v4513, 0
      %v4518 = vsel %vm377, %v4499, 0
      %v4521 = vsel %vm377, %v4500, 0
      %v4524 = vsel %vm377, %v4501, 0
      %v4527 = vsel %vm377, %v4502, 0
      %v4530 = vsel %vm377, %v4503, 0
      %v4533 = vsel %vm377, %v4504, 0
      %v4536 = vsel %vm377, %v4505, 0
      %v4539 = vsel %vm377, %v4506, 0
      %4541 = vmatpush.msra.mxu0 0.0
      %4542 = vmatpush.msra.mxu0 0.0
      %4543 = vmatpush.msra.mxu0 0.0
      %4544 = vmatpush.msra.mxu0 0.0
      %4545 = vmatpush.msra.mxu0 0.0
      %4546 = vmatpush.msra.mxu0 0.0
      %4547 = vmatpush.msra.mxu0 0.0
      %4548 = vmatpush.msra.mxu0 0.0
      %4549 = vmatpush.msra.mxu0 0.0
      %4550 = vmatpush.msra.mxu0 0.0
      %4551 = vmatpush.msra.mxu0 0.0
      %4552 = vmatpush.msra.mxu0 0.0
      %4553 = vmatpush.msra.mxu0 %v4511
      %4554 = vmatpush.msra.mxu0 %v4510
      %4555 = vmatpush.msra.mxu0 %v4509
      %4556 = vmatpush.msra.mxu0 %v4508
      %4557 = vmatmul.f32.gmra.mxu0 %v4518
      %v4558 = vpop.f32.mrf.mxu0
      %v4559 = vadd.f32 %v4515, %v4558
      %4560 = vmatmul.f32.gmra.mxu0 %v4521
      %v4561 = vpop.f32.mrf.mxu0
      %v4562 = vadd.f32 %v4515, %v4561
      %4563 = vmatmul.f32.gmra.mxu0 %v4524
      %v4564 = vpop.f32.mrf.mxu0
      %v4565 = vadd.f32 %v4515, %v4564
      %4566 = vmatmul.f32.gmra.mxu0 %v4527
      %v4567 = vpop.f32.mrf.mxu0
      %v4568 = vadd.f32 %v4515, %v4567
      %4569 = vmatmul.f32.gmra.mxu0 %v4530
      %v4570 = vpop.f32.mrf.mxu0
      %v4571 = vadd.f32 %v4515, %v4570
      %4572 = vmatmul.f32.gmra.mxu0 %v4533
      %v4573 = vpop.f32.mrf.mxu0
      %v4574 = vadd.f32 %v4515, %v4573
      %4575 = vmatmul.f32.gmra.mxu0 %v4536
      %v4576 = vpop.f32.mrf.mxu0
      %v4577 = vadd.f32 %v4515, %v4576
      %4578 = vmatmul.f32.gmra.mxu0 %v4539
      %v4579 = vpop.f32.mrf.mxu0
      %v4580 = vadd.f32 %v4515, %v4579
      %4581 = vdwg.mxu0
      %v4582 = vmul.f32 %v4559, 0.5
      %v4583 = vmul.f32 %v4562, 0.5
      %v4584 = vmul.f32 %v4565, 0.5
      %v4585 = vmul.f32 %v4568, 0.5
      %v4586 = vmul.f32 %v4571, 0.5
      %v4587 = vmul.f32 %v4574, 0.5
      %v4588 = vmul.f32 %v4577, 0.5
      %v4589 = vmul.f32 %v4580, 0.5
      %v4590 = vmul.f32 %v4559, 0.70710677
      %v4591 = vmul.f32 %v4562, 0.70710677
      %v4592 = vmul.f32 %v4565, 0.70710677
      %v4593 = vmul.f32 %v4568, 0.70710677
      %v4594 = vmul.f32 %v4571, 0.70710677
      %v4595 = vmul.f32 %v4574, 0.70710677
      %v4596 = vmul.f32 %v4577, 0.70710677
      %v4597 = vmul.f32 %v4580, 0.70710677
      %v4598 = vmul.f32 %v4590, %v4590
      %v4599 = vmin.f32 16.0, %v4598
      %v4600 = vmul.f32 %v4599, 2.1237322e-06
      %v4601 = vadd.f32 %v4600, 0.00028619796
      %v4602 = vmul.f32 %v4599, %v4601
      %v4603 = vadd.f32 %v4602, 0.0036580483
      %v4604 = vmul.f32 %v4599, %v4603
      %v4605 = vadd.f32 %v4604, 0.05243302
      %v4606 = vmul.f32 %v4599, %v4605
      %v4607 = vadd.f32 %v4606, 0.18741608
      %v4608 = vmul.f32 %v4599, %v4607
      %v4609 = vadd.f32 %v4608, 1.1283791
      %v4610 = vmul.f32 %v4590, %v4609
      %v4611 = vmul.f32 %v4599, 3.8918573e-05
      %v4612 = vadd.f32 %v4611, 0.001143296
      %v4613 = vmul.f32 %v4599, %v4612
      %v4614 = vadd.f32 %v4613, 0.014752088
      %v4615 = vmul.f32 %v4599, %v4614
      %v4616 = vadd.f32 %v4615, 0.112945676
      %v4617 = vmul.f32 %v4599, %v4616
      %v4618 = vadd.f32 %v4617, 0.4994258
      %v4619 = vmul.f32 %v4599, %v4618
      %v4620 = vadd.f32 %v4619, 1.0
      %v4621 = vrcp.pop %v4620
      %v4622 = vmul.f32 %v4620, %v4621
      %v4623 = vsub.f32 1.0, %v4622
      %v4624 = vmul.f32 %v4621, %v4623
      %v4625 = vadd.f32 %v4621, %v4624
      %vm4626 = vweird.f32 %v4620
      %vm4627 = vweird.f32 %v4621
      %vm4628 = vmor %vm4626, %vm4627
      %v4629 = vsel %vm4628, %v4621, %v4625
      %v4630 = vand.u32 2147483647, %v4620
      %vm4631 = vcmp.eq.f32.partialorder %v4630, 8.507059e+37
      %v4632 = vand.u32 %v4620, 2147483648
      %v4633 = vor.u32 1.1754944e-38, %v4632
      %v4634 = vsel %vm4631, %v4633, %v4629
      %v4635 = vmul.f32 %v4610, %v4634
      %v4636 = vmin.f32 %v4635, 1.0
      %v4637 = vmax.f32 %v4636, -1.0
      %v4638 = vmul.f32 %v4591, %v4591
      %v4639 = vmin.f32 16.0, %v4638
      %v4640 = vmul.f32 %v4639, 2.1237322e-06
      %v4641 = vadd.f32 %v4640, 0.00028619796
      %v4642 = vmul.f32 %v4639, %v4641
      %v4643 = vadd.f32 %v4642, 0.0036580483
      %v4644 = vmul.f32 %v4639, %v4643
      %v4645 = vadd.f32 %v4644, 0.05243302
      %v4646 = vmul.f32 %v4639, %v4645
      %v4647 = vadd.f32 %v4646, 0.18741608
      %v4648 = vmul.f32 %v4639, %v4647
      %v4649 = vadd.f32 %v4648, 1.1283791
      %v4650 = vmul.f32 %v4591, %v4649
      %v4651 = vmul.f32 %v4639, 3.8918573e-05
      %v4652 = vadd.f32 %v4651, 0.001143296
      %v4653 = vmul.f32 %v4639, %v4652
      %v4654 = vadd.f32 %v4653, 0.014752088
      %v4655 = vmul.f32 %v4639, %v4654
      %v4656 = vadd.f32 %v4655, 0.112945676
      %v4657 = vmul.f32 %v4639, %v4656
      %v4658 = vadd.f32 %v4657, 0.4994258
      %v4659 = vmul.f32 %v4639, %v4658
      %v4660 = vadd.f32 %v4659, 1.0
      %v4661 = vrcp.pop %v4660
      %v4662 = vmul.f32 %v4660, %v4661
      %v4663 = vsub.f32 1.0, %v4662
      %v4664 = vmul.f32 %v4661, %v4663
      %v4665 = vadd.f32 %v4661, %v4664
      %vm4666 = vweird.f32 %v4660
      %vm4667 = vweird.f32 %v4661
      %vm4668 = vmor %vm4666, %vm4667
      %v4669 = vsel %vm4668, %v4661, %v4665
      %v4670 = vand.u32 2147483647, %v4660
      %vm4671 = vcmp.eq.f32.partialorder %v4670, 8.507059e+37
      %v4672 = vand.u32 %v4660, 2147483648
      %v4673 = vor.u32 1.1754944e-38, %v4672
      %v4674 = vsel %vm4671, %v4673, %v4669
      %v4675 = vmul.f32 %v4650, %v4674
      %v4676 = vmin.f32 %v4675, 1.0
      %v4677 = vmax.f32 %v4676, -1.0
      %v4678 = vmul.f32 %v4592, %v4592
      %v4679 = vmin.f32 16.0, %v4678
      %v4680 = vmul.f32 %v4679, 2.1237322e-06
      %v4681 = vadd.f32 %v4680, 0.00028619796
      %v4682 = vmul.f32 %v4679, %v4681
      %v4683 = vadd.f32 %v4682, 0.0036580483
      %v4684 = vmul.f32 %v4679, %v4683
      %v4685 = vadd.f32 %v4684, 0.05243302
      %v4686 = vmul.f32 %v4679, %v4685
      %v4687 = vadd.f32 %v4686, 0.18741608
      %v4688 = vmul.f32 %v4679, %v4687
      %v4689 = vadd.f32 %v4688, 1.1283791
      %v4690 = vmul.f32 %v4592, %v4689
      %v4691 = vmul.f32 %v4679, 3.8918573e-05
      %v4692 = vadd.f32 %v4691, 0.001143296
      %v4693 = vmul.f32 %v4679, %v4692
      %v4694 = vadd.f32 %v4693, 0.014752088
      %v4695 = vmul.f32 %v4679, %v4694
      %v4696 = vadd.f32 %v4695, 0.112945676
      %v4697 = vmul.f32 %v4679, %v4696
      %v4698 = vadd.f32 %v4697, 0.4994258
      %v4699 = vmul.f32 %v4679, %v4698
      %v4700 = vadd.f32 %v4699, 1.0
      %v4701 = vrcp.pop %v4700
      %v4702 = vmul.f32 %v4700, %v4701
      %v4703 = vsub.f32 1.0, %v4702
      %v4704 = vmul.f32 %v4701, %v4703
      %v4705 = vadd.f32 %v4701, %v4704
      %vm4706 = vweird.f32 %v4700
      %vm4707 = vweird.f32 %v4701
      %vm4708 = vmor %vm4706, %vm4707
      %v4709 = vsel %vm4708, %v4701, %v4705
      %v4710 = vand.u32 2147483647, %v4700
      %vm4711 = vcmp.eq.f32.partialorder %v4710, 8.507059e+37
      %v4712 = vand.u32 %v4700, 2147483648
      %v4713 = vor.u32 1.1754944e-38, %v4712
      %v4714 = vsel %vm4711, %v4713, %v4709
      %v4715 = vmul.f32 %v4690, %v4714
      %v4716 = vmin.f32 %v4715, 1.0
      %v4717 = vmax.f32 %v4716, -1.0
      %v4718 = vmul.f32 %v4593, %v4593
      %v4719 = vmin.f32 16.0, %v4718
      %v4720 = vmul.f32 %v4719, 2.1237322e-06
      %v4721 = vadd.f32 %v4720, 0.00028619796
      %v4722 = vmul.f32 %v4719, %v4721
      %v4723 = vadd.f32 %v4722, 0.0036580483
      %v4724 = vmul.f32 %v4719, %v4723
      %v4725 = vadd.f32 %v4724, 0.05243302
      %v4726 = vmul.f32 %v4719, %v4725
      %v4727 = vadd.f32 %v4726, 0.18741608
      %v4728 = vmul.f32 %v4719, %v4727
      %v4729 = vadd.f32 %v4728, 1.1283791
      %v4730 = vmul.f32 %v4593, %v4729
      %v4731 = vmul.f32 %v4719, 3.8918573e-05
      %v4732 = vadd.f32 %v4731, 0.001143296
      %v4733 = vmul.f32 %v4719, %v4732
      %v4734 = vadd.f32 %v4733, 0.014752088
      %v4735 = vmul.f32 %v4719, %v4734
      %v4736 = vadd.f32 %v4735, 0.112945676
      %v4737 = vmul.f32 %v4719, %v4736
      %v4738 = vadd.f32 %v4737, 0.4994258
      %v4739 = vmul.f32 %v4719, %v4738
      %v4740 = vadd.f32 %v4739, 1.0
      %v4741 = vrcp.pop %v4740
      %v4742 = vmul.f32 %v4740, %v4741
      %v4743 = vsub.f32 1.0, %v4742
      %v4744 = vmul.f32 %v4741, %v4743
      %v4745 = vadd.f32 %v4741, %v4744
      %vm4746 = vweird.f32 %v4740
      %vm4747 = vweird.f32 %v4741
      %vm4748 = vmor %vm4746, %vm4747
      %v4749 = vsel %vm4748, %v4741, %v4745
      %v4750 = vand.u32 2147483647, %v4740
      %vm4751 = vcmp.eq.f32.partialorder %v4750, 8.507059e+37
      %v4752 = vand.u32 %v4740, 2147483648
      %v4753 = vor.u32 1.1754944e-38, %v4752
      %v4754 = vsel %vm4751, %v4753, %v4749
      %v4755 = vmul.f32 %v4730, %v4754
      %v4756 = vmin.f32 %v4755, 1.0
      %v4757 = vmax.f32 %v4756, -1.0
      %v4758 = vmul.f32 %v4594, %v4594
      %v4759 = vmin.f32 16.0, %v4758
      %v4760 = vmul.f32 %v4759, 2.1237322e-06
      %v4761 = vadd.f32 %v4760, 0.00028619796
      %v4762 = vmul.f32 %v4759, %v4761
      %v4763 = vadd.f32 %v4762, 0.0036580483
      %v4764 = vmul.f32 %v4759, %v4763
      %v4765 = vadd.f32 %v4764, 0.05243302
      %v4766 = vmul.f32 %v4759, %v4765
      %v4767 = vadd.f32 %v4766, 0.18741608
      %v4768 = vmul.f32 %v4759, %v4767
      %v4769 = vadd.f32 %v4768, 1.1283791
      %v4770 = vmul.f32 %v4594, %v4769
      %v4771 = vmul.f32 %v4759, 3.8918573e-05
      %v4772 = vadd.f32 %v4771, 0.001143296
      %v4773 = vmul.f32 %v4759, %v4772
      %v4774 = vadd.f32 %v4773, 0.014752088
      %v4775 = vmul.f32 %v4759, %v4774
      %v4776 = vadd.f32 %v4775, 0.112945676
      %v4777 = vmul.f32 %v4759, %v4776
      %v4778 = vadd.f32 %v4777, 0.4994258
      %v4779 = vmul.f32 %v4759, %v4778
      %v4780 = vadd.f32 %v4779, 1.0
      %v4781 = vrcp.pop %v4780
      %v4782 = vmul.f32 %v4780, %v4781
      %v4783 = vsub.f32 1.0, %v4782
      %v4784 = vmul.f32 %v4781, %v4783
      %v4785 = vadd.f32 %v4781, %v4784
      %vm4786 = vweird.f32 %v4780
      %vm4787 = vweird.f32 %v4781
      %vm4788 = vmor %vm4786, %vm4787
      %v4789 = vsel %vm4788, %v4781, %v4785
      %v4790 = vand.u32 2147483647, %v4780
      %vm4791 = vcmp.eq.f32.partialorder %v4790, 8.507059e+37
      %v4792 = vand.u32 %v4780, 2147483648
      %v4793 = vor.u32 1.1754944e-38, %v4792
      %v4794 = vsel %vm4791, %v4793, %v4789
      %v4795 = vmul.f32 %v4770, %v4794
      %v4796 = vmin.f32 %v4795, 1.0
      %v4797 = vmax.f32 %v4796, -1.0
      %v4798 = vmul.f32 %v4595, %v4595
      %v4799 = vmin.f32 16.0, %v4798
      %v4800 = vmul.f32 %v4799, 2.1237322e-06
      %v4801 = vadd.f32 %v4800, 0.00028619796
      %v4802 = vmul.f32 %v4799, %v4801
      %v4803 = vadd.f32 %v4802, 0.0036580483
      %v4804 = vmul.f32 %v4799, %v4803
      %v4805 = vadd.f32 %v4804, 0.05243302
      %v4806 = vmul.f32 %v4799, %v4805
      %v4807 = vadd.f32 %v4806, 0.18741608
      %v4808 = vmul.f32 %v4799, %v4807
      %v4809 = vadd.f32 %v4808, 1.1283791
      %v4810 = vmul.f32 %v4595, %v4809
      %v4811 = vmul.f32 %v4799, 3.8918573e-05
      %v4812 = vadd.f32 %v4811, 0.001143296
      %v4813 = vmul.f32 %v4799, %v4812
      %v4814 = vadd.f32 %v4813, 0.014752088
      %v4815 = vmul.f32 %v4799, %v4814
      %v4816 = vadd.f32 %v4815, 0.112945676
      %v4817 = vmul.f32 %v4799, %v4816
      %v4818 = vadd.f32 %v4817, 0.4994258
      %v4819 = vmul.f32 %v4799, %v4818
      %v4820 = vadd.f32 %v4819, 1.0
      %v4821 = vrcp.pop %v4820
      %v4822 = vmul.f32 %v4820, %v4821
      %v4823 = vsub.f32 1.0, %v4822
      %v4824 = vmul.f32 %v4821, %v4823
      %v4825 = vadd.f32 %v4821, %v4824
      %vm4826 = vweird.f32 %v4820
      %vm4827 = vweird.f32 %v4821
      %vm4828 = vmor %vm4826, %vm4827
      %v4829 = vsel %vm4828, %v4821, %v4825
      %v4830 = vand.u32 2147483647, %v4820
      %vm4831 = vcmp.eq.f32.partialorder %v4830, 8.507059e+37
      %v4832 = vand.u32 %v4820, 2147483648
      %v4833 = vor.u32 1.1754944e-38, %v4832
      %v4834 = vsel %vm4831, %v4833, %v4829
      %v4835 = vmul.f32 %v4810, %v4834
      %v4836 = vmin.f32 %v4835, 1.0
      %v4837 = vmax.f32 %v4836, -1.0
      %v4838 = vmul.f32 %v4596, %v4596
      %v4839 = vmin.f32 16.0, %v4838
      %v4840 = vmul.f32 %v4839, 2.1237322e-06
      %v4841 = vadd.f32 %v4840, 0.00028619796
      %v4842 = vmul.f32 %v4839, %v4841
      %v4843 = vadd.f32 %v4842, 0.0036580483
      %v4844 = vmul.f32 %v4839, %v4843
      %v4845 = vadd.f32 %v4844, 0.05243302
      %v4846 = vmul.f32 %v4839, %v4845
      %v4847 = vadd.f32 %v4846, 0.18741608
      %v4848 = vmul.f32 %v4839, %v4847
      %v4849 = vadd.f32 %v4848, 1.1283791
      %v4850 = vmul.f32 %v4596, %v4849
      %v4851 = vmul.f32 %v4839, 3.8918573e-05
      %v4852 = vadd.f32 %v4851, 0.001143296
      %v4853 = vmul.f32 %v4839, %v4852
      %v4854 = vadd.f32 %v4853, 0.014752088
      %v4855 = vmul.f32 %v4839, %v4854
      %v4856 = vadd.f32 %v4855, 0.112945676
      %v4857 = vmul.f32 %v4839, %v4856
      %v4858 = vadd.f32 %v4857, 0.4994258
      %v4859 = vmul.f32 %v4839, %v4858
      %v4860 = vadd.f32 %v4859, 1.0
      %v4861 = vrcp.pop %v4860
      %v4862 = vmul.f32 %v4860, %v4861
      %v4863 = vsub.f32 1.0, %v4862
      %v4864 = vmul.f32 %v4861, %v4863
      %v4865 = vadd.f32 %v4861, %v4864
      %vm4866 = vweird.f32 %v4860
      %vm4867 = vweird.f32 %v4861
      %vm4868 = vmor %vm4866, %vm4867
      %v4869 = vsel %vm4868, %v4861, %v4865
      %v4870 = vand.u32 2147483647, %v4860
      %vm4871 = vcmp.eq.f32.partialorder %v4870, 8.507059e+37
      %v4872 = vand.u32 %v4860, 2147483648
      %v4873 = vor.u32 1.1754944e-38, %v4872
      %v4874 = vsel %vm4871, %v4873, %v4869
      %v4875 = vmul.f32 %v4850, %v4874
      %v4876 = vmin.f32 %v4875, 1.0
      %v4877 = vmax.f32 %v4876, -1.0
      %v4878 = vmul.f32 %v4597, %v4597
      %v4879 = vmin.f32 16.0, %v4878
      %v4880 = vmul.f32 %v4879, 2.1237322e-06
      %v4881 = vadd.f32 %v4880, 0.00028619796
      %v4882 = vmul.f32 %v4879, %v4881
      %v4883 = vadd.f32 %v4882, 0.0036580483
      %v4884 = vmul.f32 %v4879, %v4883
      %v4885 = vadd.f32 %v4884, 0.05243302
      %v4886 = vmul.f32 %v4879, %v4885
      %v4887 = vadd.f32 %v4886, 0.18741608
      %v4888 = vmul.f32 %v4879, %v4887
      %v4889 = vadd.f32 %v4888, 1.1283791
      %v4890 = vmul.f32 %v4597, %v4889
      %v4891 = vmul.f32 %v4879, 3.8918573e-05
      %v4892 = vadd.f32 %v4891, 0.001143296
      %v4893 = vmul.f32 %v4879, %v4892
      %v4894 = vadd.f32 %v4893, 0.014752088
      %v4895 = vmul.f32 %v4879, %v4894
      %v4896 = vadd.f32 %v4895, 0.112945676
      %v4897 = vmul.f32 %v4879, %v4896
      %v4898 = vadd.f32 %v4897, 0.4994258
      %v4899 = vmul.f32 %v4879, %v4898
      %v4900 = vadd.f32 %v4899, 1.0
      %v4901 = vrcp.pop %v4900
      %v4902 = vmul.f32 %v4900, %v4901
      %v4903 = vsub.f32 1.0, %v4902
      %v4904 = vmul.f32 %v4901, %v4903
      %v4905 = vadd.f32 %v4901, %v4904
      %vm4906 = vweird.f32 %v4900
      %vm4907 = vweird.f32 %v4901
      %vm4908 = vmor %vm4906, %vm4907
      %v4909 = vsel %vm4908, %v4901, %v4905
      %v4910 = vand.u32 2147483647, %v4900
      %vm4911 = vcmp.eq.f32.partialorder %v4910, 8.507059e+37
      %v4912 = vand.u32 %v4900, 2147483648
      %v4913 = vor.u32 1.1754944e-38, %v4912
      %v4914 = vsel %vm4911, %v4913, %v4909
      %v4915 = vmul.f32 %v4890, %v4914
      %v4916 = vmin.f32 %v4915, 1.0
      %v4917 = vmax.f32 %v4916, -1.0
      %v4918 = vadd.f32 %v4637, 1.0
      %v4919 = vadd.f32 %v4677, 1.0
      %v4920 = vadd.f32 %v4717, 1.0
      %v4921 = vadd.f32 %v4757, 1.0
      %v4922 = vadd.f32 %v4797, 1.0
      %v4923 = vadd.f32 %v4837, 1.0
      %v4924 = vadd.f32 %v4877, 1.0
      %v4925 = vadd.f32 %v4917, 1.0
      %v4926 = vmul.f32 %v4582, %v4918
      %v4927 = vmul.f32 %v4583, %v4919
      %v4928 = vmul.f32 %v4584, %v4920
      %v4929 = vmul.f32 %v4585, %v4921
      %v4930 = vmul.f32 %v4586, %v4922
      %v4931 = vmul.f32 %v4587, %v4923
      %v4932 = vmul.f32 %v4588, %v4924
      %v4933 = vmul.f32 %v4589, %v4925
      %s4934 = scalar_lea.vmem %s7, 128
      %v4935 = vld [vmem:[%s4934] sm:$0xff]
      %v4936 = vld [vmem:[%s4934 + $0x8] sm:$0xff]
      %v4937 = vld [vmem:[%s4934 + $0x10] sm:$0xff]
      %v4938 = vld [vmem:[%s4934 + $0x18] sm:$0xff]
      %v4939 = vld [vmem:[%s4934 + $0x20] sm:$0xff]
      %v4940 = vld [vmem:[%s4934 + $0x28] sm:$0xff]
      %v4941 = vld [vmem:[%s4934 + $0x30] sm:$0xff]
      %v4942 = vld [vmem:[%s4934 + $0x38] sm:$0xff]
      %v4943 = vld [vmem:[%s4934 + $0x40] sm:$0xff]
      %v4944 = vld [vmem:[%s4934 + $0x48] sm:$0xff]
      %v4945 = vld [vmem:[%s4934 + $0x50] sm:$0xff]
      %v4946 = vld [vmem:[%s4934 + $0x58] sm:$0xff]
      %v4947 = vld [vmem:[%s4934 + $0x60] sm:$0xff]
      %v4948 = vld [vmem:[%s4934 + $0x68] sm:$0xff]
      %v4949 = vld [vmem:[%s4934 + $0x70] sm:$0xff]
      %v4950 = vld [vmem:[%s4934 + $0x78] sm:$0xff]
      %v4951 = vperm.slane %v2783, 1
      %4952 = vmatpush.msra.mxu0 %v4950
      %4953 = vmatpush.msra.mxu0 %v4949
      %4954 = vmatpush.msra.mxu0 %v4948
      %4955 = vmatpush.msra.mxu0 %v4947
      %4956 = vmatpush.msra.mxu0 %v4946
      %4957 = vmatpush.msra.mxu0 %v4945
      %4958 = vmatpush.msra.mxu0 %v4944
      %4959 = vmatpush.msra.mxu0 %v4943
      %4960 = vmatpush.msra.mxu0 %v4942
      %4961 = vmatpush.msra.mxu0 %v4941
      %4962 = vmatpush.msra.mxu0 %v4940
      %4963 = vmatpush.msra.mxu0 %v4939
      %4964 = vmatpush.msra.mxu0 %v4938
      %4965 = vmatpush.msra.mxu0 %v4937
      %4966 = vmatpush.msra.mxu0 %v4936
      %4967 = vmatpush.msra.mxu0 %v4935
      %4968 = vmatmul.f32.gmra.mxu0 %v4926
      %v4969 = vpop.f32.mrf.mxu0
      %v4970 = vadd.f32 %v4951, %v4969
      %4971 = vmatmul.f32.gmra.mxu0 %v4927
      %v4972 = vpop.f32.mrf.mxu0
      %v4973 = vadd.f32 %v4951, %v4972
      %4974 = vmatmul.f32.gmra.mxu0 %v4928
      %v4975 = vpop.f32.mrf.mxu0
      %v4976 = vadd.f32 %v4951, %v4975
      %4977 = vmatmul.f32.gmra.mxu0 %v4929
      %v4978 = vpop.f32.mrf.mxu0
      %v4979 = vadd.f32 %v4951, %v4978
      %4980 = vmatmul.f32.gmra.mxu0 %v4930
      %v4981 = vpop.f32.mrf.mxu0
      %v4982 = vadd.f32 %v4951, %v4981
      %4983 = vmatmul.f32.gmra.mxu0 %v4931
      %v4984 = vpop.f32.mrf.mxu0
      %v4985 = vadd.f32 %v4951, %v4984
      %4986 = vmatmul.f32.gmra.mxu0 %v4932
      %v4987 = vpop.f32.mrf.mxu0
      %v4988 = vadd.f32 %v4951, %v4987
      %4989 = vmatmul.f32.gmra.mxu0 %v4933
      %v4990 = vpop.f32.mrf.mxu0
      %v4991 = vadd.f32 %v4951, %v4990
      %4992 = vdwg.mxu0
      %v4993 = vsel %vm377, %v4970, 0.0
      %4994 = vadd.xlane.f32.xlu0 %v4993
      %v4995 = vpop.xlane.xlu0 %4994
      %v4996 = vsel %vm377, %v4973, 0.0
      %4997 = vadd.xlane.f32.xlu0 %v4996
      %v4998 = vpop.xlane.xlu0 %4997
      %v4999 = vsel %vm377, %v4976, 0.0
      %5000 = vadd.xlane.f32.xlu0 %v4999
      %v5001 = vpop.xlane.xlu0 %5000
      %v5002 = vsel %vm377, %v4979, 0.0
      %5003 = vadd.xlane.f32.xlu0 %v5002
      %v5004 = vpop.xlane.xlu0 %5003
      %v5005 = vsel %vm377, %v4982, 0.0
      %5006 = vadd.xlane.f32.xlu0 %v5005
      %v5007 = vpop.xlane.xlu0 %5006
      %v5008 = vsel %vm377, %v4985, 0.0
      %5009 = vadd.xlane.f32.xlu0 %v5008
      %v5010 = vpop.xlane.xlu0 %5009
      %v5011 = vsel %vm377, %v4988, 0.0
      %5012 = vadd.xlane.f32.xlu0 %v5011
      %v5013 = vpop.xlane.xlu0 %5012
      %v5014 = vsel %vm377, %v4991, 0.0
      %5015 = vadd.xlane.f32.xlu0 %v5014
      %v5016 = vpop.xlane.xlu0 %5015
      %v5017 = vmul.f32 %v4995, %v1918
      %v5018 = vmul.f32 %v4998, %v1918
      %v5019 = vmul.f32 %v5001, %v1918
      %v5020 = vmul.f32 %v5004, %v1918
      %v5021 = vmul.f32 %v5007, %v1918
      %v5022 = vmul.f32 %v5010, %v1918
      %v5023 = vmul.f32 %v5013, %v1918
      %v5024 = vmul.f32 %v5016, %v1918
      %v5025 = vsub.f32 %v4970, %v5017
      %v5026 = vsub.f32 %v4973, %v5018
      %v5027 = vsub.f32 %v4976, %v5019
      %v5028 = vsub.f32 %v4979, %v5020
      %v5029 = vsub.f32 %v4982, %v5021
      %v5030 = vsub.f32 %v4985, %v5022
      %v5031 = vsub.f32 %v4988, %v5023
      %v5032 = vsub.f32 %v4991, %v5024
      %v5033 = vmul.f32 %v5025, %v5025
      %v5034 = vmul.f32 %v5026, %v5026
      %v5035 = vmul.f32 %v5027, %v5027
      %v5036 = vmul.f32 %v5028, %v5028
      %v5037 = vmul.f32 %v5029, %v5029
      %v5038 = vmul.f32 %v5030, %v5030
      %v5039 = vmul.f32 %v5031, %v5031
      %v5040 = vmul.f32 %v5032, %v5032
      %v5041 = vsel %vm377, %v5033, 0.0
      %5042 = vadd.xlane.f32.xlu0 %v5041
      %v5043 = vpop.xlane.xlu0 %5042
      %v5044 = vsel %vm377, %v5034, 0.0
      %5045 = vadd.xlane.f32.xlu0 %v5044
      %v5046 = vpop.xlane.xlu0 %5045
      %v5047 = vsel %vm377, %v5035, 0.0
      %5048 = vadd.xlane.f32.xlu0 %v5047
      %v5049 = vpop.xlane.xlu0 %5048
      %v5050 = vsel %vm377, %v5036, 0.0
      %5051 = vadd.xlane.f32.xlu0 %v5050
      %v5052 = vpop.xlane.xlu0 %5051
      %v5053 = vsel %vm377, %v5037, 0.0
      %5054 = vadd.xlane.f32.xlu0 %v5053
      %v5055 = vpop.xlane.xlu0 %5054
      %v5056 = vsel %vm377, %v5038, 0.0
      %5057 = vadd.xlane.f32.xlu0 %v5056
      %v5058 = vpop.xlane.xlu0 %5057
      %v5059 = vsel %vm377, %v5039, 0.0
      %5060 = vadd.xlane.f32.xlu0 %v5059
      %v5061 = vpop.xlane.xlu0 %5060
      %v5062 = vsel %vm377, %v5040, 0.0
      %5063 = vadd.xlane.f32.xlu0 %v5062
      %v5064 = vpop.xlane.xlu0 %5063
      %v5065 = vmul.f32 %v5043, %v1918
      %v5066 = vmul.f32 %v5046, %v1918
      %v5067 = vmul.f32 %v5049, %v1918
      %v5068 = vmul.f32 %v5052, %v1918
      %v5069 = vmul.f32 %v5055, %v1918
      %v5070 = vmul.f32 %v5058, %v1918
      %v5071 = vmul.f32 %v5061, %v1918
      %v5072 = vmul.f32 %v5064, %v1918
      %v5073 = vadd.f32 %v5065, 1e-05
      %v5074 = vadd.f32 %v5066, 1e-05
      %v5075 = vadd.f32 %v5067, 1e-05
      %v5076 = vadd.f32 %v5068, 1e-05
      %v5077 = vadd.f32 %v5069, 1e-05
      %v5078 = vadd.f32 %v5070, 1e-05
      %v5079 = vadd.f32 %v5071, 1e-05
      %v5080 = vadd.f32 %v5072, 1e-05
      %v5081 = vrsqrt.pop %v5073
      %v5082 = vmul.f32 %v5081, %v5073
      %v5083 = vmul.f32 %v5082, %v5081
      %v5084 = vmul.f32 0.5, %v5083
      %v5085 = vsub.f32 1.5, %v5084
      %v5086 = vmul.f32 %v5081, %v5085
      %vm5087 = vweird.f32 %v5073
      %vm5088 = vweird.f32 %v5081
      %vm5089 = vmor %vm5087, %vm5088
      %v5090 = vsel %vm5089, %v5081, %v5086
      %v5091 = vrsqrt.pop %v5074
      %v5092 = vmul.f32 %v5091, %v5074
      %v5093 = vmul.f32 %v5092, %v5091
      %v5094 = vmul.f32 0.5, %v5093
      %v5095 = vsub.f32 1.5, %v5094
      %v5096 = vmul.f32 %v5091, %v5095
      %vm5097 = vweird.f32 %v5074
      %vm5098 = vweird.f32 %v5091
      %vm5099 = vmor %vm5097, %vm5098
      %v5100 = vsel %vm5099, %v5091, %v5096
      %v5101 = vrsqrt.pop %v5075
      %v5102 = vmul.f32 %v5101, %v5075
      %v5103 = vmul.f32 %v5102, %v5101
      %v5104 = vmul.f32 0.5, %v5103
      %v5105 = vsub.f32 1.5, %v5104
      %v5106 = vmul.f32 %v5101, %v5105
      %vm5107 = vweird.f32 %v5075
      %vm5108 = vweird.f32 %v5101
      %vm5109 = vmor %vm5107, %vm5108
      %v5110 = vsel %vm5109, %v5101, %v5106
      %v5111 = vrsqrt.pop %v5076
      %v5112 = vmul.f32 %v5111, %v5076
      %v5113 = vmul.f32 %v5112, %v5111
      %v5114 = vmul.f32 0.5, %v5113
      %v5115 = vsub.f32 1.5, %v5114
      %v5116 = vmul.f32 %v5111, %v5115
      %vm5117 = vweird.f32 %v5076
      %vm5118 = vweird.f32 %v5111
      %vm5119 = vmor %vm5117, %vm5118
      %v5120 = vsel %vm5119, %v5111, %v5116
      %v5121 = vrsqrt.pop %v5077
      %v5122 = vmul.f32 %v5121, %v5077
      %v5123 = vmul.f32 %v5122, %v5121
      %v5124 = vmul.f32 0.5, %v5123
      %v5125 = vsub.f32 1.5, %v5124
      %v5126 = vmul.f32 %v5121, %v5125
      %vm5127 = vweird.f32 %v5077
      %vm5128 = vweird.f32 %v5121
      %vm5129 = vmor %vm5127, %vm5128
      %v5130 = vsel %vm5129, %v5121, %v5126
      %v5131 = vrsqrt.pop %v5078
      %v5132 = vmul.f32 %v5131, %v5078
      %v5133 = vmul.f32 %v5132, %v5131
      %v5134 = vmul.f32 0.5, %v5133
      %v5135 = vsub.f32 1.5, %v5134
      %v5136 = vmul.f32 %v5131, %v5135
      %vm5137 = vweird.f32 %v5078
      %vm5138 = vweird.f32 %v5131
      %vm5139 = vmor %vm5137, %vm5138
      %v5140 = vsel %vm5139, %v5131, %v5136
      %v5141 = vrsqrt.pop %v5079
      %v5142 = vmul.f32 %v5141, %v5079
      %v5143 = vmul.f32 %v5142, %v5141
      %v5144 = vmul.f32 0.5, %v5143
      %v5145 = vsub.f32 1.5, %v5144
      %v5146 = vmul.f32 %v5141, %v5145
      %vm5147 = vweird.f32 %v5079
      %vm5148 = vweird.f32 %v5141
      %vm5149 = vmor %vm5147, %vm5148
      %v5150 = vsel %vm5149, %v5141, %v5146
      %v5151 = vrsqrt.pop %v5080
      %v5152 = vmul.f32 %v5151, %v5080
      %v5153 = vmul.f32 %v5152, %v5151
      %v5154 = vmul.f32 0.5, %v5153
      %v5155 = vsub.f32 1.5, %v5154
      %v5156 = vmul.f32 %v5151, %v5155
      %vm5157 = vweird.f32 %v5080
      %vm5158 = vweird.f32 %v5151
      %vm5159 = vmor %vm5157, %vm5158
      %v5160 = vsel %vm5159, %v5151, %v5156
      %v5161 = vmul.f32 %v5025, %v5090
      %v5162 = vmul.f32 %v5026, %v5100
      %v5163 = vmul.f32 %v5027, %v5110
      %v5164 = vmul.f32 %v5028, %v5120
      %v5165 = vmul.f32 %v5029, %v5130
      %v5166 = vmul.f32 %v5030, %v5140
      %v5167 = vmul.f32 %v5031, %v5150
      %v5168 = vmul.f32 %v5032, %v5160
      %v5169 = vperm.slane %v2783, 4
      %v5170 = vmul.f32 %v5161, %v5169
      %v5171 = vmul.f32 %v5162, %v5169
      %v5172 = vmul.f32 %v5163, %v5169
      %v5173 = vmul.f32 %v5164, %v5169
      %v5174 = vmul.f32 %v5165, %v5169
      %v5175 = vmul.f32 %v5166, %v5169
      %v5176 = vmul.f32 %v5167, %v5169
      %v5177 = vmul.f32 %v5168, %v5169
      %v5178 = vperm.slane %v2783, 5
      %v5179 = vadd.f32 %v5170, %v5178
      %v5180 = vadd.f32 %v5171, %v5178
      %v5181 = vadd.f32 %v5172, %v5178
      %v5182 = vadd.f32 %v5173, %v5178
      %v5183 = vadd.f32 %v5174, %v5178
      %v5184 = vadd.f32 %v5175, %v5178
      %v5185 = vadd.f32 %v5176, %v5178
      %v5186 = vadd.f32 %v5177, %v5178
      %v5187 = vadd.f32 %v4499, %v5179
      %v5188 = vadd.f32 %v4500, %v5180
      %v5189 = vadd.f32 %v4501, %v5181
      %v5190 = vadd.f32 %v4502, %v5182
      %v5191 = vadd.f32 %v4503, %v5183
      %v5192 = vadd.f32 %v4504, %v5184
      %v5193 = vadd.f32 %v4505, %v5185
      %v5194 = vadd.f32 %v4506, %v5186
      %5195 = vst.msk [vmem:[%s359] sm:$0xff] %vm377, %v5187
      %5196 = vst.msk [vmem:[%s359 + $0x8] sm:$0xff] %vm377, %v5188
      %5197 = vst.msk [vmem:[%s359 + $0x10] sm:$0xff] %vm377, %v5189
      %5198 = vst.msk [vmem:[%s359 + $0x18] sm:$0xff] %vm377, %v5190
      %5199 = vst.msk [vmem:[%s359 + $0x20] sm:$0xff] %vm377, %v5191
      %5200 = vst.msk [vmem:[%s359 + $0x28] sm:$0xff] %vm377, %v5192
      %5201 = vst.msk [vmem:[%s359 + $0x30] sm:$0xff] %vm377, %v5193
      %5202 = vst.msk [vmem:[%s359 + $0x38] sm:$0xff] %vm377, %v5194
      %p5203 = scmp.lt.s32.totalorder %s21, 1
      %s5204 = scalar_select %p5203, %s21, 1
      %s5205 = smul.addr %s5204, 8
      %s5206 = smul.addr %s5205, 8
      %s5207 = scalar_lea.vmem %s10, %s5206
      // Predicated region
      $region61: #{basic_layer_forward.1} parent=59 // pred_check
        %p5208 = pneg %p254
      $region62: #{basic_layer_forward.1} parent=59 // pred_check_branch
        %5210 = sbr.rel (%p5208) target = $region64
      $region63: #{basic_layer_forward.1} parent=59 // pred_region
        _
      $region64: #{basic_layer_forward.1} parent=59 // pred_fallthru
        _
    $region60: #{basic_layer_forward.1} parent=5 // pred_fallthru
      _
    %p5211 = scmp.le.s32.totalorder 2, %s16
    // Predicated region
    $region65: #{basic_layer_forward.1} parent=5 // pred_check
      %p5212 = pneg %p5211
    $region66: #{basic_layer_forward.1} parent=5 // pred_check_branch
      %5214 = sbr.rel (%p5212) target = $region68
    $region67: #{basic_layer_forward.1} parent=5 // pred_region
      %s5215 = ssub.s32 %s16, 2
      // Predicated region
      $region69: #{basic_layer_forward.1} parent=67 // pred_check
        %p5216 = pneg %p260
      $region70: #{basic_layer_forward.1} parent=67 // pred_check_branch
        %5218 = sbr.rel (%p5216) target = $region72
      $region71: #{basic_layer_forward.1} parent=67 // pred_region
        %p5219 = scmp.lt.s32.totalorder %s22, 1
        %s5220 = scalar_select %p5219, %s22, 1
        %s5221 = smul.addr %s5220, 8
        %s5222 = smul.addr %s5221, 8
        %s5223 = scalar_lea.vmem %s10, %s5222
      $region72: #{basic_layer_forward.1} parent=67 // pred_fallthru
        _
    $region68: #{basic_layer_forward.1} parent=5 // pred_fallthru
      _
  $region6: #{basic_layer_forward.1} parent=0 // loop_footer
    %s20 = sadd.s32 1, %s16
  $region7: #{basic_layer_forward.1} parent=0 // loop_footer_branch
    %15 = sbr.rel target = $region3
  $region8: #{basic_layer_forward.1} parent=0 // loop_exit
    _

</llo_original>
